<compile_context>
chip_gen: v6e
topology: v6e:2x2x1
jax: 0.10.0
libtpu: 0.0.40
codegen_flags: <defaults>
</compile_context>

<pallas_src>
import functools

import jax
import jax.numpy as jnp
from jax.experimental import pallas as pl
from jax.experimental.pallas import tpu as pltpu


HIDDEN = 8
FIELD_CH = 2  # displacement field has 2 channels (x, y)


# ----------------------------------------------------------------------------
# Fused 2-layer 3x3 conv kernel (conv -> leaky relu -> conv), W in lanes.
# ----------------------------------------------------------------------------
def _fused_aligner_net_kernel(wb_ref, xc_ref, xu_ref, xd_ref, o_ref,
                              xpad_ref, hpad_ref, *, TH, W, CIN, HID, COUT):
    # wb_ref : SMEM f32[9*CIN*HID + HID + 9*HID*COUT + COUT]  (w1|b1|w2|b2)
    # xc_ref : (1, CIN, TH, W)   current H-tile of the input
    # xu_ref : (1, CIN, 8,  W)   8-row block just above the tile (halo source)
    # xd_ref : (1, CIN, 8,  W)   8-row block just below the tile (halo source)
    # o_ref  : (1, COUT, TH, W)
    # xpad_ref : VMEM (CIN, TH+4, W+2)  zero-padded input slab (2-row halo)
    # hpad_ref : VMEM (HID, TH+2, W+2)  zero-padded hidden slab (1-row halo)
    i = pl.program_id(1)
    last = pl.num_programs(1) - 1

    W1_OFF = 0
    B1_OFF = 9 * CIN * HID
    W2_OFF = B1_OFF + HID
    B2_OFF = W2_OFF + 9 * HID * COUT

    # ---- assemble zero-padded input slab (image rows R0-2 .. R0+TH+1) ------
    xpad_ref[...] = jnp.zeros_like(xpad_ref)
    xpad_ref[:, 2:TH + 2, 1:W + 1] = xc_ref[0]

    @pl.when(i > 0)
    def _():  # real rows R0-2, R0-1 come from the last 2 rows of the block above
        xpad_ref[:, 0:2, 1:W + 1] = xu_ref[0, :, 6:8, :]

    @pl.when(i < last)
    def _():  # real rows R0+TH, R0+TH+1 come from the first 2 rows of the block below
        xpad_ref[:, TH + 2:TH + 4, 1:W + 1] = xd_ref[0, :, 0:2, :]

    # ---- layer 1: CIN -> HID, leaky relu; computed with a 1-row halo -------
    acc1 = [jnp.zeros((TH + 2, W), jnp.float32) for _ in range(HID)]
    for dy in range(3):
        for dx in range(3):
            for ci in range(CIN):
                slab = xpad_ref[ci, dy:dy + TH + 2, dx:dx + W]
                base = W1_OFF + ((dy * 3 + dx) * CIN + ci) * HID
                for co in range(HID):
                    acc1[co] = acc1[co] + wb_ref[base + co] * slab

    hpad_ref[...] = jnp.zeros_like(hpad_ref)
    for co in range(HID):
        a = acc1[co] + wb_ref[B1_OFF + co]
        hpad_ref[co, :, 1:W + 1] = jnp.where(a > 0, a, 0.1 * a)

    # Layer-2 SAME padding: hidden outside the image must be zero.
    @pl.when(i == 0)
    def _():
        hpad_ref[:, 0:1, :] = jnp.zeros((HID, 1, W + 2), jnp.float32)

    @pl.when(i == last)
    def _():
        hpad_ref[:, TH + 1:TH + 2, :] = jnp.zeros((HID, 1, W + 2), jnp.float32)

    # ---- layer 2: HID -> COUT ----------------------------------------------
    acc2 = [jnp.zeros((TH, W), jnp.float32) for _ in range(COUT)]
    for dy in range(3):
        for dx in range(3):
            for ci in range(HID):
                slab = hpad_ref[ci, dy:dy + TH, dx:dx + W]
                base = W2_OFF + ((dy * 3 + dx) * HID + ci) * COUT
                for co in range(COUT):
                    acc2[co] = acc2[co] + wb_ref[base + co] * slab

    for co in range(COUT):
        o_ref[0, co, :, :] = acc2[co] + wb_ref[B2_OFF + co]


def _pick_tile_h(H, max_tile=128):
    """Largest multiple of 8 dividing H (capped), preferring >=2 tiles for grid parallelism."""
    cands = [th for th in range(8, min(H, max_tile) + 1, 8) if H % th == 0]
    if not cands:
        raise ValueError(f"H={H} must be a multiple of 8")
    multi = [th for th in cands if H // th >= 2]
    return max(multi) if multi else max(cands)


def _fused_conv_net(params, x, tile_h=None):
    """x: (N, CIN, H, W) f32 -> (N, FIELD_CH, H, W) f32 via one fused Pallas call."""
    N, CIN, H, W = x.shape
    HID = params["w1"].shape[-1]
    COUT = params["w2"].shape[-1]
    if H % 8 != 0:
        raise ValueError("H must be a multiple of 8 for the halo-tiled kernel")
    TH = tile_h if tile_h is not None else _pick_tile_h(H)
    assert H % TH == 0 and TH % 8 == 0
    n_tiles = H // TH
    TH8 = TH // 8
    H8 = H // 8

    # Pack all weights/biases into one small SMEM-resident f32 vector.
    wb = jnp.concatenate([
        params["w1"].reshape(-1), params["b1"].reshape(-1),
        params["w2"].reshape(-1), params["b2"].reshape(-1),
    ]).astype(jnp.float32)

    kernel = functools.partial(
        _fused_aligner_net_kernel, TH=TH, W=W, CIN=CIN, HID=HID, COUT=COUT)

    return pl.pallas_call(
        kernel,
        out_shape=jax.ShapeDtypeStruct((N, COUT, H, W), jnp.float32),
        grid=(N, n_tiles),
        in_specs=[
            pl.BlockSpec(memory_space=pltpu.MemorySpace.SMEM),          # weights
            pl.BlockSpec((1, CIN, TH, W), lambda n, i: (n, 0, i, 0)),   # current tile
            pl.BlockSpec((1, CIN, 8, W),                                # halo above
                         lambda n, i: (n, 0, jnp.maximum(i * TH8 - 1, 0), 0)),
            pl.BlockSpec((1, CIN, 8, W),                                # halo below
                         lambda n, i: (n, 0, jnp.minimum((i + 1) * TH8, H8 - 1), 0)),
        ],
        out_specs=pl.BlockSpec((1, COUT, TH, W), lambda n, i: (n, 0, i, 0)),
        scratch_shapes=[
            pltpu.VMEM((CIN, TH + 4, W + 2), jnp.float32),  # padded input slab
            pltpu.VMEM((HID, TH + 2, W + 2), jnp.float32),  # padded hidden slab
        ],
        compiler_params=pltpu.CompilerParams(
            dimension_semantics=("parallel", "parallel")),
    )(wb, x, x, x)


# ----------------------------------------------------------------------------
# Synthetic "net" parameters (deterministic init; stands in for the checkpoint)
# ----------------------------------------------------------------------------
def init_params(key, in_ch):
    k1, k2, k3, k4 = jax.random.split(key, 4)
    w1 = jax.random.normal(k1, (3, 3, in_ch, HIDDEN), jnp.float32) * 0.2
    b1 = jax.random.normal(k2, (HIDDEN,), jnp.float32) * 0.01
    w2 = jax.random.normal(k3, (3, 3, HIDDEN, FIELD_CH), jnp.float32) * 0.2
    b2 = jax.random.normal(k4, (FIELD_CH,), jnp.float32) * 0.01
    return dict(w1=w1, b1=b1, w2=w2, b2=b2)


# ----------------------------------------------------------------------------
# Aligner.forward equivalent (pass_field=True, no agg field, no finetune)
# ----------------------------------------------------------------------------
def aligner_forward(params, src_img, tgt_img):
    """src_img, tgt_img: NCHW (or lower-rank, auto-unsqueezed). Returns NCHW field."""
    # while len(shape) < 4: unsqueeze(0)
    while src_img.ndim < 4:
        src_img = src_img[None]
        tgt_img = tgt_img[None]
    # net_input = torch.cat((src_img, tgt_img), 1).float()
    net_input = jnp.concatenate(
        (src_img.astype(jnp.float32), tgt_img.astype(jnp.float32)), axis=1)
    # pred_res.field(): 2-channel displacement field, stays NCHW (W in lanes).
    return _fused_conv_net(params, net_input)


# Pure-JAX reference for correctness check
def _reference_forward(params, src_img, tgt_img):
    net_input = jnp.concatenate(
        (src_img.astype(jnp.float32), tgt_img.astype(jnp.float32)), axis=1)

    def conv(x_nchw, w_hwio, b, leaky):
        Cout = w_hwio.shape[-1]
        w_oihw = jnp.transpose(w_hwio, (3, 2, 0, 1))
        y = jax.lax.conv_general_dilated(
            x_nchw, w_oihw, window_strides=(1, 1), padding="SAME",
            dimension_numbers=("NCHW", "OIHW", "NCHW"))
        y = y + b.reshape(1, Cout, 1, 1)
        if leaky:
            y = jnp.where(y > 0, y, 0.1 * y)
        return y

    h = conv(net_input, params["w1"], params["b1"], True)
    return conv(h, params["w2"], params["b2"], False)


if __name__ == "__main__":
    key = jax.random.PRNGKey(0)
    k_src, k_tgt, k_par = jax.random.split(key, 3)

    # Small shapes: batch=2, single-channel EM-style images, 16x16 spatial.
    N, C, H, W = 2, 1, 16, 16
    src_img = jax.random.normal(k_src, (N, C, H, W), jnp.float32)
    tgt_img = jax.random.normal(k_tgt, (N, C, H, W), jnp.float32)
    params = init_params(k_par, in_ch=2 * C)

    pred_field = aligner_forward(params, src_img, tgt_img)
    pred_field = jax.block_until_ready(pred_field)

    ref = _reference_forward(params, src_img, tgt_img)
    assert pred_field.shape == (N, FIELD_CH, H, W), pred_field.shape
    max_err = float(jnp.max(jnp.abs(pred_field - ref)))
    assert max_err < 1e-3, max_err

    print("KERNEL_OK")
</pallas_src>

<mosaic_0001>
module attributes {stable_mosaic.version = 11 : i64} {
  func.func @_fused_aligner_net_kernel(%arg0: i32, %arg1: i32, %arg2: memref<298xf32, #tpu.memory_space<smem>>, %arg3: memref<1x2x8x16xf32, #tpu.memory_space<vmem>>, %arg4: memref<1x2x8x16xf32, #tpu.memory_space<vmem>>, %arg5: memref<1x2x8x16xf32, #tpu.memory_space<vmem>>, %arg6: memref<1x2x8x16xf32, #tpu.memory_space<vmem>>, %arg7: memref<2x12x18xf32, #tpu.memory_space<vmem>>, %arg8: memref<8x10x18xf32, #tpu.memory_space<vmem>>) attributes {dimension_semantics = [#tpu.dimension_semantics<parallel>, #tpu.dimension_semantics<parallel>], iteration_bounds = array<i64: 2, 2>, scalar_prefetch = 0 : i64, scratch_operands = 2 : i64, tpu.core_type = #tpu.core_type<tc>, window_params = [{transform_indices = @transform_0, window_bounds = array<i64: 298>}, {transform_indices = @transform_1, window_bounds = array<i64: 1, 2, 8, 16>}, {transform_indices = @transform_2, window_bounds = array<i64: 1, 2, 8, 16>}, {transform_indices = @transform_3, window_bounds = array<i64: 1, 2, 8, 16>}, {transform_indices = @transform_4, window_bounds = array<i64: 1, 2, 8, 16>}]} {
    %cst = arith.constant 0.000000e+00 : f32
    %0 = vector.broadcast %cst : f32 to vector<2x12x18xf32>
    %c0 = arith.constant 0 : index
    %c0_0 = arith.constant 0 : index
    %c0_1 = arith.constant 0 : index
    %1 = vector.load %arg7[%c0, %c0_0, %c0_1] : memref<2x12x18xf32, #tpu.memory_space<vmem>>, vector<2x12x18xf32>
    tpu.vector_store %arg7[%c0, %c0_0, %c0_1], %0 {strides = array<i32>} : memref<2x12x18xf32, #tpu.memory_space<vmem>>, vector<2x12x18xf32>,
    %c0_2 = arith.constant 0 : index
    %c0_3 = arith.constant 0 : index
    %c0_4 = arith.constant 0 : index
    %c0_5 = arith.constant 0 : index
    %2 = vector.load %arg3[%c0_2, %c0_3, %c0_4, %c0_5] : memref<1x2x8x16xf32, #tpu.memory_space<vmem>>, vector<1x2x8x16xf32>
    %3 = vector.shape_cast %2 : vector<1x2x8x16xf32> to vector<2x8x16xf32>
    %c0_6 = arith.constant 0 : index
    %c2 = arith.constant 2 : index
    %c1 = arith.constant 1 : index
    %4 = vector.load %arg7[%c0_6, %c2, %c1] : memref<2x12x18xf32, #tpu.memory_space<vmem>>, vector<2x8x16xf32>
    tpu.vector_store %arg7[%c0_6, %c2, %c1], %3 {strides = array<i32>} : memref<2x12x18xf32, #tpu.memory_space<vmem>>, vector<2x8x16xf32>,
    %c0_i32 = arith.constant 0 : i32
    %5 = arith.cmpi sgt, %arg1, %c0_i32 : i32
    %6 = arith.extui %5 : i1 to i32
    %c0_i32_7 = arith.constant 0 : i32
    %7 = arith.cmpi ne, %6, %c0_i32_7 : i32
    scf.if %7 {
      %c0_348 = arith.constant 0 : index
      %c0_349 = arith.constant 0 : index
      %c6_350 = arith.constant 6 : index
      %c0_351 = arith.constant 0 : index
      %1461 = vector.load %arg4[%c0_348, %c0_349, %c6_350, %c0_351] : memref<1x2x8x16xf32, #tpu.memory_space<vmem>>, vector<1x2x2x16xf32>
      %1462 = vector.shape_cast %1461 : vector<1x2x2x16xf32> to vector<2x2x16xf32>
      %c0_352 = arith.constant 0 : index
      %c0_353 = arith.constant 0 : index
      %c1_354 = arith.constant 1 : index
      %1463 = vector.load %arg7[%c0_352, %c0_353, %c1_354] : memref<2x12x18xf32, #tpu.memory_space<vmem>>, vector<2x2x16xf32>
      tpu.vector_store %arg7[%c0_352, %c0_353, %c1_354], %1462 {strides = array<i32>} : memref<2x12x18xf32, #tpu.memory_space<vmem>>, vector<2x2x16xf32>,
    } else {
    }
    %c1_i32 = arith.constant 1 : i32
    %8 = arith.cmpi slt, %arg1, %c1_i32 : i32
    %9 = arith.extui %8 : i1 to i32
    %c0_i32_8 = arith.constant 0 : i32
    %10 = arith.cmpi ne, %9, %c0_i32_8 : i32
    scf.if %10 {
      %c0_348 = arith.constant 0 : index
      %c0_349 = arith.constant 0 : index
      %c0_350 = arith.constant 0 : index
      %c0_351 = arith.constant 0 : index
      %1461 = vector.load %arg5[%c0_348, %c0_349, %c0_350, %c0_351] : memref<1x2x8x16xf32, #tpu.memory_space<vmem>>, vector<1x2x2x16xf32>
      %1462 = vector.shape_cast %1461 : vector<1x2x2x16xf32> to vector<2x2x16xf32>
      %c0_352 = arith.constant 0 : index
      %c10_353 = arith.constant 10 : index
      %c1_354 = arith.constant 1 : index
      %1463 = vector.load %arg7[%c0_352, %c10_353, %c1_354] : memref<2x12x18xf32, #tpu.memory_space<vmem>>, vector<2x2x16xf32>
      tpu.vector_store %arg7[%c0_352, %c10_353, %c1_354], %1462 {strides = array<i32>} : memref<2x12x18xf32, #tpu.memory_space<vmem>>, vector<2x2x16xf32>,
    } else {
    }
    %cst_9 = arith.constant 0.000000e+00 : f32
    %11 = vector.broadcast %cst_9 : f32 to vector<10x16xf32>
    %cst_10 = arith.constant 0.000000e+00 : f32
    %12 = vector.broadcast %cst_10 : f32 to vector<10x16xf32>
    %cst_11 = arith.constant 0.000000e+00 : f32
    %13 = vector.broadcast %cst_11 : f32 to vector<10x16xf32>
    %cst_12 = arith.constant 0.000000e+00 : f32
    %14 = vector.broadcast %cst_12 : f32 to vector<10x16xf32>
    %cst_13 = arith.constant 0.000000e+00 : f32
    %15 = vector.broadcast %cst_13 : f32 to vector<10x16xf32>
    %cst_14 = arith.constant 0.000000e+00 : f32
    %16 = vector.broadcast %cst_14 : f32 to vector<10x16xf32>
    %cst_15 = arith.constant 0.000000e+00 : f32
    %17 = vector.broadcast %cst_15 : f32 to vector<10x16xf32>
    %cst_16 = arith.constant 0.000000e+00 : f32
    %18 = vector.broadcast %cst_16 : f32 to vector<10x16xf32>
    %c0_17 = arith.constant 0 : index
    %c0_18 = arith.constant 0 : index
    %c0_19 = arith.constant 0 : index
    %19 = vector.load %arg7[%c0_17, %c0_18, %c0_19] : memref<2x12x18xf32, #tpu.memory_space<vmem>>, vector<1x10x16xf32>
    %20 = vector.shape_cast %19 : vector<1x10x16xf32> to vector<10x16xf32>
    %c0_20 = arith.constant 0 : index
    %21 = memref.load %arg2[%c0_20] : memref<298xf32, #tpu.memory_space<smem>>
    %22 = vector.broadcast %21 : f32 to vector<10x16xf32>
    %23 = arith.mulf %22, %20 : vector<10x16xf32>
    %24 = arith.addf %11, %23 : vector<10x16xf32>
    %c1_21 = arith.constant 1 : index
    %25 = memref.load %arg2[%c1_21] : memref<298xf32, #tpu.memory_space<smem>>
    %26 = vector.broadcast %25 : f32 to vector<10x16xf32>
    %27 = arith.mulf %26, %20 : vector<10x16xf32>
    %28 = arith.addf %12, %27 : vector<10x16xf32>
    %c2_22 = arith.constant 2 : index
    %29 = memref.load %arg2[%c2_22] : memref<298xf32, #tpu.memory_space<smem>>
    %30 = vector.broadcast %29 : f32 to vector<10x16xf32>
    %31 = arith.mulf %30, %20 : vector<10x16xf32>
    %32 = arith.addf %13, %31 : vector<10x16xf32>
    %c3 = arith.constant 3 : index
    %33 = memref.load %arg2[%c3] : memref<298xf32, #tpu.memory_space<smem>>
    %34 = vector.broadcast %33 : f32 to vector<10x16xf32>
    %35 = arith.mulf %34, %20 : vector<10x16xf32>
    %36 = arith.addf %14, %35 : vector<10x16xf32>
    %c4 = arith.constant 4 : index
    %37 = memref.load %arg2[%c4] : memref<298xf32, #tpu.memory_space<smem>>
    %38 = vector.broadcast %37 : f32 to vector<10x16xf32>
    %39 = arith.mulf %38, %20 : vector<10x16xf32>
    %40 = arith.addf %15, %39 : vector<10x16xf32>
    %c5 = arith.constant 5 : index
    %41 = memref.load %arg2[%c5] : memref<298xf32, #tpu.memory_space<smem>>
    %42 = vector.broadcast %41 : f32 to vector<10x16xf32>
    %43 = arith.mulf %42, %20 : vector<10x16xf32>
    %44 = arith.addf %16, %43 : vector<10x16xf32>
    %c6 = arith.constant 6 : index
    %45 = memref.load %arg2[%c6] : memref<298xf32, #tpu.memory_space<smem>>
    %46 = vector.broadcast %45 : f32 to vector<10x16xf32>
    %47 = arith.mulf %46, %20 : vector<10x16xf32>
    %48 = arith.addf %17, %47 : vector<10x16xf32>
    %c7 = arith.constant 7 : index
    %49 = memref.load %arg2[%c7] : memref<298xf32, #tpu.memory_space<smem>>
    %50 = vector.broadcast %49 : f32 to vector<10x16xf32>
    %51 = arith.mulf %50, %20 : vector<10x16xf32>
    %52 = arith.addf %18, %51 : vector<10x16xf32>
    %c1_23 = arith.constant 1 : index
    %c0_24 = arith.constant 0 : index
    %c0_25 = arith.constant 0 : index
    %53 = vector.load %arg7[%c1_23, %c0_24, %c0_25] : memref<2x12x18xf32, #tpu.memory_space<vmem>>, vector<1x10x16xf32>
    %54 = vector.shape_cast %53 : vector<1x10x16xf32> to vector<10x16xf32>
    %c8 = arith.constant 8 : index
    %55 = memref.load %arg2[%c8] : memref<298xf32, #tpu.memory_space<smem>>
    %56 = vector.broadcast %55 : f32 to vector<10x16xf32>
    %57 = arith.mulf %56, %54 : vector<10x16xf32>
    %58 = arith.addf %24, %57 : vector<10x16xf32>
    %c9 = arith.constant 9 : index
    %59 = memref.load %arg2[%c9] : memref<298xf32, #tpu.memory_space<smem>>
    %60 = vector.broadcast %59 : f32 to vector<10x16xf32>
    %61 = arith.mulf %60, %54 : vector<10x16xf32>
    %62 = arith.addf %28, %61 : vector<10x16xf32>
    %c10 = arith.constant 10 : index
    %63 = memref.load %arg2[%c10] : memref<298xf32, #tpu.memory_space<smem>>
    %64 = vector.broadcast %63 : f32 to vector<10x16xf32>
    %65 = arith.mulf %64, %54 : vector<10x16xf32>
    %66 = arith.addf %32, %65 : vector<10x16xf32>
    %c11 = arith.constant 11 : index
    %67 = memref.load %arg2[%c11] : memref<298xf32, #tpu.memory_space<smem>>
    %68 = vector.broadcast %67 : f32 to vector<10x16xf32>
    %69 = arith.mulf %68, %54 : vector<10x16xf32>
    %70 = arith.addf %36, %69 : vector<10x16xf32>
    %c12 = arith.constant 12 : index
    %71 = memref.load %arg2[%c12] : memref<298xf32, #tpu.memory_space<smem>>
    %72 = vector.broadcast %71 : f32 to vector<10x16xf32>
    %73 = arith.mulf %72, %54 : vector<10x16xf32>
    %74 = arith.addf %40, %73 : vector<10x16xf32>
    %c13 = arith.constant 13 : index
    %75 = memref.load %arg2[%c13] : memref<298xf32, #tpu.memory_space<smem>>
    %76 = vector.broadcast %75 : f32 to vector<10x16xf32>
    %77 = arith.mulf %76, %54 : vector<10x16xf32>
    %78 = arith.addf %44, %77 : vector<10x16xf32>
    %c14 = arith.constant 14 : index
    %79 = memref.load %arg2[%c14] : memref<298xf32, #tpu.memory_space<smem>>
    %80 = vector.broadcast %79 : f32 to vector<10x16xf32>
    %81 = arith.mulf %80, %54 : vector<10x16xf32>
    %82 = arith.addf %48, %81 : vector<10x16xf32>
    %c15 = arith.constant 15 : index
    %83 = memref.load %arg2[%c15] : memref<298xf32, #tpu.memory_space<smem>>
    %84 = vector.broadcast %83 : f32 to vector<10x16xf32>
    %85 = arith.mulf %84, %54 : vector<10x16xf32>
    %86 = arith.addf %52, %85 : vector<10x16xf32>
    %c0_26 = arith.constant 0 : index
    %c0_27 = arith.constant 0 : index
    %c1_28 = arith.constant 1 : index
    %87 = vector.load %arg7[%c0_26, %c0_27, %c1_28] : memref<2x12x18xf32, #tpu.memory_space<vmem>>, vector<1x10x16xf32>
    %88 = vector.shape_cast %87 : vector<1x10x16xf32> to vector<10x16xf32>
    %c16 = arith.constant 16 : index
    %89 = memref.load %arg2[%c16] : memref<298xf32, #tpu.memory_space<smem>>
    %90 = vector.broadcast %89 : f32 to vector<10x16xf32>
    %91 = arith.mulf %90, %88 : vector<10x16xf32>
    %92 = arith.addf %58, %91 : vector<10x16xf32>
    %c17 = arith.constant 17 : index
    %93 = memref.load %arg2[%c17] : memref<298xf32, #tpu.memory_space<smem>>
    %94 = vector.broadcast %93 : f32 to vector<10x16xf32>
    %95 = arith.mulf %94, %88 : vector<10x16xf32>
    %96 = arith.addf %62, %95 : vector<10x16xf32>
    %c18 = arith.constant 18 : index
    %97 = memref.load %arg2[%c18] : memref<298xf32, #tpu.memory_space<smem>>
    %98 = vector.broadcast %97 : f32 to vector<10x16xf32>
    %99 = arith.mulf %98, %88 : vector<10x16xf32>
    %100 = arith.addf %66, %99 : vector<10x16xf32>
    %c19 = arith.constant 19 : index
    %101 = memref.load %arg2[%c19] : memref<298xf32, #tpu.memory_space<smem>>
    %102 = vector.broadcast %101 : f32 to vector<10x16xf32>
    %103 = arith.mulf %102, %88 : vector<10x16xf32>
    %104 = arith.addf %70, %103 : vector<10x16xf32>
    %c20 = arith.constant 20 : index
    %105 = memref.load %arg2[%c20] : memref<298xf32, #tpu.memory_space<smem>>
    %106 = vector.broadcast %105 : f32 to vector<10x16xf32>
    %107 = arith.mulf %106, %88 : vector<10x16xf32>
    %108 = arith.addf %74, %107 : vector<10x16xf32>
    %c21 = arith.constant 21 : index
    %109 = memref.load %arg2[%c21] : memref<298xf32, #tpu.memory_space<smem>>
    %110 = vector.broadcast %109 : f32 to vector<10x16xf32>
    %111 = arith.mulf %110, %88 : vector<10x16xf32>
    %112 = arith.addf %78, %111 : vector<10x16xf32>
    %c22 = arith.constant 22 : index
    %113 = memref.load %arg2[%c22] : memref<298xf32, #tpu.memory_space<smem>>
    %114 = vector.broadcast %113 : f32 to vector<10x16xf32>
    %115 = arith.mulf %114, %88 : vector<10x16xf32>
    %116 = arith.addf %82, %115 : vector<10x16xf32>
    %c23 = arith.constant 23 : index
    %117 = memref.load %arg2[%c23] : memref<298xf32, #tpu.memory_space<smem>>
    %118 = vector.broadcast %117 : f32 to vector<10x16xf32>
    %119 = arith.mulf %118, %88 : vector<10x16xf32>
    %120 = arith.addf %86, %119 : vector<10x16xf32>
    %c1_29 = arith.constant 1 : index
    %c0_30 = arith.constant 0 : index
    %c1_31 = arith.constant 1 : index
    %121 = vector.load %arg7[%c1_29, %c0_30, %c1_31] : memref<2x12x18xf32, #tpu.memory_space<vmem>>, vector<1x10x16xf32>
    %122 = vector.shape_cast %121 : vector<1x10x16xf32> to vector<10x16xf32>
    %c24 = arith.constant 24 : index
    %123 = memref.load %arg2[%c24] : memref<298xf32, #tpu.memory_space<smem>>
    %124 = vector.broadcast %123 : f32 to vector<10x16xf32>
    %125 = arith.mulf %124, %122 : vector<10x16xf32>
    %126 = arith.addf %92, %125 : vector<10x16xf32>
    %c25 = arith.constant 25 : index
    %127 = memref.load %arg2[%c25] : memref<298xf32, #tpu.memory_space<smem>>
    %128 = vector.broadcast %127 : f32 to vector<10x16xf32>
    %129 = arith.mulf %128, %122 : vector<10x16xf32>
    %130 = arith.addf %96, %129 : vector<10x16xf32>
    %c26 = arith.constant 26 : index
    %131 = memref.load %arg2[%c26] : memref<298xf32, #tpu.memory_space<smem>>
    %132 = vector.broadcast %131 : f32 to vector<10x16xf32>
    %133 = arith.mulf %132, %122 : vector<10x16xf32>
    %134 = arith.addf %100, %133 : vector<10x16xf32>
    %c27 = arith.constant 27 : index
    %135 = memref.load %arg2[%c27] : memref<298xf32, #tpu.memory_space<smem>>
    %136 = vector.broadcast %135 : f32 to vector<10x16xf32>
    %137 = arith.mulf %136, %122 : vector<10x16xf32>
    %138 = arith.addf %104, %137 : vector<10x16xf32>
    %c28 = arith.constant 28 : index
    %139 = memref.load %arg2[%c28] : memref<298xf32, #tpu.memory_space<smem>>
    %140 = vector.broadcast %139 : f32 to vector<10x16xf32>
    %141 = arith.mulf %140, %122 : vector<10x16xf32>
    %142 = arith.addf %108, %141 : vector<10x16xf32>
    %c29 = arith.constant 29 : index
    %143 = memref.load %arg2[%c29] : memref<298xf32, #tpu.memory_space<smem>>
    %144 = vector.broadcast %143 : f32 to vector<10x16xf32>
    %145 = arith.mulf %144, %122 : vector<10x16xf32>
    %146 = arith.addf %112, %145 : vector<10x16xf32>
    %c30 = arith.constant 30 : index
    %147 = memref.load %arg2[%c30] : memref<298xf32, #tpu.memory_space<smem>>
    %148 = vector.broadcast %147 : f32 to vector<10x16xf32>
    %149 = arith.mulf %148, %122 : vector<10x16xf32>
    %150 = arith.addf %116, %149 : vector<10x16xf32>
    %c31 = arith.constant 31 : index
    %151 = memref.load %arg2[%c31] : memref<298xf32, #tpu.memory_space<smem>>
    %152 = vector.broadcast %151 : f32 to vector<10x16xf32>
    %153 = arith.mulf %152, %122 : vector<10x16xf32>
    %154 = arith.addf %120, %153 : vector<10x16xf32>
    %c0_32 = arith.constant 0 : index
    %c0_33 = arith.constant 0 : index
    %c2_34 = arith.constant 2 : index
    %155 = vector.load %arg7[%c0_32, %c0_33, %c2_34] : memref<2x12x18xf32, #tpu.memory_space<vmem>>, vector<1x10x16xf32>
    %156 = vector.shape_cast %155 : vector<1x10x16xf32> to vector<10x16xf32>
    %c32 = arith.constant 32 : index
    %157 = memref.load %arg2[%c32] : memref<298xf32, #tpu.memory_space<smem>>
    %158 = vector.broadcast %157 : f32 to vector<10x16xf32>
    %159 = arith.mulf %158, %156 : vector<10x16xf32>
    %160 = arith.addf %126, %159 : vector<10x16xf32>
    %c33 = arith.constant 33 : index
    %161 = memref.load %arg2[%c33] : memref<298xf32, #tpu.memory_space<smem>>
    %162 = vector.broadcast %161 : f32 to vector<10x16xf32>
    %163 = arith.mulf %162, %156 : vector<10x16xf32>
    %164 = arith.addf %130, %163 : vector<10x16xf32>
    %c34 = arith.constant 34 : index
    %165 = memref.load %arg2[%c34] : memref<298xf32, #tpu.memory_space<smem>>
    %166 = vector.broadcast %165 : f32 to vector<10x16xf32>
    %167 = arith.mulf %166, %156 : vector<10x16xf32>
    %168 = arith.addf %134, %167 : vector<10x16xf32>
    %c35 = arith.constant 35 : index
    %169 = memref.load %arg2[%c35] : memref<298xf32, #tpu.memory_space<smem>>
    %170 = vector.broadcast %169 : f32 to vector<10x16xf32>
    %171 = arith.mulf %170, %156 : vector<10x16xf32>
    %172 = arith.addf %138, %171 : vector<10x16xf32>
    %c36 = arith.constant 36 : index
    %173 = memref.load %arg2[%c36] : memref<298xf32, #tpu.memory_space<smem>>
    %174 = vector.broadcast %173 : f32 to vector<10x16xf32>
    %175 = arith.mulf %174, %156 : vector<10x16xf32>
    %176 = arith.addf %142, %175 : vector<10x16xf32>
    %c37 = arith.constant 37 : index
    %177 = memref.load %arg2[%c37] : memref<298xf32, #tpu.memory_space<smem>>
    %178 = vector.broadcast %177 : f32 to vector<10x16xf32>
    %179 = arith.mulf %178, %156 : vector<10x16xf32>
    %180 = arith.addf %146, %179 : vector<10x16xf32>
    %c38 = arith.constant 38 : index
    %181 = memref.load %arg2[%c38] : memref<298xf32, #tpu.memory_space<smem>>
    %182 = vector.broadcast %181 : f32 to vector<10x16xf32>
    %183 = arith.mulf %182, %156 : vector<10x16xf32>
    %184 = arith.addf %150, %183 : vector<10x16xf32>
    %c39 = arith.constant 39 : index
    %185 = memref.load %arg2[%c39] : memref<298xf32, #tpu.memory_space<smem>>
    %186 = vector.broadcast %185 : f32 to vector<10x16xf32>
    %187 = arith.mulf %186, %156 : vector<10x16xf32>
    %188 = arith.addf %154, %187 : vector<10x16xf32>
    %c1_35 = arith.constant 1 : index
    %c0_36 = arith.constant 0 : index
    %c2_37 = arith.constant 2 : index
    %189 = vector.load %arg7[%c1_35, %c0_36, %c2_37] : memref<2x12x18xf32, #tpu.memory_space<vmem>>, vector<1x10x16xf32>
    %190 = vector.shape_cast %189 : vector<1x10x16xf32> to vector<10x16xf32>
    %c40 = arith.constant 40 : index
    %191 = memref.load %arg2[%c40] : memref<298xf32, #tpu.memory_space<smem>>
    %192 = vector.broadcast %191 : f32 to vector<10x16xf32>
    %193 = arith.mulf %192, %190 : vector<10x16xf32>
    %194 = arith.addf %160, %193 : vector<10x16xf32>
    %c41 = arith.constant 41 : index
    %195 = memref.load %arg2[%c41] : memref<298xf32, #tpu.memory_space<smem>>
    %196 = vector.broadcast %195 : f32 to vector<10x16xf32>
    %197 = arith.mulf %196, %190 : vector<10x16xf32>
    %198 = arith.addf %164, %197 : vector<10x16xf32>
    %c42 = arith.constant 42 : index
    %199 = memref.load %arg2[%c42] : memref<298xf32, #tpu.memory_space<smem>>
    %200 = vector.broadcast %199 : f32 to vector<10x16xf32>
    %201 = arith.mulf %200, %190 : vector<10x16xf32>
    %202 = arith.addf %168, %201 : vector<10x16xf32>
    %c43 = arith.constant 43 : index
    %203 = memref.load %arg2[%c43] : memref<298xf32, #tpu.memory_space<smem>>
    %204 = vector.broadcast %203 : f32 to vector<10x16xf32>
    %205 = arith.mulf %204, %190 : vector<10x16xf32>
    %206 = arith.addf %172, %205 : vector<10x16xf32>
    %c44 = arith.constant 44 : index
    %207 = memref.load %arg2[%c44] : memref<298xf32, #tpu.memory_space<smem>>
    %208 = vector.broadcast %207 : f32 to vector<10x16xf32>
    %209 = arith.mulf %208, %190 : vector<10x16xf32>
    %210 = arith.addf %176, %209 : vector<10x16xf32>
    %c45 = arith.constant 45 : index
    %211 = memref.load %arg2[%c45] : memref<298xf32, #tpu.memory_space<smem>>
    %212 = vector.broadcast %211 : f32 to vector<10x16xf32>
    %213 = arith.mulf %212, %190 : vector<10x16xf32>
    %214 = arith.addf %180, %213 : vector<10x16xf32>
    %c46 = arith.constant 46 : index
    %215 = memref.load %arg2[%c46] : memref<298xf32, #tpu.memory_space<smem>>
    %216 = vector.broadcast %215 : f32 to vector<10x16xf32>
    %217 = arith.mulf %216, %190 : vector<10x16xf32>
    %218 = arith.addf %184, %217 : vector<10x16xf32>
    %c47 = arith.constant 47 : index
    %219 = memref.load %arg2[%c47] : memref<298xf32, #tpu.memory_space<smem>>
    %220 = vector.broadcast %219 : f32 to vector<10x16xf32>
    %221 = arith.mulf %220, %190 : vector<10x16xf32>
    %222 = arith.addf %188, %221 : vector<10x16xf32>
    %c0_38 = arith.constant 0 : index
    %c1_39 = arith.constant 1 : index
    %c0_40 = arith.constant 0 : index
    %223 = vector.load %arg7[%c0_38, %c1_39, %c0_40] : memref<2x12x18xf32, #tpu.memory_space<vmem>>, vector<1x10x16xf32>
    %224 = vector.shape_cast %223 : vector<1x10x16xf32> to vector<10x16xf32>
    %c48 = arith.constant 48 : index
    %225 = memref.load %arg2[%c48] : memref<298xf32, #tpu.memory_space<smem>>
    %226 = vector.broadcast %225 : f32 to vector<10x16xf32>
    %227 = arith.mulf %226, %224 : vector<10x16xf32>
    %228 = arith.addf %194, %227 : vector<10x16xf32>
    %c49 = arith.constant 49 : index
    %229 = memref.load %arg2[%c49] : memref<298xf32, #tpu.memory_space<smem>>
    %230 = vector.broadcast %229 : f32 to vector<10x16xf32>
    %231 = arith.mulf %230, %224 : vector<10x16xf32>
    %232 = arith.addf %198, %231 : vector<10x16xf32>
    %c50 = arith.constant 50 : index
    %233 = memref.load %arg2[%c50] : memref<298xf32, #tpu.memory_space<smem>>
    %234 = vector.broadcast %233 : f32 to vector<10x16xf32>
    %235 = arith.mulf %234, %224 : vector<10x16xf32>
    %236 = arith.addf %202, %235 : vector<10x16xf32>
    %c51 = arith.constant 51 : index
    %237 = memref.load %arg2[%c51] : memref<298xf32, #tpu.memory_space<smem>>
    %238 = vector.broadcast %237 : f32 to vector<10x16xf32>
    %239 = arith.mulf %238, %224 : vector<10x16xf32>
    %240 = arith.addf %206, %239 : vector<10x16xf32>
    %c52 = arith.constant 52 : index
    %241 = memref.load %arg2[%c52] : memref<298xf32, #tpu.memory_space<smem>>
    %242 = vector.broadcast %241 : f32 to vector<10x16xf32>
    %243 = arith.mulf %242, %224 : vector<10x16xf32>
    %244 = arith.addf %210, %243 : vector<10x16xf32>
    %c53 = arith.constant 53 : index
    %245 = memref.load %arg2[%c53] : memref<298xf32, #tpu.memory_space<smem>>
    %246 = vector.broadcast %245 : f32 to vector<10x16xf32>
    %247 = arith.mulf %246, %224 : vector<10x16xf32>
    %248 = arith.addf %214, %247 : vector<10x16xf32>
    %c54 = arith.constant 54 : index
    %249 = memref.load %arg2[%c54] : memref<298xf32, #tpu.memory_space<smem>>
    %250 = vector.broadcast %249 : f32 to vector<10x16xf32>
    %251 = arith.mulf %250, %224 : vector<10x16xf32>
    %252 = arith.addf %218, %251 : vector<10x16xf32>
    %c55 = arith.constant 55 : index
    %253 = memref.load %arg2[%c55] : memref<298xf32, #tpu.memory_space<smem>>
    %254 = vector.broadcast %253 : f32 to vector<10x16xf32>
    %255 = arith.mulf %254, %224 : vector<10x16xf32>
    %256 = arith.addf %222, %255 : vector<10x16xf32>
    %c1_41 = arith.constant 1 : index
    %c1_42 = arith.constant 1 : index
    %c0_43 = arith.constant 0 : index
    %257 = vector.load %arg7[%c1_41, %c1_42, %c0_43] : memref<2x12x18xf32, #tpu.memory_space<vmem>>, vector<1x10x16xf32>
    %258 = vector.shape_cast %257 : vector<1x10x16xf32> to vector<10x16xf32>
    %c56 = arith.constant 56 : index
    %259 = memref.load %arg2[%c56] : memref<298xf32, #tpu.memory_space<smem>>
    %260 = vector.broadcast %259 : f32 to vector<10x16xf32>
    %261 = arith.mulf %260, %258 : vector<10x16xf32>
    %262 = arith.addf %228, %261 : vector<10x16xf32>
    %c57 = arith.constant 57 : index
    %263 = memref.load %arg2[%c57] : memref<298xf32, #tpu.memory_space<smem>>
    %264 = vector.broadcast %263 : f32 to vector<10x16xf32>
    %265 = arith.mulf %264, %258 : vector<10x16xf32>
    %266 = arith.addf %232, %265 : vector<10x16xf32>
    %c58 = arith.constant 58 : index
    %267 = memref.load %arg2[%c58] : memref<298xf32, #tpu.memory_space<smem>>
    %268 = vector.broadcast %267 : f32 to vector<10x16xf32>
    %269 = arith.mulf %268, %258 : vector<10x16xf32>
    %270 = arith.addf %236, %269 : vector<10x16xf32>
    %c59 = arith.constant 59 : index
    %271 = memref.load %arg2[%c59] : memref<298xf32, #tpu.memory_space<smem>>
    %272 = vector.broadcast %271 : f32 to vector<10x16xf32>
    %273 = arith.mulf %272, %258 : vector<10x16xf32>
    %274 = arith.addf %240, %273 : vector<10x16xf32>
    %c60 = arith.constant 60 : index
    %275 = memref.load %arg2[%c60] : memref<298xf32, #tpu.memory_space<smem>>
    %276 = vector.broadcast %275 : f32 to vector<10x16xf32>
    %277 = arith.mulf %276, %258 : vector<10x16xf32>
    %278 = arith.addf %244, %277 : vector<10x16xf32>
    %c61 = arith.constant 61 : index
    %279 = memref.load %arg2[%c61] : memref<298xf32, #tpu.memory_space<smem>>
    %280 = vector.broadcast %279 : f32 to vector<10x16xf32>
    %281 = arith.mulf %280, %258 : vector<10x16xf32>
    %282 = arith.addf %248, %281 : vector<10x16xf32>
    %c62 = arith.constant 62 : index
    %283 = memref.load %arg2[%c62] : memref<298xf32, #tpu.memory_space<smem>>
    %284 = vector.broadcast %283 : f32 to vector<10x16xf32>
    %285 = arith.mulf %284, %258 : vector<10x16xf32>
    %286 = arith.addf %252, %285 : vector<10x16xf32>
    %c63 = arith.constant 63 : index
    %287 = memref.load %arg2[%c63] : memref<298xf32, #tpu.memory_space<smem>>
    %288 = vector.broadcast %287 : f32 to vector<10x16xf32>
    %289 = arith.mulf %288, %258 : vector<10x16xf32>
    %290 = arith.addf %256, %289 : vector<10x16xf32>
    %c0_44 = arith.constant 0 : index
    %c1_45 = arith.constant 1 : index
    %c1_46 = arith.constant 1 : index
    %291 = vector.load %arg7[%c0_44, %c1_45, %c1_46] : memref<2x12x18xf32, #tpu.memory_space<vmem>>, vector<1x10x16xf32>
    %292 = vector.shape_cast %291 : vector<1x10x16xf32> to vector<10x16xf32>
    %c64 = arith.constant 64 : index
    %293 = memref.load %arg2[%c64] : memref<298xf32, #tpu.memory_space<smem>>
    %294 = vector.broadcast %293 : f32 to vector<10x16xf32>
    %295 = arith.mulf %294, %292 : vector<10x16xf32>
    %296 = arith.addf %262, %295 : vector<10x16xf32>
    %c65 = arith.constant 65 : index
    %297 = memref.load %arg2[%c65] : memref<298xf32, #tpu.memory_space<smem>>
    %298 = vector.broadcast %297 : f32 to vector<10x16xf32>
    %299 = arith.mulf %298, %292 : vector<10x16xf32>
    %300 = arith.addf %266, %299 : vector<10x16xf32>
    %c66 = arith.constant 66 : index
    %301 = memref.load %arg2[%c66] : memref<298xf32, #tpu.memory_space<smem>>
    %302 = vector.broadcast %301 : f32 to vector<10x16xf32>
    %303 = arith.mulf %302, %292 : vector<10x16xf32>
    %304 = arith.addf %270, %303 : vector<10x16xf32>
    %c67 = arith.constant 67 : index
    %305 = memref.load %arg2[%c67] : memref<298xf32, #tpu.memory_space<smem>>
    %306 = vector.broadcast %305 : f32 to vector<10x16xf32>
    %307 = arith.mulf %306, %292 : vector<10x16xf32>
    %308 = arith.addf %274, %307 : vector<10x16xf32>
    %c68 = arith.constant 68 : index
    %309 = memref.load %arg2[%c68] : memref<298xf32, #tpu.memory_space<smem>>
    %310 = vector.broadcast %309 : f32 to vector<10x16xf32>
    %311 = arith.mulf %310, %292 : vector<10x16xf32>
    %312 = arith.addf %278, %311 : vector<10x16xf32>
    %c69 = arith.constant 69 : index
    %313 = memref.load %arg2[%c69] : memref<298xf32, #tpu.memory_space<smem>>
    %314 = vector.broadcast %313 : f32 to vector<10x16xf32>
    %315 = arith.mulf %314, %292 : vector<10x16xf32>
    %316 = arith.addf %282, %315 : vector<10x16xf32>
    %c70 = arith.constant 70 : index
    %317 = memref.load %arg2[%c70] : memref<298xf32, #tpu.memory_space<smem>>
    %318 = vector.broadcast %317 : f32 to vector<10x16xf32>
    %319 = arith.mulf %318, %292 : vector<10x16xf32>
    %320 = arith.addf %286, %319 : vector<10x16xf32>
    %c71 = arith.constant 71 : index
    %321 = memref.load %arg2[%c71] : memref<298xf32, #tpu.memory_space<smem>>
    %322 = vector.broadcast %321 : f32 to vector<10x16xf32>
    %323 = arith.mulf %322, %292 : vector<10x16xf32>
    %324 = arith.addf %290, %323 : vector<10x16xf32>
    %c1_47 = arith.constant 1 : index
    %c1_48 = arith.constant 1 : index
    %c1_49 = arith.constant 1 : index
    %325 = vector.load %arg7[%c1_47, %c1_48, %c1_49] : memref<2x12x18xf32, #tpu.memory_space<vmem>>, vector<1x10x16xf32>
    %326 = vector.shape_cast %325 : vector<1x10x16xf32> to vector<10x16xf32>
    %c72 = arith.constant 72 : index
    %327 = memref.load %arg2[%c72] : memref<298xf32, #tpu.memory_space<smem>>
    %328 = vector.broadcast %327 : f32 to vector<10x16xf32>
    %329 = arith.mulf %328, %326 : vector<10x16xf32>
    %330 = arith.addf %296, %329 : vector<10x16xf32>
    %c73 = arith.constant 73 : index
    %331 = memref.load %arg2[%c73] : memref<298xf32, #tpu.memory_space<smem>>
    %332 = vector.broadcast %331 : f32 to vector<10x16xf32>
    %333 = arith.mulf %332, %326 : vector<10x16xf32>
    %334 = arith.addf %300, %333 : vector<10x16xf32>
    %c74 = arith.constant 74 : index
    %335 = memref.load %arg2[%c74] : memref<298xf32, #tpu.memory_space<smem>>
    %336 = vector.broadcast %335 : f32 to vector<10x16xf32>
    %337 = arith.mulf %336, %326 : vector<10x16xf32>
    %338 = arith.addf %304, %337 : vector<10x16xf32>
    %c75 = arith.constant 75 : index
    %339 = memref.load %arg2[%c75] : memref<298xf32, #tpu.memory_space<smem>>
    %340 = vector.broadcast %339 : f32 to vector<10x16xf32>
    %341 = arith.mulf %340, %326 : vector<10x16xf32>
    %342 = arith.addf %308, %341 : vector<10x16xf32>
    %c76 = arith.constant 76 : index
    %343 = memref.load %arg2[%c76] : memref<298xf32, #tpu.memory_space<smem>>
    %344 = vector.broadcast %343 : f32 to vector<10x16xf32>
    %345 = arith.mulf %344, %326 : vector<10x16xf32>
    %346 = arith.addf %312, %345 : vector<10x16xf32>
    %c77 = arith.constant 77 : index
    %347 = memref.load %arg2[%c77] : memref<298xf32, #tpu.memory_space<smem>>
    %348 = vector.broadcast %347 : f32 to vector<10x16xf32>
    %349 = arith.mulf %348, %326 : vector<10x16xf32>
    %350 = arith.addf %316, %349 : vector<10x16xf32>
    %c78 = arith.constant 78 : index
    %351 = memref.load %arg2[%c78] : memref<298xf32, #tpu.memory_space<smem>>
    %352 = vector.broadcast %351 : f32 to vector<10x16xf32>
    %353 = arith.mulf %352, %326 : vector<10x16xf32>
    %354 = arith.addf %320, %353 : vector<10x16xf32>
    %c79 = arith.constant 79 : index
    %355 = memref.load %arg2[%c79] : memref<298xf32, #tpu.memory_space<smem>>
    %356 = vector.broadcast %355 : f32 to vector<10x16xf32>
    %357 = arith.mulf %356, %326 : vector<10x16xf32>
    %358 = arith.addf %324, %357 : vector<10x16xf32>
    %c0_50 = arith.constant 0 : index
    %c1_51 = arith.constant 1 : index
    %c2_52 = arith.constant 2 : index
    %359 = vector.load %arg7[%c0_50, %c1_51, %c2_52] : memref<2x12x18xf32, #tpu.memory_space<vmem>>, vector<1x10x16xf32>
    %360 = vector.shape_cast %359 : vector<1x10x16xf32> to vector<10x16xf32>
    %c80 = arith.constant 80 : index
    %361 = memref.load %arg2[%c80] : memref<298xf32, #tpu.memory_space<smem>>
    %362 = vector.broadcast %361 : f32 to vector<10x16xf32>
    %363 = arith.mulf %362, %360 : vector<10x16xf32>
    %364 = arith.addf %330, %363 : vector<10x16xf32>
    %c81 = arith.constant 81 : index
    %365 = memref.load %arg2[%c81] : memref<298xf32, #tpu.memory_space<smem>>
    %366 = vector.broadcast %365 : f32 to vector<10x16xf32>
    %367 = arith.mulf %366, %360 : vector<10x16xf32>
    %368 = arith.addf %334, %367 : vector<10x16xf32>
    %c82 = arith.constant 82 : index
    %369 = memref.load %arg2[%c82] : memref<298xf32, #tpu.memory_space<smem>>
    %370 = vector.broadcast %369 : f32 to vector<10x16xf32>
    %371 = arith.mulf %370, %360 : vector<10x16xf32>
    %372 = arith.addf %338, %371 : vector<10x16xf32>
    %c83 = arith.constant 83 : index
    %373 = memref.load %arg2[%c83] : memref<298xf32, #tpu.memory_space<smem>>
    %374 = vector.broadcast %373 : f32 to vector<10x16xf32>
    %375 = arith.mulf %374, %360 : vector<10x16xf32>
    %376 = arith.addf %342, %375 : vector<10x16xf32>
    %c84 = arith.constant 84 : index
    %377 = memref.load %arg2[%c84] : memref<298xf32, #tpu.memory_space<smem>>
    %378 = vector.broadcast %377 : f32 to vector<10x16xf32>
    %379 = arith.mulf %378, %360 : vector<10x16xf32>
    %380 = arith.addf %346, %379 : vector<10x16xf32>
    %c85 = arith.constant 85 : index
    %381 = memref.load %arg2[%c85] : memref<298xf32, #tpu.memory_space<smem>>
    %382 = vector.broadcast %381 : f32 to vector<10x16xf32>
    %383 = arith.mulf %382, %360 : vector<10x16xf32>
    %384 = arith.addf %350, %383 : vector<10x16xf32>
    %c86 = arith.constant 86 : index
    %385 = memref.load %arg2[%c86] : memref<298xf32, #tpu.memory_space<smem>>
    %386 = vector.broadcast %385 : f32 to vector<10x16xf32>
    %387 = arith.mulf %386, %360 : vector<10x16xf32>
    %388 = arith.addf %354, %387 : vector<10x16xf32>
    %c87 = arith.constant 87 : index
    %389 = memref.load %arg2[%c87] : memref<298xf32, #tpu.memory_space<smem>>
    %390 = vector.broadcast %389 : f32 to vector<10x16xf32>
    %391 = arith.mulf %390, %360 : vector<10x16xf32>
    %392 = arith.addf %358, %391 : vector<10x16xf32>
    %c1_53 = arith.constant 1 : index
    %c1_54 = arith.constant 1 : index
    %c2_55 = arith.constant 2 : index
    %393 = vector.load %arg7[%c1_53, %c1_54, %c2_55] : memref<2x12x18xf32, #tpu.memory_space<vmem>>, vector<1x10x16xf32>
    %394 = vector.shape_cast %393 : vector<1x10x16xf32> to vector<10x16xf32>
    %c88 = arith.constant 88 : index
    %395 = memref.load %arg2[%c88] : memref<298xf32, #tpu.memory_space<smem>>
    %396 = vector.broadcast %395 : f32 to vector<10x16xf32>
    %397 = arith.mulf %396, %394 : vector<10x16xf32>
    %398 = arith.addf %364, %397 : vector<10x16xf32>
    %c89 = arith.constant 89 : index
    %399 = memref.load %arg2[%c89] : memref<298xf32, #tpu.memory_space<smem>>
    %400 = vector.broadcast %399 : f32 to vector<10x16xf32>
    %401 = arith.mulf %400, %394 : vector<10x16xf32>
    %402 = arith.addf %368, %401 : vector<10x16xf32>
    %c90 = arith.constant 90 : index
    %403 = memref.load %arg2[%c90] : memref<298xf32, #tpu.memory_space<smem>>
    %404 = vector.broadcast %403 : f32 to vector<10x16xf32>
    %405 = arith.mulf %404, %394 : vector<10x16xf32>
    %406 = arith.addf %372, %405 : vector<10x16xf32>
    %c91 = arith.constant 91 : index
    %407 = memref.load %arg2[%c91] : memref<298xf32, #tpu.memory_space<smem>>
    %408 = vector.broadcast %407 : f32 to vector<10x16xf32>
    %409 = arith.mulf %408, %394 : vector<10x16xf32>
    %410 = arith.addf %376, %409 : vector<10x16xf32>
    %c92 = arith.constant 92 : index
    %411 = memref.load %arg2[%c92] : memref<298xf32, #tpu.memory_space<smem>>
    %412 = vector.broadcast %411 : f32 to vector<10x16xf32>
    %413 = arith.mulf %412, %394 : vector<10x16xf32>
    %414 = arith.addf %380, %413 : vector<10x16xf32>
    %c93 = arith.constant 93 : index
    %415 = memref.load %arg2[%c93] : memref<298xf32, #tpu.memory_space<smem>>
    %416 = vector.broadcast %415 : f32 to vector<10x16xf32>
    %417 = arith.mulf %416, %394 : vector<10x16xf32>
    %418 = arith.addf %384, %417 : vector<10x16xf32>
    %c94 = arith.constant 94 : index
    %419 = memref.load %arg2[%c94] : memref<298xf32, #tpu.memory_space<smem>>
    %420 = vector.broadcast %419 : f32 to vector<10x16xf32>
    %421 = arith.mulf %420, %394 : vector<10x16xf32>
    %422 = arith.addf %388, %421 : vector<10x16xf32>
    %c95 = arith.constant 95 : index
    %423 = memref.load %arg2[%c95] : memref<298xf32, #tpu.memory_space<smem>>
    %424 = vector.broadcast %423 : f32 to vector<10x16xf32>
    %425 = arith.mulf %424, %394 : vector<10x16xf32>
    %426 = arith.addf %392, %425 : vector<10x16xf32>
    %c0_56 = arith.constant 0 : index
    %c2_57 = arith.constant 2 : index
    %c0_58 = arith.constant 0 : index
    %427 = vector.load %arg7[%c0_56, %c2_57, %c0_58] : memref<2x12x18xf32, #tpu.memory_space<vmem>>, vector<1x10x16xf32>
    %428 = vector.shape_cast %427 : vector<1x10x16xf32> to vector<10x16xf32>
    %c96 = arith.constant 96 : index
    %429 = memref.load %arg2[%c96] : memref<298xf32, #tpu.memory_space<smem>>
    %430 = vector.broadcast %429 : f32 to vector<10x16xf32>
    %431 = arith.mulf %430, %428 : vector<10x16xf32>
    %432 = arith.addf %398, %431 : vector<10x16xf32>
    %c97 = arith.constant 97 : index
    %433 = memref.load %arg2[%c97] : memref<298xf32, #tpu.memory_space<smem>>
    %434 = vector.broadcast %433 : f32 to vector<10x16xf32>
    %435 = arith.mulf %434, %428 : vector<10x16xf32>
    %436 = arith.addf %402, %435 : vector<10x16xf32>
    %c98 = arith.constant 98 : index
    %437 = memref.load %arg2[%c98] : memref<298xf32, #tpu.memory_space<smem>>
    %438 = vector.broadcast %437 : f32 to vector<10x16xf32>
    %439 = arith.mulf %438, %428 : vector<10x16xf32>
    %440 = arith.addf %406, %439 : vector<10x16xf32>
    %c99 = arith.constant 99 : index
    %441 = memref.load %arg2[%c99] : memref<298xf32, #tpu.memory_space<smem>>
    %442 = vector.broadcast %441 : f32 to vector<10x16xf32>
    %443 = arith.mulf %442, %428 : vector<10x16xf32>
    %444 = arith.addf %410, %443 : vector<10x16xf32>
    %c100 = arith.constant 100 : index
    %445 = memref.load %arg2[%c100] : memref<298xf32, #tpu.memory_space<smem>>
    %446 = vector.broadcast %445 : f32 to vector<10x16xf32>
    %447 = arith.mulf %446, %428 : vector<10x16xf32>
    %448 = arith.addf %414, %447 : vector<10x16xf32>
    %c101 = arith.constant 101 : index
    %449 = memref.load %arg2[%c101] : memref<298xf32, #tpu.memory_space<smem>>
    %450 = vector.broadcast %449 : f32 to vector<10x16xf32>
    %451 = arith.mulf %450, %428 : vector<10x16xf32>
    %452 = arith.addf %418, %451 : vector<10x16xf32>
    %c102 = arith.constant 102 : index
    %453 = memref.load %arg2[%c102] : memref<298xf32, #tpu.memory_space<smem>>
    %454 = vector.broadcast %453 : f32 to vector<10x16xf32>
    %455 = arith.mulf %454, %428 : vector<10x16xf32>
    %456 = arith.addf %422, %455 : vector<10x16xf32>
    %c103 = arith.constant 103 : index
    %457 = memref.load %arg2[%c103] : memref<298xf32, #tpu.memory_space<smem>>
    %458 = vector.broadcast %457 : f32 to vector<10x16xf32>
    %459 = arith.mulf %458, %428 : vector<10x16xf32>
    %460 = arith.addf %426, %459 : vector<10x16xf32>
    %c1_59 = arith.constant 1 : index
    %c2_60 = arith.constant 2 : index
    %c0_61 = arith.constant 0 : index
    %461 = vector.load %arg7[%c1_59, %c2_60, %c0_61] : memref<2x12x18xf32, #tpu.memory_space<vmem>>, vector<1x10x16xf32>
    %462 = vector.shape_cast %461 : vector<1x10x16xf32> to vector<10x16xf32>
    %c104 = arith.constant 104 : index
    %463 = memref.load %arg2[%c104] : memref<298xf32, #tpu.memory_space<smem>>
    %464 = vector.broadcast %463 : f32 to vector<10x16xf32>
    %465 = arith.mulf %464, %462 : vector<10x16xf32>
    %466 = arith.addf %432, %465 : vector<10x16xf32>
    %c105 = arith.constant 105 : index
    %467 = memref.load %arg2[%c105] : memref<298xf32, #tpu.memory_space<smem>>
    %468 = vector.broadcast %467 : f32 to vector<10x16xf32>
    %469 = arith.mulf %468, %462 : vector<10x16xf32>
    %470 = arith.addf %436, %469 : vector<10x16xf32>
    %c106 = arith.constant 106 : index
    %471 = memref.load %arg2[%c106] : memref<298xf32, #tpu.memory_space<smem>>
    %472 = vector.broadcast %471 : f32 to vector<10x16xf32>
    %473 = arith.mulf %472, %462 : vector<10x16xf32>
    %474 = arith.addf %440, %473 : vector<10x16xf32>
    %c107 = arith.constant 107 : index
    %475 = memref.load %arg2[%c107] : memref<298xf32, #tpu.memory_space<smem>>
    %476 = vector.broadcast %475 : f32 to vector<10x16xf32>
    %477 = arith.mulf %476, %462 : vector<10x16xf32>
    %478 = arith.addf %444, %477 : vector<10x16xf32>
    %c108 = arith.constant 108 : index
    %479 = memref.load %arg2[%c108] : memref<298xf32, #tpu.memory_space<smem>>
    %480 = vector.broadcast %479 : f32 to vector<10x16xf32>
    %481 = arith.mulf %480, %462 : vector<10x16xf32>
    %482 = arith.addf %448, %481 : vector<10x16xf32>
    %c109 = arith.constant 109 : index
    %483 = memref.load %arg2[%c109] : memref<298xf32, #tpu.memory_space<smem>>
    %484 = vector.broadcast %483 : f32 to vector<10x16xf32>
    %485 = arith.mulf %484, %462 : vector<10x16xf32>
    %486 = arith.addf %452, %485 : vector<10x16xf32>
    %c110 = arith.constant 110 : index
    %487 = memref.load %arg2[%c110] : memref<298xf32, #tpu.memory_space<smem>>
    %488 = vector.broadcast %487 : f32 to vector<10x16xf32>
    %489 = arith.mulf %488, %462 : vector<10x16xf32>
    %490 = arith.addf %456, %489 : vector<10x16xf32>
    %c111 = arith.constant 111 : index
    %491 = memref.load %arg2[%c111] : memref<298xf32, #tpu.memory_space<smem>>
    %492 = vector.broadcast %491 : f32 to vector<10x16xf32>
    %493 = arith.mulf %492, %462 : vector<10x16xf32>
    %494 = arith.addf %460, %493 : vector<10x16xf32>
    %c0_62 = arith.constant 0 : index
    %c2_63 = arith.constant 2 : index
    %c1_64 = arith.constant 1 : index
    %495 = vector.load %arg7[%c0_62, %c2_63, %c1_64] : memref<2x12x18xf32, #tpu.memory_space<vmem>>, vector<1x10x16xf32>
    %496 = vector.shape_cast %495 : vector<1x10x16xf32> to vector<10x16xf32>
    %c112 = arith.constant 112 : index
    %497 = memref.load %arg2[%c112] : memref<298xf32, #tpu.memory_space<smem>>
    %498 = vector.broadcast %497 : f32 to vector<10x16xf32>
    %499 = arith.mulf %498, %496 : vector<10x16xf32>
    %500 = arith.addf %466, %499 : vector<10x16xf32>
    %c113 = arith.constant 113 : index
    %501 = memref.load %arg2[%c113] : memref<298xf32, #tpu.memory_space<smem>>
    %502 = vector.broadcast %501 : f32 to vector<10x16xf32>
    %503 = arith.mulf %502, %496 : vector<10x16xf32>
    %504 = arith.addf %470, %503 : vector<10x16xf32>
    %c114 = arith.constant 114 : index
    %505 = memref.load %arg2[%c114] : memref<298xf32, #tpu.memory_space<smem>>
    %506 = vector.broadcast %505 : f32 to vector<10x16xf32>
    %507 = arith.mulf %506, %496 : vector<10x16xf32>
    %508 = arith.addf %474, %507 : vector<10x16xf32>
    %c115 = arith.constant 115 : index
    %509 = memref.load %arg2[%c115] : memref<298xf32, #tpu.memory_space<smem>>
    %510 = vector.broadcast %509 : f32 to vector<10x16xf32>
    %511 = arith.mulf %510, %496 : vector<10x16xf32>
    %512 = arith.addf %478, %511 : vector<10x16xf32>
    %c116 = arith.constant 116 : index
    %513 = memref.load %arg2[%c116] : memref<298xf32, #tpu.memory_space<smem>>
    %514 = vector.broadcast %513 : f32 to vector<10x16xf32>
    %515 = arith.mulf %514, %496 : vector<10x16xf32>
    %516 = arith.addf %482, %515 : vector<10x16xf32>
    %c117 = arith.constant 117 : index
    %517 = memref.load %arg2[%c117] : memref<298xf32, #tpu.memory_space<smem>>
    %518 = vector.broadcast %517 : f32 to vector<10x16xf32>
    %519 = arith.mulf %518, %496 : vector<10x16xf32>
    %520 = arith.addf %486, %519 : vector<10x16xf32>
    %c118 = arith.constant 118 : index
    %521 = memref.load %arg2[%c118] : memref<298xf32, #tpu.memory_space<smem>>
    %522 = vector.broadcast %521 : f32 to vector<10x16xf32>
    %523 = arith.mulf %522, %496 : vector<10x16xf32>
    %524 = arith.addf %490, %523 : vector<10x16xf32>
    %c119 = arith.constant 119 : index
    %525 = memref.load %arg2[%c119] : memref<298xf32, #tpu.memory_space<smem>>
    %526 = vector.broadcast %525 : f32 to vector<10x16xf32>
    %527 = arith.mulf %526, %496 : vector<10x16xf32>
    %528 = arith.addf %494, %527 : vector<10x16xf32>
    %c1_65 = arith.constant 1 : index
    %c2_66 = arith.constant 2 : index
    %c1_67 = arith.constant 1 : index
    %529 = vector.load %arg7[%c1_65, %c2_66, %c1_67] : memref<2x12x18xf32, #tpu.memory_space<vmem>>, vector<1x10x16xf32>
    %530 = vector.shape_cast %529 : vector<1x10x16xf32> to vector<10x16xf32>
    %c120 = arith.constant 120 : index
    %531 = memref.load %arg2[%c120] : memref<298xf32, #tpu.memory_space<smem>>
    %532 = vector.broadcast %531 : f32 to vector<10x16xf32>
    %533 = arith.mulf %532, %530 : vector<10x16xf32>
    %534 = arith.addf %500, %533 : vector<10x16xf32>
    %c121 = arith.constant 121 : index
    %535 = memref.load %arg2[%c121] : memref<298xf32, #tpu.memory_space<smem>>
    %536 = vector.broadcast %535 : f32 to vector<10x16xf32>
    %537 = arith.mulf %536, %530 : vector<10x16xf32>
    %538 = arith.addf %504, %537 : vector<10x16xf32>
    %c122 = arith.constant 122 : index
    %539 = memref.load %arg2[%c122] : memref<298xf32, #tpu.memory_space<smem>>
    %540 = vector.broadcast %539 : f32 to vector<10x16xf32>
    %541 = arith.mulf %540, %530 : vector<10x16xf32>
    %542 = arith.addf %508, %541 : vector<10x16xf32>
    %c123 = arith.constant 123 : index
    %543 = memref.load %arg2[%c123] : memref<298xf32, #tpu.memory_space<smem>>
    %544 = vector.broadcast %543 : f32 to vector<10x16xf32>
    %545 = arith.mulf %544, %530 : vector<10x16xf32>
    %546 = arith.addf %512, %545 : vector<10x16xf32>
    %c124 = arith.constant 124 : index
    %547 = memref.load %arg2[%c124] : memref<298xf32, #tpu.memory_space<smem>>
    %548 = vector.broadcast %547 : f32 to vector<10x16xf32>
    %549 = arith.mulf %548, %530 : vector<10x16xf32>
    %550 = arith.addf %516, %549 : vector<10x16xf32>
    %c125 = arith.constant 125 : index
    %551 = memref.load %arg2[%c125] : memref<298xf32, #tpu.memory_space<smem>>
    %552 = vector.broadcast %551 : f32 to vector<10x16xf32>
    %553 = arith.mulf %552, %530 : vector<10x16xf32>
    %554 = arith.addf %520, %553 : vector<10x16xf32>
    %c126 = arith.constant 126 : index
    %555 = memref.load %arg2[%c126] : memref<298xf32, #tpu.memory_space<smem>>
    %556 = vector.broadcast %555 : f32 to vector<10x16xf32>
    %557 = arith.mulf %556, %530 : vector<10x16xf32>
    %558 = arith.addf %524, %557 : vector<10x16xf32>
    %c127 = arith.constant 127 : index
    %559 = memref.load %arg2[%c127] : memref<298xf32, #tpu.memory_space<smem>>
    %560 = vector.broadcast %559 : f32 to vector<10x16xf32>
    %561 = arith.mulf %560, %530 : vector<10x16xf32>
    %562 = arith.addf %528, %561 : vector<10x16xf32>
    %c0_68 = arith.constant 0 : index
    %c2_69 = arith.constant 2 : index
    %c2_70 = arith.constant 2 : index
    %563 = vector.load %arg7[%c0_68, %c2_69, %c2_70] : memref<2x12x18xf32, #tpu.memory_space<vmem>>, vector<1x10x16xf32>
    %564 = vector.shape_cast %563 : vector<1x10x16xf32> to vector<10x16xf32>
    %c128 = arith.constant 128 : index
    %565 = memref.load %arg2[%c128] : memref<298xf32, #tpu.memory_space<smem>>
    %566 = vector.broadcast %565 : f32 to vector<10x16xf32>
    %567 = arith.mulf %566, %564 : vector<10x16xf32>
    %568 = arith.addf %534, %567 : vector<10x16xf32>
    %c129 = arith.constant 129 : index
    %569 = memref.load %arg2[%c129] : memref<298xf32, #tpu.memory_space<smem>>
    %570 = vector.broadcast %569 : f32 to vector<10x16xf32>
    %571 = arith.mulf %570, %564 : vector<10x16xf32>
    %572 = arith.addf %538, %571 : vector<10x16xf32>
    %c130 = arith.constant 130 : index
    %573 = memref.load %arg2[%c130] : memref<298xf32, #tpu.memory_space<smem>>
    %574 = vector.broadcast %573 : f32 to vector<10x16xf32>
    %575 = arith.mulf %574, %564 : vector<10x16xf32>
    %576 = arith.addf %542, %575 : vector<10x16xf32>
    %c131 = arith.constant 131 : index
    %577 = memref.load %arg2[%c131] : memref<298xf32, #tpu.memory_space<smem>>
    %578 = vector.broadcast %577 : f32 to vector<10x16xf32>
    %579 = arith.mulf %578, %564 : vector<10x16xf32>
    %580 = arith.addf %546, %579 : vector<10x16xf32>
    %c132 = arith.constant 132 : index
    %581 = memref.load %arg2[%c132] : memref<298xf32, #tpu.memory_space<smem>>
    %582 = vector.broadcast %581 : f32 to vector<10x16xf32>
    %583 = arith.mulf %582, %564 : vector<10x16xf32>
    %584 = arith.addf %550, %583 : vector<10x16xf32>
    %c133 = arith.constant 133 : index
    %585 = memref.load %arg2[%c133] : memref<298xf32, #tpu.memory_space<smem>>
    %586 = vector.broadcast %585 : f32 to vector<10x16xf32>
    %587 = arith.mulf %586, %564 : vector<10x16xf32>
    %588 = arith.addf %554, %587 : vector<10x16xf32>
    %c134 = arith.constant 134 : index
    %589 = memref.load %arg2[%c134] : memref<298xf32, #tpu.memory_space<smem>>
    %590 = vector.broadcast %589 : f32 to vector<10x16xf32>
    %591 = arith.mulf %590, %564 : vector<10x16xf32>
    %592 = arith.addf %558, %591 : vector<10x16xf32>
    %c135 = arith.constant 135 : index
    %593 = memref.load %arg2[%c135] : memref<298xf32, #tpu.memory_space<smem>>
    %594 = vector.broadcast %593 : f32 to vector<10x16xf32>
    %595 = arith.mulf %594, %564 : vector<10x16xf32>
    %596 = arith.addf %562, %595 : vector<10x16xf32>
    %c1_71 = arith.constant 1 : index
    %c2_72 = arith.constant 2 : index
    %c2_73 = arith.constant 2 : index
    %597 = vector.load %arg7[%c1_71, %c2_72, %c2_73] : memref<2x12x18xf32, #tpu.memory_space<vmem>>, vector<1x10x16xf32>
    %598 = vector.shape_cast %597 : vector<1x10x16xf32> to vector<10x16xf32>
    %c136 = arith.constant 136 : index
    %599 = memref.load %arg2[%c136] : memref<298xf32, #tpu.memory_space<smem>>
    %600 = vector.broadcast %599 : f32 to vector<10x16xf32>
    %601 = arith.mulf %600, %598 : vector<10x16xf32>
    %602 = arith.addf %568, %601 : vector<10x16xf32>
    %c137 = arith.constant 137 : index
    %603 = memref.load %arg2[%c137] : memref<298xf32, #tpu.memory_space<smem>>
    %604 = vector.broadcast %603 : f32 to vector<10x16xf32>
    %605 = arith.mulf %604, %598 : vector<10x16xf32>
    %606 = arith.addf %572, %605 : vector<10x16xf32>
    %c138 = arith.constant 138 : index
    %607 = memref.load %arg2[%c138] : memref<298xf32, #tpu.memory_space<smem>>
    %608 = vector.broadcast %607 : f32 to vector<10x16xf32>
    %609 = arith.mulf %608, %598 : vector<10x16xf32>
    %610 = arith.addf %576, %609 : vector<10x16xf32>
    %c139 = arith.constant 139 : index
    %611 = memref.load %arg2[%c139] : memref<298xf32, #tpu.memory_space<smem>>
    %612 = vector.broadcast %611 : f32 to vector<10x16xf32>
    %613 = arith.mulf %612, %598 : vector<10x16xf32>
    %614 = arith.addf %580, %613 : vector<10x16xf32>
    %c140 = arith.constant 140 : index
    %615 = memref.load %arg2[%c140] : memref<298xf32, #tpu.memory_space<smem>>
    %616 = vector.broadcast %615 : f32 to vector<10x16xf32>
    %617 = arith.mulf %616, %598 : vector<10x16xf32>
    %618 = arith.addf %584, %617 : vector<10x16xf32>
    %c141 = arith.constant 141 : index
    %619 = memref.load %arg2[%c141] : memref<298xf32, #tpu.memory_space<smem>>
    %620 = vector.broadcast %619 : f32 to vector<10x16xf32>
    %621 = arith.mulf %620, %598 : vector<10x16xf32>
    %622 = arith.addf %588, %621 : vector<10x16xf32>
    %c142 = arith.constant 142 : index
    %623 = memref.load %arg2[%c142] : memref<298xf32, #tpu.memory_space<smem>>
    %624 = vector.broadcast %623 : f32 to vector<10x16xf32>
    %625 = arith.mulf %624, %598 : vector<10x16xf32>
    %626 = arith.addf %592, %625 : vector<10x16xf32>
    %c143 = arith.constant 143 : index
    %627 = memref.load %arg2[%c143] : memref<298xf32, #tpu.memory_space<smem>>
    %628 = vector.broadcast %627 : f32 to vector<10x16xf32>
    %629 = arith.mulf %628, %598 : vector<10x16xf32>
    %630 = arith.addf %596, %629 : vector<10x16xf32>
    %cst_74 = arith.constant 0.000000e+00 : f32
    %631 = vector.broadcast %cst_74 : f32 to vector<8x10x18xf32>
    %c0_75 = arith.constant 0 : index
    %c0_76 = arith.constant 0 : index
    %c0_77 = arith.constant 0 : index
    %632 = vector.load %arg8[%c0_75, %c0_76, %c0_77] : memref<8x10x18xf32, #tpu.memory_space<vmem>>, vector<8x10x18xf32>
    tpu.vector_store %arg8[%c0_75, %c0_76, %c0_77], %631 {strides = array<i32>} : memref<8x10x18xf32, #tpu.memory_space<vmem>>, vector<8x10x18xf32>,
    %c144 = arith.constant 144 : index
    %633 = memref.load %arg2[%c144] : memref<298xf32, #tpu.memory_space<smem>>
    %634 = vector.broadcast %633 : f32 to vector<10x16xf32>
    %635 = arith.addf %602, %634 : vector<10x16xf32>
    %cst_78 = arith.constant 0.000000e+00 : f32
    %636 = vector.broadcast %cst_78 : f32 to vector<10x16xf32>
    %637 = arith.cmpf ogt, %635, %636 : vector<10x16xf32>
    %cst_79 = arith.constant 1.000000e-01 : f32
    %638 = vector.broadcast %cst_79 : f32 to vector<10x16xf32>
    %639 = arith.mulf %638, %635 : vector<10x16xf32>
    %640 = arith.select %637, %635, %639 : vector<10x16xi1>, vector<10x16xf32>
    %c0_80 = arith.constant 0 : index
    %c0_81 = arith.constant 0 : index
    %c1_82 = arith.constant 1 : index
    %641 = vector.load %arg8[%c0_80, %c0_81, %c1_82] : memref<8x10x18xf32, #tpu.memory_space<vmem>>, vector<1x10x16xf32>
    %642 = vector.shape_cast %641 : vector<1x10x16xf32> to vector<10x16xf32>
    %643 = vector.shape_cast %640 : vector<10x16xf32> to vector<1x10x16xf32>
    tpu.vector_store %arg8[%c0_80, %c0_81, %c1_82], %643 {strides = array<i32>} : memref<8x10x18xf32, #tpu.memory_space<vmem>>, vector<1x10x16xf32>,
    %c145 = arith.constant 145 : index
    %644 = memref.load %arg2[%c145] : memref<298xf32, #tpu.memory_space<smem>>
    %645 = vector.broadcast %644 : f32 to vector<10x16xf32>
    %646 = arith.addf %606, %645 : vector<10x16xf32>
    %cst_83 = arith.constant 0.000000e+00 : f32
    %647 = vector.broadcast %cst_83 : f32 to vector<10x16xf32>
    %648 = arith.cmpf ogt, %646, %647 : vector<10x16xf32>
    %cst_84 = arith.constant 1.000000e-01 : f32
    %649 = vector.broadcast %cst_84 : f32 to vector<10x16xf32>
    %650 = arith.mulf %649, %646 : vector<10x16xf32>
    %651 = arith.select %648, %646, %650 : vector<10x16xi1>, vector<10x16xf32>
    %c1_85 = arith.constant 1 : index
    %c0_86 = arith.constant 0 : index
    %c1_87 = arith.constant 1 : index
    %652 = vector.load %arg8[%c1_85, %c0_86, %c1_87] : memref<8x10x18xf32, #tpu.memory_space<vmem>>, vector<1x10x16xf32>
    %653 = vector.shape_cast %652 : vector<1x10x16xf32> to vector<10x16xf32>
    %654 = vector.shape_cast %651 : vector<10x16xf32> to vector<1x10x16xf32>
    tpu.vector_store %arg8[%c1_85, %c0_86, %c1_87], %654 {strides = array<i32>} : memref<8x10x18xf32, #tpu.memory_space<vmem>>, vector<1x10x16xf32>,
    %c146 = arith.constant 146 : index
    %655 = memref.load %arg2[%c146] : memref<298xf32, #tpu.memory_space<smem>>
    %656 = vector.broadcast %655 : f32 to vector<10x16xf32>
    %657 = arith.addf %610, %656 : vector<10x16xf32>
    %cst_88 = arith.constant 0.000000e+00 : f32
    %658 = vector.broadcast %cst_88 : f32 to vector<10x16xf32>
    %659 = arith.cmpf ogt, %657, %658 : vector<10x16xf32>
    %cst_89 = arith.constant 1.000000e-01 : f32
    %660 = vector.broadcast %cst_89 : f32 to vector<10x16xf32>
    %661 = arith.mulf %660, %657 : vector<10x16xf32>
    %662 = arith.select %659, %657, %661 : vector<10x16xi1>, vector<10x16xf32>
    %c2_90 = arith.constant 2 : index
    %c0_91 = arith.constant 0 : index
    %c1_92 = arith.constant 1 : index
    %663 = vector.load %arg8[%c2_90, %c0_91, %c1_92] : memref<8x10x18xf32, #tpu.memory_space<vmem>>, vector<1x10x16xf32>
    %664 = vector.shape_cast %663 : vector<1x10x16xf32> to vector<10x16xf32>
    %665 = vector.shape_cast %662 : vector<10x16xf32> to vector<1x10x16xf32>
    tpu.vector_store %arg8[%c2_90, %c0_91, %c1_92], %665 {strides = array<i32>} : memref<8x10x18xf32, #tpu.memory_space<vmem>>, vector<1x10x16xf32>,
    %c147 = arith.constant 147 : index
    %666 = memref.load %arg2[%c147] : memref<298xf32, #tpu.memory_space<smem>>
    %667 = vector.broadcast %666 : f32 to vector<10x16xf32>
    %668 = arith.addf %614, %667 : vector<10x16xf32>
    %cst_93 = arith.constant 0.000000e+00 : f32
    %669 = vector.broadcast %cst_93 : f32 to vector<10x16xf32>
    %670 = arith.cmpf ogt, %668, %669 : vector<10x16xf32>
    %cst_94 = arith.constant 1.000000e-01 : f32
    %671 = vector.broadcast %cst_94 : f32 to vector<10x16xf32>
    %672 = arith.mulf %671, %668 : vector<10x16xf32>
    %673 = arith.select %670, %668, %672 : vector<10x16xi1>, vector<10x16xf32>
    %c3_95 = arith.constant 3 : index
    %c0_96 = arith.constant 0 : index
    %c1_97 = arith.constant 1 : index
    %674 = vector.load %arg8[%c3_95, %c0_96, %c1_97] : memref<8x10x18xf32, #tpu.memory_space<vmem>>, vector<1x10x16xf32>
    %675 = vector.shape_cast %674 : vector<1x10x16xf32> to vector<10x16xf32>
    %676 = vector.shape_cast %673 : vector<10x16xf32> to vector<1x10x16xf32>
    tpu.vector_store %arg8[%c3_95, %c0_96, %c1_97], %676 {strides = array<i32>} : memref<8x10x18xf32, #tpu.memory_space<vmem>>, vector<1x10x16xf32>,
    %c148 = arith.constant 148 : index
    %677 = memref.load %arg2[%c148] : memref<298xf32, #tpu.memory_space<smem>>
    %678 = vector.broadcast %677 : f32 to vector<10x16xf32>
    %679 = arith.addf %618, %678 : vector<10x16xf32>
    %cst_98 = arith.constant 0.000000e+00 : f32
    %680 = vector.broadcast %cst_98 : f32 to vector<10x16xf32>
    %681 = arith.cmpf ogt, %679, %680 : vector<10x16xf32>
    %cst_99 = arith.constant 1.000000e-01 : f32
    %682 = vector.broadcast %cst_99 : f32 to vector<10x16xf32>
    %683 = arith.mulf %682, %679 : vector<10x16xf32>
    %684 = arith.select %681, %679, %683 : vector<10x16xi1>, vector<10x16xf32>
    %c4_100 = arith.constant 4 : index
    %c0_101 = arith.constant 0 : index
    %c1_102 = arith.constant 1 : index
    %685 = vector.load %arg8[%c4_100, %c0_101, %c1_102] : memref<8x10x18xf32, #tpu.memory_space<vmem>>, vector<1x10x16xf32>
    %686 = vector.shape_cast %685 : vector<1x10x16xf32> to vector<10x16xf32>
    %687 = vector.shape_cast %684 : vector<10x16xf32> to vector<1x10x16xf32>
    tpu.vector_store %arg8[%c4_100, %c0_101, %c1_102], %687 {strides = array<i32>} : memref<8x10x18xf32, #tpu.memory_space<vmem>>, vector<1x10x16xf32>,
    %c149 = arith.constant 149 : index
    %688 = memref.load %arg2[%c149] : memref<298xf32, #tpu.memory_space<smem>>
    %689 = vector.broadcast %688 : f32 to vector<10x16xf32>
    %690 = arith.addf %622, %689 : vector<10x16xf32>
    %cst_103 = arith.constant 0.000000e+00 : f32
    %691 = vector.broadcast %cst_103 : f32 to vector<10x16xf32>
    %692 = arith.cmpf ogt, %690, %691 : vector<10x16xf32>
    %cst_104 = arith.constant 1.000000e-01 : f32
    %693 = vector.broadcast %cst_104 : f32 to vector<10x16xf32>
    %694 = arith.mulf %693, %690 : vector<10x16xf32>
    %695 = arith.select %692, %690, %694 : vector<10x16xi1>, vector<10x16xf32>
    %c5_105 = arith.constant 5 : index
    %c0_106 = arith.constant 0 : index
    %c1_107 = arith.constant 1 : index
    %696 = vector.load %arg8[%c5_105, %c0_106, %c1_107] : memref<8x10x18xf32, #tpu.memory_space<vmem>>, vector<1x10x16xf32>
    %697 = vector.shape_cast %696 : vector<1x10x16xf32> to vector<10x16xf32>
    %698 = vector.shape_cast %695 : vector<10x16xf32> to vector<1x10x16xf32>
    tpu.vector_store %arg8[%c5_105, %c0_106, %c1_107], %698 {strides = array<i32>} : memref<8x10x18xf32, #tpu.memory_space<vmem>>, vector<1x10x16xf32>,
    %c150 = arith.constant 150 : index
    %699 = memref.load %arg2[%c150] : memref<298xf32, #tpu.memory_space<smem>>
    %700 = vector.broadcast %699 : f32 to vector<10x16xf32>
    %701 = arith.addf %626, %700 : vector<10x16xf32>
    %cst_108 = arith.constant 0.000000e+00 : f32
    %702 = vector.broadcast %cst_108 : f32 to vector<10x16xf32>
    %703 = arith.cmpf ogt, %701, %702 : vector<10x16xf32>
    %cst_109 = arith.constant 1.000000e-01 : f32
    %704 = vector.broadcast %cst_109 : f32 to vector<10x16xf32>
    %705 = arith.mulf %704, %701 : vector<10x16xf32>
    %706 = arith.select %703, %701, %705 : vector<10x16xi1>, vector<10x16xf32>
    %c6_110 = arith.constant 6 : index
    %c0_111 = arith.constant 0 : index
    %c1_112 = arith.constant 1 : index
    %707 = vector.load %arg8[%c6_110, %c0_111, %c1_112] : memref<8x10x18xf32, #tpu.memory_space<vmem>>, vector<1x10x16xf32>
    %708 = vector.shape_cast %707 : vector<1x10x16xf32> to vector<10x16xf32>
    %709 = vector.shape_cast %706 : vector<10x16xf32> to vector<1x10x16xf32>
    tpu.vector_store %arg8[%c6_110, %c0_111, %c1_112], %709 {strides = array<i32>} : memref<8x10x18xf32, #tpu.memory_space<vmem>>, vector<1x10x16xf32>,
    %c151 = arith.constant 151 : index
    %710 = memref.load %arg2[%c151] : memref<298xf32, #tpu.memory_space<smem>>
    %711 = vector.broadcast %710 : f32 to vector<10x16xf32>
    %712 = arith.addf %630, %711 : vector<10x16xf32>
    %cst_113 = arith.constant 0.000000e+00 : f32
    %713 = vector.broadcast %cst_113 : f32 to vector<10x16xf32>
    %714 = arith.cmpf ogt, %712, %713 : vector<10x16xf32>
    %cst_114 = arith.constant 1.000000e-01 : f32
    %715 = vector.broadcast %cst_114 : f32 to vector<10x16xf32>
    %716 = arith.mulf %715, %712 : vector<10x16xf32>
    %717 = arith.select %714, %712, %716 : vector<10x16xi1>, vector<10x16xf32>
    %c7_115 = arith.constant 7 : index
    %c0_116 = arith.constant 0 : index
    %c1_117 = arith.constant 1 : index
    %718 = vector.load %arg8[%c7_115, %c0_116, %c1_117] : memref<8x10x18xf32, #tpu.memory_space<vmem>>, vector<1x10x16xf32>
    %719 = vector.shape_cast %718 : vector<1x10x16xf32> to vector<10x16xf32>
    %720 = vector.shape_cast %717 : vector<10x16xf32> to vector<1x10x16xf32>
    tpu.vector_store %arg8[%c7_115, %c0_116, %c1_117], %720 {strides = array<i32>} : memref<8x10x18xf32, #tpu.memory_space<vmem>>, vector<1x10x16xf32>,
    %c0_i32_118 = arith.constant 0 : i32
    %721 = arith.cmpi eq, %arg1, %c0_i32_118 : i32
    %722 = arith.extui %721 : i1 to i32
    %c0_i32_119 = arith.constant 0 : i32
    %723 = arith.cmpi ne, %722, %c0_i32_119 : i32
    scf.if %723 {
      %cst_348 = arith.constant 0.000000e+00 : f32
      %1461 = vector.broadcast %cst_348 : f32 to vector<8x1x18xf32>
      %c0_349 = arith.constant 0 : index
      %c0_350 = arith.constant 0 : index
      %c0_351 = arith.constant 0 : index
      %1462 = vector.load %arg8[%c0_349, %c0_350, %c0_351] : memref<8x10x18xf32, #tpu.memory_space<vmem>>, vector<8x1x18xf32>
      tpu.vector_store %arg8[%c0_349, %c0_350, %c0_351], %1461 {strides = array<i32>} : memref<8x10x18xf32, #tpu.memory_space<vmem>>, vector<8x1x18xf32>,
    } else {
    }
    %c1_i32_120 = arith.constant 1 : i32
    %724 = arith.cmpi eq, %arg1, %c1_i32_120 : i32
    %725 = arith.extui %724 : i1 to i32
    %c0_i32_121 = arith.constant 0 : i32
    %726 = arith.cmpi ne, %725, %c0_i32_121 : i32
    scf.if %726 {
      %cst_348 = arith.constant 0.000000e+00 : f32
      %1461 = vector.broadcast %cst_348 : f32 to vector<8x1x18xf32>
      %c0_349 = arith.constant 0 : index
      %c9_350 = arith.constant 9 : index
      %c0_351 = arith.constant 0 : index
      %1462 = vector.load %arg8[%c0_349, %c9_350, %c0_351] : memref<8x10x18xf32, #tpu.memory_space<vmem>>, vector<8x1x18xf32>
      tpu.vector_store %arg8[%c0_349, %c9_350, %c0_351], %1461 {strides = array<i32>} : memref<8x10x18xf32, #tpu.memory_space<vmem>>, vector<8x1x18xf32>,
    } else {
    }
    %cst_122 = arith.constant 0.000000e+00 : f32
    %727 = vector.broadcast %cst_122 : f32 to vector<8x16xf32>
    %cst_123 = arith.constant 0.000000e+00 : f32
    %728 = vector.broadcast %cst_123 : f32 to vector<8x16xf32>
    %c0_124 = arith.constant 0 : index
    %c0_125 = arith.constant 0 : index
    %c0_126 = arith.constant 0 : index
    %729 = vector.load %arg8[%c0_124, %c0_125, %c0_126] : memref<8x10x18xf32, #tpu.memory_space<vmem>>, vector<1x8x16xf32>
    %730 = vector.shape_cast %729 : vector<1x8x16xf32> to vector<8x16xf32>
    %c152 = arith.constant 152 : index
    %731 = memref.load %arg2[%c152] : memref<298xf32, #tpu.memory_space<smem>>
    %732 = vector.broadcast %731 : f32 to vector<8x16xf32>
    %733 = arith.mulf %732, %730 : vector<8x16xf32>
    %734 = arith.addf %727, %733 : vector<8x16xf32>
    %c153 = arith.constant 153 : index
    %735 = memref.load %arg2[%c153] : memref<298xf32, #tpu.memory_space<smem>>
    %736 = vector.broadcast %735 : f32 to vector<8x16xf32>
    %737 = arith.mulf %736, %730 : vector<8x16xf32>
    %738 = arith.addf %728, %737 : vector<8x16xf32>
    %c1_127 = arith.constant 1 : index
    %c0_128 = arith.constant 0 : index
    %c0_129 = arith.constant 0 : index
    %739 = vector.load %arg8[%c1_127, %c0_128, %c0_129] : memref<8x10x18xf32, #tpu.memory_space<vmem>>, vector<1x8x16xf32>
    %740 = vector.shape_cast %739 : vector<1x8x16xf32> to vector<8x16xf32>
    %c154 = arith.constant 154 : index
    %741 = memref.load %arg2[%c154] : memref<298xf32, #tpu.memory_space<smem>>
    %742 = vector.broadcast %741 : f32 to vector<8x16xf32>
    %743 = arith.mulf %742, %740 : vector<8x16xf32>
    %744 = arith.addf %734, %743 : vector<8x16xf32>
    %c155 = arith.constant 155 : index
    %745 = memref.load %arg2[%c155] : memref<298xf32, #tpu.memory_space<smem>>
    %746 = vector.broadcast %745 : f32 to vector<8x16xf32>
    %747 = arith.mulf %746, %740 : vector<8x16xf32>
    %748 = arith.addf %738, %747 : vector<8x16xf32>
    %c2_130 = arith.constant 2 : index
    %c0_131 = arith.constant 0 : index
    %c0_132 = arith.constant 0 : index
    %749 = vector.load %arg8[%c2_130, %c0_131, %c0_132] : memref<8x10x18xf32, #tpu.memory_space<vmem>>, vector<1x8x16xf32>
    %750 = vector.shape_cast %749 : vector<1x8x16xf32> to vector<8x16xf32>
    %c156 = arith.constant 156 : index
    %751 = memref.load %arg2[%c156] : memref<298xf32, #tpu.memory_space<smem>>
    %752 = vector.broadcast %751 : f32 to vector<8x16xf32>
    %753 = arith.mulf %752, %750 : vector<8x16xf32>
    %754 = arith.addf %744, %753 : vector<8x16xf32>
    %c157 = arith.constant 157 : index
    %755 = memref.load %arg2[%c157] : memref<298xf32, #tpu.memory_space<smem>>
    %756 = vector.broadcast %755 : f32 to vector<8x16xf32>
    %757 = arith.mulf %756, %750 : vector<8x16xf32>
    %758 = arith.addf %748, %757 : vector<8x16xf32>
    %c3_133 = arith.constant 3 : index
    %c0_134 = arith.constant 0 : index
    %c0_135 = arith.constant 0 : index
    %759 = vector.load %arg8[%c3_133, %c0_134, %c0_135] : memref<8x10x18xf32, #tpu.memory_space<vmem>>, vector<1x8x16xf32>
    %760 = vector.shape_cast %759 : vector<1x8x16xf32> to vector<8x16xf32>
    %c158 = arith.constant 158 : index
    %761 = memref.load %arg2[%c158] : memref<298xf32, #tpu.memory_space<smem>>
    %762 = vector.broadcast %761 : f32 to vector<8x16xf32>
    %763 = arith.mulf %762, %760 : vector<8x16xf32>
    %764 = arith.addf %754, %763 : vector<8x16xf32>
    %c159 = arith.constant 159 : index
    %765 = memref.load %arg2[%c159] : memref<298xf32, #tpu.memory_space<smem>>
    %766 = vector.broadcast %765 : f32 to vector<8x16xf32>
    %767 = arith.mulf %766, %760 : vector<8x16xf32>
    %768 = arith.addf %758, %767 : vector<8x16xf32>
    %c4_136 = arith.constant 4 : index
    %c0_137 = arith.constant 0 : index
    %c0_138 = arith.constant 0 : index
    %769 = vector.load %arg8[%c4_136, %c0_137, %c0_138] : memref<8x10x18xf32, #tpu.memory_space<vmem>>, vector<1x8x16xf32>
    %770 = vector.shape_cast %769 : vector<1x8x16xf32> to vector<8x16xf32>
    %c160 = arith.constant 160 : index
    %771 = memref.load %arg2[%c160] : memref<298xf32, #tpu.memory_space<smem>>
    %772 = vector.broadcast %771 : f32 to vector<8x16xf32>
    %773 = arith.mulf %772, %770 : vector<8x16xf32>
    %774 = arith.addf %764, %773 : vector<8x16xf32>
    %c161 = arith.constant 161 : index
    %775 = memref.load %arg2[%c161] : memref<298xf32, #tpu.memory_space<smem>>
    %776 = vector.broadcast %775 : f32 to vector<8x16xf32>
    %777 = arith.mulf %776, %770 : vector<8x16xf32>
    %778 = arith.addf %768, %777 : vector<8x16xf32>
    %c5_139 = arith.constant 5 : index
    %c0_140 = arith.constant 0 : index
    %c0_141 = arith.constant 0 : index
    %779 = vector.load %arg8[%c5_139, %c0_140, %c0_141] : memref<8x10x18xf32, #tpu.memory_space<vmem>>, vector<1x8x16xf32>
    %780 = vector.shape_cast %779 : vector<1x8x16xf32> to vector<8x16xf32>
    %c162 = arith.constant 162 : index
    %781 = memref.load %arg2[%c162] : memref<298xf32, #tpu.memory_space<smem>>
    %782 = vector.broadcast %781 : f32 to vector<8x16xf32>
    %783 = arith.mulf %782, %780 : vector<8x16xf32>
    %784 = arith.addf %774, %783 : vector<8x16xf32>
    %c163 = arith.constant 163 : index
    %785 = memref.load %arg2[%c163] : memref<298xf32, #tpu.memory_space<smem>>
    %786 = vector.broadcast %785 : f32 to vector<8x16xf32>
    %787 = arith.mulf %786, %780 : vector<8x16xf32>
    %788 = arith.addf %778, %787 : vector<8x16xf32>
    %c6_142 = arith.constant 6 : index
    %c0_143 = arith.constant 0 : index
    %c0_144 = arith.constant 0 : index
    %789 = vector.load %arg8[%c6_142, %c0_143, %c0_144] : memref<8x10x18xf32, #tpu.memory_space<vmem>>, vector<1x8x16xf32>
    %790 = vector.shape_cast %789 : vector<1x8x16xf32> to vector<8x16xf32>
    %c164 = arith.constant 164 : index
    %791 = memref.load %arg2[%c164] : memref<298xf32, #tpu.memory_space<smem>>
    %792 = vector.broadcast %791 : f32 to vector<8x16xf32>
    %793 = arith.mulf %792, %790 : vector<8x16xf32>
    %794 = arith.addf %784, %793 : vector<8x16xf32>
    %c165 = arith.constant 165 : index
    %795 = memref.load %arg2[%c165] : memref<298xf32, #tpu.memory_space<smem>>
    %796 = vector.broadcast %795 : f32 to vector<8x16xf32>
    %797 = arith.mulf %796, %790 : vector<8x16xf32>
    %798 = arith.addf %788, %797 : vector<8x16xf32>
    %c7_145 = arith.constant 7 : index
    %c0_146 = arith.constant 0 : index
    %c0_147 = arith.constant 0 : index
    %799 = vector.load %arg8[%c7_145, %c0_146, %c0_147] : memref<8x10x18xf32, #tpu.memory_space<vmem>>, vector<1x8x16xf32>
    %800 = vector.shape_cast %799 : vector<1x8x16xf32> to vector<8x16xf32>
    %c166 = arith.constant 166 : index
    %801 = memref.load %arg2[%c166] : memref<298xf32, #tpu.memory_space<smem>>
    %802 = vector.broadcast %801 : f32 to vector<8x16xf32>
    %803 = arith.mulf %802, %800 : vector<8x16xf32>
    %804 = arith.addf %794, %803 : vector<8x16xf32>
    %c167 = arith.constant 167 : index
    %805 = memref.load %arg2[%c167] : memref<298xf32, #tpu.memory_space<smem>>
    %806 = vector.broadcast %805 : f32 to vector<8x16xf32>
    %807 = arith.mulf %806, %800 : vector<8x16xf32>
    %808 = arith.addf %798, %807 : vector<8x16xf32>
    %c0_148 = arith.constant 0 : index
    %c0_149 = arith.constant 0 : index
    %c1_150 = arith.constant 1 : index
    %809 = vector.load %arg8[%c0_148, %c0_149, %c1_150] : memref<8x10x18xf32, #tpu.memory_space<vmem>>, vector<1x8x16xf32>
    %810 = vector.shape_cast %809 : vector<1x8x16xf32> to vector<8x16xf32>
    %c168 = arith.constant 168 : index
    %811 = memref.load %arg2[%c168] : memref<298xf32, #tpu.memory_space<smem>>
    %812 = vector.broadcast %811 : f32 to vector<8x16xf32>
    %813 = arith.mulf %812, %810 : vector<8x16xf32>
    %814 = arith.addf %804, %813 : vector<8x16xf32>
    %c169 = arith.constant 169 : index
    %815 = memref.load %arg2[%c169] : memref<298xf32, #tpu.memory_space<smem>>
    %816 = vector.broadcast %815 : f32 to vector<8x16xf32>
    %817 = arith.mulf %816, %810 : vector<8x16xf32>
    %818 = arith.addf %808, %817 : vector<8x16xf32>
    %c1_151 = arith.constant 1 : index
    %c0_152 = arith.constant 0 : index
    %c1_153 = arith.constant 1 : index
    %819 = vector.load %arg8[%c1_151, %c0_152, %c1_153] : memref<8x10x18xf32, #tpu.memory_space<vmem>>, vector<1x8x16xf32>
    %820 = vector.shape_cast %819 : vector<1x8x16xf32> to vector<8x16xf32>
    %c170 = arith.constant 170 : index
    %821 = memref.load %arg2[%c170] : memref<298xf32, #tpu.memory_space<smem>>
    %822 = vector.broadcast %821 : f32 to vector<8x16xf32>
    %823 = arith.mulf %822, %820 : vector<8x16xf32>
    %824 = arith.addf %814, %823 : vector<8x16xf32>
    %c171 = arith.constant 171 : index
    %825 = memref.load %arg2[%c171] : memref<298xf32, #tpu.memory_space<smem>>
    %826 = vector.broadcast %825 : f32 to vector<8x16xf32>
    %827 = arith.mulf %826, %820 : vector<8x16xf32>
    %828 = arith.addf %818, %827 : vector<8x16xf32>
    %c2_154 = arith.constant 2 : index
    %c0_155 = arith.constant 0 : index
    %c1_156 = arith.constant 1 : index
    %829 = vector.load %arg8[%c2_154, %c0_155, %c1_156] : memref<8x10x18xf32, #tpu.memory_space<vmem>>, vector<1x8x16xf32>
    %830 = vector.shape_cast %829 : vector<1x8x16xf32> to vector<8x16xf32>
    %c172 = arith.constant 172 : index
    %831 = memref.load %arg2[%c172] : memref<298xf32, #tpu.memory_space<smem>>
    %832 = vector.broadcast %831 : f32 to vector<8x16xf32>
    %833 = arith.mulf %832, %830 : vector<8x16xf32>
    %834 = arith.addf %824, %833 : vector<8x16xf32>
    %c173 = arith.constant 173 : index
    %835 = memref.load %arg2[%c173] : memref<298xf32, #tpu.memory_space<smem>>
    %836 = vector.broadcast %835 : f32 to vector<8x16xf32>
    %837 = arith.mulf %836, %830 : vector<8x16xf32>
    %838 = arith.addf %828, %837 : vector<8x16xf32>
    %c3_157 = arith.constant 3 : index
    %c0_158 = arith.constant 0 : index
    %c1_159 = arith.constant 1 : index
    %839 = vector.load %arg8[%c3_157, %c0_158, %c1_159] : memref<8x10x18xf32, #tpu.memory_space<vmem>>, vector<1x8x16xf32>
    %840 = vector.shape_cast %839 : vector<1x8x16xf32> to vector<8x16xf32>
    %c174 = arith.constant 174 : index
    %841 = memref.load %arg2[%c174] : memref<298xf32, #tpu.memory_space<smem>>
    %842 = vector.broadcast %841 : f32 to vector<8x16xf32>
    %843 = arith.mulf %842, %840 : vector<8x16xf32>
    %844 = arith.addf %834, %843 : vector<8x16xf32>
    %c175 = arith.constant 175 : index
    %845 = memref.load %arg2[%c175] : memref<298xf32, #tpu.memory_space<smem>>
    %846 = vector.broadcast %845 : f32 to vector<8x16xf32>
    %847 = arith.mulf %846, %840 : vector<8x16xf32>
    %848 = arith.addf %838, %847 : vector<8x16xf32>
    %c4_160 = arith.constant 4 : index
    %c0_161 = arith.constant 0 : index
    %c1_162 = arith.constant 1 : index
    %849 = vector.load %arg8[%c4_160, %c0_161, %c1_162] : memref<8x10x18xf32, #tpu.memory_space<vmem>>, vector<1x8x16xf32>
    %850 = vector.shape_cast %849 : vector<1x8x16xf32> to vector<8x16xf32>
    %c176 = arith.constant 176 : index
    %851 = memref.load %arg2[%c176] : memref<298xf32, #tpu.memory_space<smem>>
    %852 = vector.broadcast %851 : f32 to vector<8x16xf32>
    %853 = arith.mulf %852, %850 : vector<8x16xf32>
    %854 = arith.addf %844, %853 : vector<8x16xf32>
    %c177 = arith.constant 177 : index
    %855 = memref.load %arg2[%c177] : memref<298xf32, #tpu.memory_space<smem>>
    %856 = vector.broadcast %855 : f32 to vector<8x16xf32>
    %857 = arith.mulf %856, %850 : vector<8x16xf32>
    %858 = arith.addf %848, %857 : vector<8x16xf32>
    %c5_163 = arith.constant 5 : index
    %c0_164 = arith.constant 0 : index
    %c1_165 = arith.constant 1 : index
    %859 = vector.load %arg8[%c5_163, %c0_164, %c1_165] : memref<8x10x18xf32, #tpu.memory_space<vmem>>, vector<1x8x16xf32>
    %860 = vector.shape_cast %859 : vector<1x8x16xf32> to vector<8x16xf32>
    %c178 = arith.constant 178 : index
    %861 = memref.load %arg2[%c178] : memref<298xf32, #tpu.memory_space<smem>>
    %862 = vector.broadcast %861 : f32 to vector<8x16xf32>
    %863 = arith.mulf %862, %860 : vector<8x16xf32>
    %864 = arith.addf %854, %863 : vector<8x16xf32>
    %c179 = arith.constant 179 : index
    %865 = memref.load %arg2[%c179] : memref<298xf32, #tpu.memory_space<smem>>
    %866 = vector.broadcast %865 : f32 to vector<8x16xf32>
    %867 = arith.mulf %866, %860 : vector<8x16xf32>
    %868 = arith.addf %858, %867 : vector<8x16xf32>
    %c6_166 = arith.constant 6 : index
    %c0_167 = arith.constant 0 : index
    %c1_168 = arith.constant 1 : index
    %869 = vector.load %arg8[%c6_166, %c0_167, %c1_168] : memref<8x10x18xf32, #tpu.memory_space<vmem>>, vector<1x8x16xf32>
    %870 = vector.shape_cast %869 : vector<1x8x16xf32> to vector<8x16xf32>
    %c180 = arith.constant 180 : index
    %871 = memref.load %arg2[%c180] : memref<298xf32, #tpu.memory_space<smem>>
    %872 = vector.broadcast %871 : f32 to vector<8x16xf32>
    %873 = arith.mulf %872, %870 : vector<8x16xf32>
    %874 = arith.addf %864, %873 : vector<8x16xf32>
    %c181 = arith.constant 181 : index
    %875 = memref.load %arg2[%c181] : memref<298xf32, #tpu.memory_space<smem>>
    %876 = vector.broadcast %875 : f32 to vector<8x16xf32>
    %877 = arith.mulf %876, %870 : vector<8x16xf32>
    %878 = arith.addf %868, %877 : vector<8x16xf32>
    %c7_169 = arith.constant 7 : index
    %c0_170 = arith.constant 0 : index
    %c1_171 = arith.constant 1 : index
    %879 = vector.load %arg8[%c7_169, %c0_170, %c1_171] : memref<8x10x18xf32, #tpu.memory_space<vmem>>, vector<1x8x16xf32>
    %880 = vector.shape_cast %879 : vector<1x8x16xf32> to vector<8x16xf32>
    %c182 = arith.constant 182 : index
    %881 = memref.load %arg2[%c182] : memref<298xf32, #tpu.memory_space<smem>>
    %882 = vector.broadcast %881 : f32 to vector<8x16xf32>
    %883 = arith.mulf %882, %880 : vector<8x16xf32>
    %884 = arith.addf %874, %883 : vector<8x16xf32>
    %c183 = arith.constant 183 : index
    %885 = memref.load %arg2[%c183] : memref<298xf32, #tpu.memory_space<smem>>
    %886 = vector.broadcast %885 : f32 to vector<8x16xf32>
    %887 = arith.mulf %886, %880 : vector<8x16xf32>
    %888 = arith.addf %878, %887 : vector<8x16xf32>
    %c0_172 = arith.constant 0 : index
    %c0_173 = arith.constant 0 : index
    %c2_174 = arith.constant 2 : index
    %889 = vector.load %arg8[%c0_172, %c0_173, %c2_174] : memref<8x10x18xf32, #tpu.memory_space<vmem>>, vector<1x8x16xf32>
    %890 = vector.shape_cast %889 : vector<1x8x16xf32> to vector<8x16xf32>
    %c184 = arith.constant 184 : index
    %891 = memref.load %arg2[%c184] : memref<298xf32, #tpu.memory_space<smem>>
    %892 = vector.broadcast %891 : f32 to vector<8x16xf32>
    %893 = arith.mulf %892, %890 : vector<8x16xf32>
    %894 = arith.addf %884, %893 : vector<8x16xf32>
    %c185 = arith.constant 185 : index
    %895 = memref.load %arg2[%c185] : memref<298xf32, #tpu.memory_space<smem>>
    %896 = vector.broadcast %895 : f32 to vector<8x16xf32>
    %897 = arith.mulf %896, %890 : vector<8x16xf32>
    %898 = arith.addf %888, %897 : vector<8x16xf32>
    %c1_175 = arith.constant 1 : index
    %c0_176 = arith.constant 0 : index
    %c2_177 = arith.constant 2 : index
    %899 = vector.load %arg8[%c1_175, %c0_176, %c2_177] : memref<8x10x18xf32, #tpu.memory_space<vmem>>, vector<1x8x16xf32>
    %900 = vector.shape_cast %899 : vector<1x8x16xf32> to vector<8x16xf32>
    %c186 = arith.constant 186 : index
    %901 = memref.load %arg2[%c186] : memref<298xf32, #tpu.memory_space<smem>>
    %902 = vector.broadcast %901 : f32 to vector<8x16xf32>
    %903 = arith.mulf %902, %900 : vector<8x16xf32>
    %904 = arith.addf %894, %903 : vector<8x16xf32>
    %c187 = arith.constant 187 : index
    %905 = memref.load %arg2[%c187] : memref<298xf32, #tpu.memory_space<smem>>
    %906 = vector.broadcast %905 : f32 to vector<8x16xf32>
    %907 = arith.mulf %906, %900 : vector<8x16xf32>
    %908 = arith.addf %898, %907 : vector<8x16xf32>
    %c2_178 = arith.constant 2 : index
    %c0_179 = arith.constant 0 : index
    %c2_180 = arith.constant 2 : index
    %909 = vector.load %arg8[%c2_178, %c0_179, %c2_180] : memref<8x10x18xf32, #tpu.memory_space<vmem>>, vector<1x8x16xf32>
    %910 = vector.shape_cast %909 : vector<1x8x16xf32> to vector<8x16xf32>
    %c188 = arith.constant 188 : index
    %911 = memref.load %arg2[%c188] : memref<298xf32, #tpu.memory_space<smem>>
    %912 = vector.broadcast %911 : f32 to vector<8x16xf32>
    %913 = arith.mulf %912, %910 : vector<8x16xf32>
    %914 = arith.addf %904, %913 : vector<8x16xf32>
    %c189 = arith.constant 189 : index
    %915 = memref.load %arg2[%c189] : memref<298xf32, #tpu.memory_space<smem>>
    %916 = vector.broadcast %915 : f32 to vector<8x16xf32>
    %917 = arith.mulf %916, %910 : vector<8x16xf32>
    %918 = arith.addf %908, %917 : vector<8x16xf32>
    %c3_181 = arith.constant 3 : index
    %c0_182 = arith.constant 0 : index
    %c2_183 = arith.constant 2 : index
    %919 = vector.load %arg8[%c3_181, %c0_182, %c2_183] : memref<8x10x18xf32, #tpu.memory_space<vmem>>, vector<1x8x16xf32>
    %920 = vector.shape_cast %919 : vector<1x8x16xf32> to vector<8x16xf32>
    %c190 = arith.constant 190 : index
    %921 = memref.load %arg2[%c190] : memref<298xf32, #tpu.memory_space<smem>>
    %922 = vector.broadcast %921 : f32 to vector<8x16xf32>
    %923 = arith.mulf %922, %920 : vector<8x16xf32>
    %924 = arith.addf %914, %923 : vector<8x16xf32>
    %c191 = arith.constant 191 : index
    %925 = memref.load %arg2[%c191] : memref<298xf32, #tpu.memory_space<smem>>
    %926 = vector.broadcast %925 : f32 to vector<8x16xf32>
    %927 = arith.mulf %926, %920 : vector<8x16xf32>
    %928 = arith.addf %918, %927 : vector<8x16xf32>
    %c4_184 = arith.constant 4 : index
    %c0_185 = arith.constant 0 : index
    %c2_186 = arith.constant 2 : index
    %929 = vector.load %arg8[%c4_184, %c0_185, %c2_186] : memref<8x10x18xf32, #tpu.memory_space<vmem>>, vector<1x8x16xf32>
    %930 = vector.shape_cast %929 : vector<1x8x16xf32> to vector<8x16xf32>
    %c192 = arith.constant 192 : index
    %931 = memref.load %arg2[%c192] : memref<298xf32, #tpu.memory_space<smem>>
    %932 = vector.broadcast %931 : f32 to vector<8x16xf32>
    %933 = arith.mulf %932, %930 : vector<8x16xf32>
    %934 = arith.addf %924, %933 : vector<8x16xf32>
    %c193 = arith.constant 193 : index
    %935 = memref.load %arg2[%c193] : memref<298xf32, #tpu.memory_space<smem>>
    %936 = vector.broadcast %935 : f32 to vector<8x16xf32>
    %937 = arith.mulf %936, %930 : vector<8x16xf32>
    %938 = arith.addf %928, %937 : vector<8x16xf32>
    %c5_187 = arith.constant 5 : index
    %c0_188 = arith.constant 0 : index
    %c2_189 = arith.constant 2 : index
    %939 = vector.load %arg8[%c5_187, %c0_188, %c2_189] : memref<8x10x18xf32, #tpu.memory_space<vmem>>, vector<1x8x16xf32>
    %940 = vector.shape_cast %939 : vector<1x8x16xf32> to vector<8x16xf32>
    %c194 = arith.constant 194 : index
    %941 = memref.load %arg2[%c194] : memref<298xf32, #tpu.memory_space<smem>>
    %942 = vector.broadcast %941 : f32 to vector<8x16xf32>
    %943 = arith.mulf %942, %940 : vector<8x16xf32>
    %944 = arith.addf %934, %943 : vector<8x16xf32>
    %c195 = arith.constant 195 : index
    %945 = memref.load %arg2[%c195] : memref<298xf32, #tpu.memory_space<smem>>
    %946 = vector.broadcast %945 : f32 to vector<8x16xf32>
    %947 = arith.mulf %946, %940 : vector<8x16xf32>
    %948 = arith.addf %938, %947 : vector<8x16xf32>
    %c6_190 = arith.constant 6 : index
    %c0_191 = arith.constant 0 : index
    %c2_192 = arith.constant 2 : index
    %949 = vector.load %arg8[%c6_190, %c0_191, %c2_192] : memref<8x10x18xf32, #tpu.memory_space<vmem>>, vector<1x8x16xf32>
    %950 = vector.shape_cast %949 : vector<1x8x16xf32> to vector<8x16xf32>
    %c196 = arith.constant 196 : index
    %951 = memref.load %arg2[%c196] : memref<298xf32, #tpu.memory_space<smem>>
    %952 = vector.broadcast %951 : f32 to vector<8x16xf32>
    %953 = arith.mulf %952, %950 : vector<8x16xf32>
    %954 = arith.addf %944, %953 : vector<8x16xf32>
    %c197 = arith.constant 197 : index
    %955 = memref.load %arg2[%c197] : memref<298xf32, #tpu.memory_space<smem>>
    %956 = vector.broadcast %955 : f32 to vector<8x16xf32>
    %957 = arith.mulf %956, %950 : vector<8x16xf32>
    %958 = arith.addf %948, %957 : vector<8x16xf32>
    %c7_193 = arith.constant 7 : index
    %c0_194 = arith.constant 0 : index
    %c2_195 = arith.constant 2 : index
    %959 = vector.load %arg8[%c7_193, %c0_194, %c2_195] : memref<8x10x18xf32, #tpu.memory_space<vmem>>, vector<1x8x16xf32>
    %960 = vector.shape_cast %959 : vector<1x8x16xf32> to vector<8x16xf32>
    %c198 = arith.constant 198 : index
    %961 = memref.load %arg2[%c198] : memref<298xf32, #tpu.memory_space<smem>>
    %962 = vector.broadcast %961 : f32 to vector<8x16xf32>
    %963 = arith.mulf %962, %960 : vector<8x16xf32>
    %964 = arith.addf %954, %963 : vector<8x16xf32>
    %c199 = arith.constant 199 : index
    %965 = memref.load %arg2[%c199] : memref<298xf32, #tpu.memory_space<smem>>
    %966 = vector.broadcast %965 : f32 to vector<8x16xf32>
    %967 = arith.mulf %966, %960 : vector<8x16xf32>
    %968 = arith.addf %958, %967 : vector<8x16xf32>
    %c0_196 = arith.constant 0 : index
    %c1_197 = arith.constant 1 : index
    %c0_198 = arith.constant 0 : index
    %969 = vector.load %arg8[%c0_196, %c1_197, %c0_198] : memref<8x10x18xf32, #tpu.memory_space<vmem>>, vector<1x8x16xf32>
    %970 = vector.shape_cast %969 : vector<1x8x16xf32> to vector<8x16xf32>
    %c200 = arith.constant 200 : index
    %971 = memref.load %arg2[%c200] : memref<298xf32, #tpu.memory_space<smem>>
    %972 = vector.broadcast %971 : f32 to vector<8x16xf32>
    %973 = arith.mulf %972, %970 : vector<8x16xf32>
    %974 = arith.addf %964, %973 : vector<8x16xf32>
    %c201 = arith.constant 201 : index
    %975 = memref.load %arg2[%c201] : memref<298xf32, #tpu.memory_space<smem>>
    %976 = vector.broadcast %975 : f32 to vector<8x16xf32>
    %977 = arith.mulf %976, %970 : vector<8x16xf32>
    %978 = arith.addf %968, %977 : vector<8x16xf32>
    %c1_199 = arith.constant 1 : index
    %c1_200 = arith.constant 1 : index
    %c0_201 = arith.constant 0 : index
    %979 = vector.load %arg8[%c1_199, %c1_200, %c0_201] : memref<8x10x18xf32, #tpu.memory_space<vmem>>, vector<1x8x16xf32>
    %980 = vector.shape_cast %979 : vector<1x8x16xf32> to vector<8x16xf32>
    %c202 = arith.constant 202 : index
    %981 = memref.load %arg2[%c202] : memref<298xf32, #tpu.memory_space<smem>>
    %982 = vector.broadcast %981 : f32 to vector<8x16xf32>
    %983 = arith.mulf %982, %980 : vector<8x16xf32>
    %984 = arith.addf %974, %983 : vector<8x16xf32>
    %c203 = arith.constant 203 : index
    %985 = memref.load %arg2[%c203] : memref<298xf32, #tpu.memory_space<smem>>
    %986 = vector.broadcast %985 : f32 to vector<8x16xf32>
    %987 = arith.mulf %986, %980 : vector<8x16xf32>
    %988 = arith.addf %978, %987 : vector<8x16xf32>
    %c2_202 = arith.constant 2 : index
    %c1_203 = arith.constant 1 : index
    %c0_204 = arith.constant 0 : index
    %989 = vector.load %arg8[%c2_202, %c1_203, %c0_204] : memref<8x10x18xf32, #tpu.memory_space<vmem>>, vector<1x8x16xf32>
    %990 = vector.shape_cast %989 : vector<1x8x16xf32> to vector<8x16xf32>
    %c204 = arith.constant 204 : index
    %991 = memref.load %arg2[%c204] : memref<298xf32, #tpu.memory_space<smem>>
    %992 = vector.broadcast %991 : f32 to vector<8x16xf32>
    %993 = arith.mulf %992, %990 : vector<8x16xf32>
    %994 = arith.addf %984, %993 : vector<8x16xf32>
    %c205 = arith.constant 205 : index
    %995 = memref.load %arg2[%c205] : memref<298xf32, #tpu.memory_space<smem>>
    %996 = vector.broadcast %995 : f32 to vector<8x16xf32>
    %997 = arith.mulf %996, %990 : vector<8x16xf32>
    %998 = arith.addf %988, %997 : vector<8x16xf32>
    %c3_205 = arith.constant 3 : index
    %c1_206 = arith.constant 1 : index
    %c0_207 = arith.constant 0 : index
    %999 = vector.load %arg8[%c3_205, %c1_206, %c0_207] : memref<8x10x18xf32, #tpu.memory_space<vmem>>, vector<1x8x16xf32>
    %1000 = vector.shape_cast %999 : vector<1x8x16xf32> to vector<8x16xf32>
    %c206 = arith.constant 206 : index
    %1001 = memref.load %arg2[%c206] : memref<298xf32, #tpu.memory_space<smem>>
    %1002 = vector.broadcast %1001 : f32 to vector<8x16xf32>
    %1003 = arith.mulf %1002, %1000 : vector<8x16xf32>
    %1004 = arith.addf %994, %1003 : vector<8x16xf32>
    %c207 = arith.constant 207 : index
    %1005 = memref.load %arg2[%c207] : memref<298xf32, #tpu.memory_space<smem>>
    %1006 = vector.broadcast %1005 : f32 to vector<8x16xf32>
    %1007 = arith.mulf %1006, %1000 : vector<8x16xf32>
    %1008 = arith.addf %998, %1007 : vector<8x16xf32>
    %c4_208 = arith.constant 4 : index
    %c1_209 = arith.constant 1 : index
    %c0_210 = arith.constant 0 : index
    %1009 = vector.load %arg8[%c4_208, %c1_209, %c0_210] : memref<8x10x18xf32, #tpu.memory_space<vmem>>, vector<1x8x16xf32>
    %1010 = vector.shape_cast %1009 : vector<1x8x16xf32> to vector<8x16xf32>
    %c208 = arith.constant 208 : index
    %1011 = memref.load %arg2[%c208] : memref<298xf32, #tpu.memory_space<smem>>
    %1012 = vector.broadcast %1011 : f32 to vector<8x16xf32>
    %1013 = arith.mulf %1012, %1010 : vector<8x16xf32>
    %1014 = arith.addf %1004, %1013 : vector<8x16xf32>
    %c209 = arith.constant 209 : index
    %1015 = memref.load %arg2[%c209] : memref<298xf32, #tpu.memory_space<smem>>
    %1016 = vector.broadcast %1015 : f32 to vector<8x16xf32>
    %1017 = arith.mulf %1016, %1010 : vector<8x16xf32>
    %1018 = arith.addf %1008, %1017 : vector<8x16xf32>
    %c5_211 = arith.constant 5 : index
    %c1_212 = arith.constant 1 : index
    %c0_213 = arith.constant 0 : index
    %1019 = vector.load %arg8[%c5_211, %c1_212, %c0_213] : memref<8x10x18xf32, #tpu.memory_space<vmem>>, vector<1x8x16xf32>
    %1020 = vector.shape_cast %1019 : vector<1x8x16xf32> to vector<8x16xf32>
    %c210 = arith.constant 210 : index
    %1021 = memref.load %arg2[%c210] : memref<298xf32, #tpu.memory_space<smem>>
    %1022 = vector.broadcast %1021 : f32 to vector<8x16xf32>
    %1023 = arith.mulf %1022, %1020 : vector<8x16xf32>
    %1024 = arith.addf %1014, %1023 : vector<8x16xf32>
    %c211 = arith.constant 211 : index
    %1025 = memref.load %arg2[%c211] : memref<298xf32, #tpu.memory_space<smem>>
    %1026 = vector.broadcast %1025 : f32 to vector<8x16xf32>
    %1027 = arith.mulf %1026, %1020 : vector<8x16xf32>
    %1028 = arith.addf %1018, %1027 : vector<8x16xf32>
    %c6_214 = arith.constant 6 : index
    %c1_215 = arith.constant 1 : index
    %c0_216 = arith.constant 0 : index
    %1029 = vector.load %arg8[%c6_214, %c1_215, %c0_216] : memref<8x10x18xf32, #tpu.memory_space<vmem>>, vector<1x8x16xf32>
    %1030 = vector.shape_cast %1029 : vector<1x8x16xf32> to vector<8x16xf32>
    %c212 = arith.constant 212 : index
    %1031 = memref.load %arg2[%c212] : memref<298xf32, #tpu.memory_space<smem>>
    %1032 = vector.broadcast %1031 : f32 to vector<8x16xf32>
    %1033 = arith.mulf %1032, %1030 : vector<8x16xf32>
    %1034 = arith.addf %1024, %1033 : vector<8x16xf32>
    %c213 = arith.constant 213 : index
    %1035 = memref.load %arg2[%c213] : memref<298xf32, #tpu.memory_space<smem>>
    %1036 = vector.broadcast %1035 : f32 to vector<8x16xf32>
    %1037 = arith.mulf %1036, %1030 : vector<8x16xf32>
    %1038 = arith.addf %1028, %1037 : vector<8x16xf32>
    %c7_217 = arith.constant 7 : index
    %c1_218 = arith.constant 1 : index
    %c0_219 = arith.constant 0 : index
    %1039 = vector.load %arg8[%c7_217, %c1_218, %c0_219] : memref<8x10x18xf32, #tpu.memory_space<vmem>>, vector<1x8x16xf32>
    %1040 = vector.shape_cast %1039 : vector<1x8x16xf32> to vector<8x16xf32>
    %c214 = arith.constant 214 : index
    %1041 = memref.load %arg2[%c214] : memref<298xf32, #tpu.memory_space<smem>>
    %1042 = vector.broadcast %1041 : f32 to vector<8x16xf32>
    %1043 = arith.mulf %1042, %1040 : vector<8x16xf32>
    %1044 = arith.addf %1034, %1043 : vector<8x16xf32>
    %c215 = arith.constant 215 : index
    %1045 = memref.load %arg2[%c215] : memref<298xf32, #tpu.memory_space<smem>>
    %1046 = vector.broadcast %1045 : f32 to vector<8x16xf32>
    %1047 = arith.mulf %1046, %1040 : vector<8x16xf32>
    %1048 = arith.addf %1038, %1047 : vector<8x16xf32>
    %c0_220 = arith.constant 0 : index
    %c1_221 = arith.constant 1 : index
    %c1_222 = arith.constant 1 : index
    %1049 = vector.load %arg8[%c0_220, %c1_221, %c1_222] : memref<8x10x18xf32, #tpu.memory_space<vmem>>, vector<1x8x16xf32>
    %1050 = vector.shape_cast %1049 : vector<1x8x16xf32> to vector<8x16xf32>
    %c216 = arith.constant 216 : index
    %1051 = memref.load %arg2[%c216] : memref<298xf32, #tpu.memory_space<smem>>
    %1052 = vector.broadcast %1051 : f32 to vector<8x16xf32>
    %1053 = arith.mulf %1052, %1050 : vector<8x16xf32>
    %1054 = arith.addf %1044, %1053 : vector<8x16xf32>
    %c217 = arith.constant 217 : index
    %1055 = memref.load %arg2[%c217] : memref<298xf32, #tpu.memory_space<smem>>
    %1056 = vector.broadcast %1055 : f32 to vector<8x16xf32>
    %1057 = arith.mulf %1056, %1050 : vector<8x16xf32>
    %1058 = arith.addf %1048, %1057 : vector<8x16xf32>
    %c1_223 = arith.constant 1 : index
    %c1_224 = arith.constant 1 : index
    %c1_225 = arith.constant 1 : index
    %1059 = vector.load %arg8[%c1_223, %c1_224, %c1_225] : memref<8x10x18xf32, #tpu.memory_space<vmem>>, vector<1x8x16xf32>
    %1060 = vector.shape_cast %1059 : vector<1x8x16xf32> to vector<8x16xf32>
    %c218 = arith.constant 218 : index
    %1061 = memref.load %arg2[%c218] : memref<298xf32, #tpu.memory_space<smem>>
    %1062 = vector.broadcast %1061 : f32 to vector<8x16xf32>
    %1063 = arith.mulf %1062, %1060 : vector<8x16xf32>
    %1064 = arith.addf %1054, %1063 : vector<8x16xf32>
    %c219 = arith.constant 219 : index
    %1065 = memref.load %arg2[%c219] : memref<298xf32, #tpu.memory_space<smem>>
    %1066 = vector.broadcast %1065 : f32 to vector<8x16xf32>
    %1067 = arith.mulf %1066, %1060 : vector<8x16xf32>
    %1068 = arith.addf %1058, %1067 : vector<8x16xf32>
    %c2_226 = arith.constant 2 : index
    %c1_227 = arith.constant 1 : index
    %c1_228 = arith.constant 1 : index
    %1069 = vector.load %arg8[%c2_226, %c1_227, %c1_228] : memref<8x10x18xf32, #tpu.memory_space<vmem>>, vector<1x8x16xf32>
    %1070 = vector.shape_cast %1069 : vector<1x8x16xf32> to vector<8x16xf32>
    %c220 = arith.constant 220 : index
    %1071 = memref.load %arg2[%c220] : memref<298xf32, #tpu.memory_space<smem>>
    %1072 = vector.broadcast %1071 : f32 to vector<8x16xf32>
    %1073 = arith.mulf %1072, %1070 : vector<8x16xf32>
    %1074 = arith.addf %1064, %1073 : vector<8x16xf32>
    %c221 = arith.constant 221 : index
    %1075 = memref.load %arg2[%c221] : memref<298xf32, #tpu.memory_space<smem>>
    %1076 = vector.broadcast %1075 : f32 to vector<8x16xf32>
    %1077 = arith.mulf %1076, %1070 : vector<8x16xf32>
    %1078 = arith.addf %1068, %1077 : vector<8x16xf32>
    %c3_229 = arith.constant 3 : index
    %c1_230 = arith.constant 1 : index
    %c1_231 = arith.constant 1 : index
    %1079 = vector.load %arg8[%c3_229, %c1_230, %c1_231] : memref<8x10x18xf32, #tpu.memory_space<vmem>>, vector<1x8x16xf32>
    %1080 = vector.shape_cast %1079 : vector<1x8x16xf32> to vector<8x16xf32>
    %c222 = arith.constant 222 : index
    %1081 = memref.load %arg2[%c222] : memref<298xf32, #tpu.memory_space<smem>>
    %1082 = vector.broadcast %1081 : f32 to vector<8x16xf32>
    %1083 = arith.mulf %1082, %1080 : vector<8x16xf32>
    %1084 = arith.addf %1074, %1083 : vector<8x16xf32>
    %c223 = arith.constant 223 : index
    %1085 = memref.load %arg2[%c223] : memref<298xf32, #tpu.memory_space<smem>>
    %1086 = vector.broadcast %1085 : f32 to vector<8x16xf32>
    %1087 = arith.mulf %1086, %1080 : vector<8x16xf32>
    %1088 = arith.addf %1078, %1087 : vector<8x16xf32>
    %c4_232 = arith.constant 4 : index
    %c1_233 = arith.constant 1 : index
    %c1_234 = arith.constant 1 : index
    %1089 = vector.load %arg8[%c4_232, %c1_233, %c1_234] : memref<8x10x18xf32, #tpu.memory_space<vmem>>, vector<1x8x16xf32>
    %1090 = vector.shape_cast %1089 : vector<1x8x16xf32> to vector<8x16xf32>
    %c224 = arith.constant 224 : index
    %1091 = memref.load %arg2[%c224] : memref<298xf32, #tpu.memory_space<smem>>
    %1092 = vector.broadcast %1091 : f32 to vector<8x16xf32>
    %1093 = arith.mulf %1092, %1090 : vector<8x16xf32>
    %1094 = arith.addf %1084, %1093 : vector<8x16xf32>
    %c225 = arith.constant 225 : index
    %1095 = memref.load %arg2[%c225] : memref<298xf32, #tpu.memory_space<smem>>
    %1096 = vector.broadcast %1095 : f32 to vector<8x16xf32>
    %1097 = arith.mulf %1096, %1090 : vector<8x16xf32>
    %1098 = arith.addf %1088, %1097 : vector<8x16xf32>
    %c5_235 = arith.constant 5 : index
    %c1_236 = arith.constant 1 : index
    %c1_237 = arith.constant 1 : index
    %1099 = vector.load %arg8[%c5_235, %c1_236, %c1_237] : memref<8x10x18xf32, #tpu.memory_space<vmem>>, vector<1x8x16xf32>
    %1100 = vector.shape_cast %1099 : vector<1x8x16xf32> to vector<8x16xf32>
    %c226 = arith.constant 226 : index
    %1101 = memref.load %arg2[%c226] : memref<298xf32, #tpu.memory_space<smem>>
    %1102 = vector.broadcast %1101 : f32 to vector<8x16xf32>
    %1103 = arith.mulf %1102, %1100 : vector<8x16xf32>
    %1104 = arith.addf %1094, %1103 : vector<8x16xf32>
    %c227 = arith.constant 227 : index
    %1105 = memref.load %arg2[%c227] : memref<298xf32, #tpu.memory_space<smem>>
    %1106 = vector.broadcast %1105 : f32 to vector<8x16xf32>
    %1107 = arith.mulf %1106, %1100 : vector<8x16xf32>
    %1108 = arith.addf %1098, %1107 : vector<8x16xf32>
    %c6_238 = arith.constant 6 : index
    %c1_239 = arith.constant 1 : index
    %c1_240 = arith.constant 1 : index
    %1109 = vector.load %arg8[%c6_238, %c1_239, %c1_240] : memref<8x10x18xf32, #tpu.memory_space<vmem>>, vector<1x8x16xf32>
    %1110 = vector.shape_cast %1109 : vector<1x8x16xf32> to vector<8x16xf32>
    %c228 = arith.constant 228 : index
    %1111 = memref.load %arg2[%c228] : memref<298xf32, #tpu.memory_space<smem>>
    %1112 = vector.broadcast %1111 : f32 to vector<8x16xf32>
    %1113 = arith.mulf %1112, %1110 : vector<8x16xf32>
    %1114 = arith.addf %1104, %1113 : vector<8x16xf32>
    %c229 = arith.constant 229 : index
    %1115 = memref.load %arg2[%c229] : memref<298xf32, #tpu.memory_space<smem>>
    %1116 = vector.broadcast %1115 : f32 to vector<8x16xf32>
    %1117 = arith.mulf %1116, %1110 : vector<8x16xf32>
    %1118 = arith.addf %1108, %1117 : vector<8x16xf32>
    %c7_241 = arith.constant 7 : index
    %c1_242 = arith.constant 1 : index
    %c1_243 = arith.constant 1 : index
    %1119 = vector.load %arg8[%c7_241, %c1_242, %c1_243] : memref<8x10x18xf32, #tpu.memory_space<vmem>>, vector<1x8x16xf32>
    %1120 = vector.shape_cast %1119 : vector<1x8x16xf32> to vector<8x16xf32>
    %c230 = arith.constant 230 : index
    %1121 = memref.load %arg2[%c230] : memref<298xf32, #tpu.memory_space<smem>>
    %1122 = vector.broadcast %1121 : f32 to vector<8x16xf32>
    %1123 = arith.mulf %1122, %1120 : vector<8x16xf32>
    %1124 = arith.addf %1114, %1123 : vector<8x16xf32>
    %c231 = arith.constant 231 : index
    %1125 = memref.load %arg2[%c231] : memref<298xf32, #tpu.memory_space<smem>>
    %1126 = vector.broadcast %1125 : f32 to vector<8x16xf32>
    %1127 = arith.mulf %1126, %1120 : vector<8x16xf32>
    %1128 = arith.addf %1118, %1127 : vector<8x16xf32>
    %c0_244 = arith.constant 0 : index
    %c1_245 = arith.constant 1 : index
    %c2_246 = arith.constant 2 : index
    %1129 = vector.load %arg8[%c0_244, %c1_245, %c2_246] : memref<8x10x18xf32, #tpu.memory_space<vmem>>, vector<1x8x16xf32>
    %1130 = vector.shape_cast %1129 : vector<1x8x16xf32> to vector<8x16xf32>
    %c232 = arith.constant 232 : index
    %1131 = memref.load %arg2[%c232] : memref<298xf32, #tpu.memory_space<smem>>
    %1132 = vector.broadcast %1131 : f32 to vector<8x16xf32>
    %1133 = arith.mulf %1132, %1130 : vector<8x16xf32>
    %1134 = arith.addf %1124, %1133 : vector<8x16xf32>
    %c233 = arith.constant 233 : index
    %1135 = memref.load %arg2[%c233] : memref<298xf32, #tpu.memory_space<smem>>
    %1136 = vector.broadcast %1135 : f32 to vector<8x16xf32>
    %1137 = arith.mulf %1136, %1130 : vector<8x16xf32>
    %1138 = arith.addf %1128, %1137 : vector<8x16xf32>
    %c1_247 = arith.constant 1 : index
    %c1_248 = arith.constant 1 : index
    %c2_249 = arith.constant 2 : index
    %1139 = vector.load %arg8[%c1_247, %c1_248, %c2_249] : memref<8x10x18xf32, #tpu.memory_space<vmem>>, vector<1x8x16xf32>
    %1140 = vector.shape_cast %1139 : vector<1x8x16xf32> to vector<8x16xf32>
    %c234 = arith.constant 234 : index
    %1141 = memref.load %arg2[%c234] : memref<298xf32, #tpu.memory_space<smem>>
    %1142 = vector.broadcast %1141 : f32 to vector<8x16xf32>
    %1143 = arith.mulf %1142, %1140 : vector<8x16xf32>
    %1144 = arith.addf %1134, %1143 : vector<8x16xf32>
    %c235 = arith.constant 235 : index
    %1145 = memref.load %arg2[%c235] : memref<298xf32, #tpu.memory_space<smem>>
    %1146 = vector.broadcast %1145 : f32 to vector<8x16xf32>
    %1147 = arith.mulf %1146, %1140 : vector<8x16xf32>
    %1148 = arith.addf %1138, %1147 : vector<8x16xf32>
    %c2_250 = arith.constant 2 : index
    %c1_251 = arith.constant 1 : index
    %c2_252 = arith.constant 2 : index
    %1149 = vector.load %arg8[%c2_250, %c1_251, %c2_252] : memref<8x10x18xf32, #tpu.memory_space<vmem>>, vector<1x8x16xf32>
    %1150 = vector.shape_cast %1149 : vector<1x8x16xf32> to vector<8x16xf32>
    %c236 = arith.constant 236 : index
    %1151 = memref.load %arg2[%c236] : memref<298xf32, #tpu.memory_space<smem>>
    %1152 = vector.broadcast %1151 : f32 to vector<8x16xf32>
    %1153 = arith.mulf %1152, %1150 : vector<8x16xf32>
    %1154 = arith.addf %1144, %1153 : vector<8x16xf32>
    %c237 = arith.constant 237 : index
    %1155 = memref.load %arg2[%c237] : memref<298xf32, #tpu.memory_space<smem>>
    %1156 = vector.broadcast %1155 : f32 to vector<8x16xf32>
    %1157 = arith.mulf %1156, %1150 : vector<8x16xf32>
    %1158 = arith.addf %1148, %1157 : vector<8x16xf32>
    %c3_253 = arith.constant 3 : index
    %c1_254 = arith.constant 1 : index
    %c2_255 = arith.constant 2 : index
    %1159 = vector.load %arg8[%c3_253, %c1_254, %c2_255] : memref<8x10x18xf32, #tpu.memory_space<vmem>>, vector<1x8x16xf32>
    %1160 = vector.shape_cast %1159 : vector<1x8x16xf32> to vector<8x16xf32>
    %c238 = arith.constant 238 : index
    %1161 = memref.load %arg2[%c238] : memref<298xf32, #tpu.memory_space<smem>>
    %1162 = vector.broadcast %1161 : f32 to vector<8x16xf32>
    %1163 = arith.mulf %1162, %1160 : vector<8x16xf32>
    %1164 = arith.addf %1154, %1163 : vector<8x16xf32>
    %c239 = arith.constant 239 : index
    %1165 = memref.load %arg2[%c239] : memref<298xf32, #tpu.memory_space<smem>>
    %1166 = vector.broadcast %1165 : f32 to vector<8x16xf32>
    %1167 = arith.mulf %1166, %1160 : vector<8x16xf32>
    %1168 = arith.addf %1158, %1167 : vector<8x16xf32>
    %c4_256 = arith.constant 4 : index
    %c1_257 = arith.constant 1 : index
    %c2_258 = arith.constant 2 : index
    %1169 = vector.load %arg8[%c4_256, %c1_257, %c2_258] : memref<8x10x18xf32, #tpu.memory_space<vmem>>, vector<1x8x16xf32>
    %1170 = vector.shape_cast %1169 : vector<1x8x16xf32> to vector<8x16xf32>
    %c240 = arith.constant 240 : index
    %1171 = memref.load %arg2[%c240] : memref<298xf32, #tpu.memory_space<smem>>
    %1172 = vector.broadcast %1171 : f32 to vector<8x16xf32>
    %1173 = arith.mulf %1172, %1170 : vector<8x16xf32>
    %1174 = arith.addf %1164, %1173 : vector<8x16xf32>
    %c241 = arith.constant 241 : index
    %1175 = memref.load %arg2[%c241] : memref<298xf32, #tpu.memory_space<smem>>
    %1176 = vector.broadcast %1175 : f32 to vector<8x16xf32>
    %1177 = arith.mulf %1176, %1170 : vector<8x16xf32>
    %1178 = arith.addf %1168, %1177 : vector<8x16xf32>
    %c5_259 = arith.constant 5 : index
    %c1_260 = arith.constant 1 : index
    %c2_261 = arith.constant 2 : index
    %1179 = vector.load %arg8[%c5_259, %c1_260, %c2_261] : memref<8x10x18xf32, #tpu.memory_space<vmem>>, vector<1x8x16xf32>
    %1180 = vector.shape_cast %1179 : vector<1x8x16xf32> to vector<8x16xf32>
    %c242 = arith.constant 242 : index
    %1181 = memref.load %arg2[%c242] : memref<298xf32, #tpu.memory_space<smem>>
    %1182 = vector.broadcast %1181 : f32 to vector<8x16xf32>
    %1183 = arith.mulf %1182, %1180 : vector<8x16xf32>
    %1184 = arith.addf %1174, %1183 : vector<8x16xf32>
    %c243 = arith.constant 243 : index
    %1185 = memref.load %arg2[%c243] : memref<298xf32, #tpu.memory_space<smem>>
    %1186 = vector.broadcast %1185 : f32 to vector<8x16xf32>
    %1187 = arith.mulf %1186, %1180 : vector<8x16xf32>
    %1188 = arith.addf %1178, %1187 : vector<8x16xf32>
    %c6_262 = arith.constant 6 : index
    %c1_263 = arith.constant 1 : index
    %c2_264 = arith.constant 2 : index
    %1189 = vector.load %arg8[%c6_262, %c1_263, %c2_264] : memref<8x10x18xf32, #tpu.memory_space<vmem>>, vector<1x8x16xf32>
    %1190 = vector.shape_cast %1189 : vector<1x8x16xf32> to vector<8x16xf32>
    %c244 = arith.constant 244 : index
    %1191 = memref.load %arg2[%c244] : memref<298xf32, #tpu.memory_space<smem>>
    %1192 = vector.broadcast %1191 : f32 to vector<8x16xf32>
    %1193 = arith.mulf %1192, %1190 : vector<8x16xf32>
    %1194 = arith.addf %1184, %1193 : vector<8x16xf32>
    %c245 = arith.constant 245 : index
    %1195 = memref.load %arg2[%c245] : memref<298xf32, #tpu.memory_space<smem>>
    %1196 = vector.broadcast %1195 : f32 to vector<8x16xf32>
    %1197 = arith.mulf %1196, %1190 : vector<8x16xf32>
    %1198 = arith.addf %1188, %1197 : vector<8x16xf32>
    %c7_265 = arith.constant 7 : index
    %c1_266 = arith.constant 1 : index
    %c2_267 = arith.constant 2 : index
    %1199 = vector.load %arg8[%c7_265, %c1_266, %c2_267] : memref<8x10x18xf32, #tpu.memory_space<vmem>>, vector<1x8x16xf32>
    %1200 = vector.shape_cast %1199 : vector<1x8x16xf32> to vector<8x16xf32>
    %c246 = arith.constant 246 : index
    %1201 = memref.load %arg2[%c246] : memref<298xf32, #tpu.memory_space<smem>>
    %1202 = vector.broadcast %1201 : f32 to vector<8x16xf32>
    %1203 = arith.mulf %1202, %1200 : vector<8x16xf32>
    %1204 = arith.addf %1194, %1203 : vector<8x16xf32>
    %c247 = arith.constant 247 : index
    %1205 = memref.load %arg2[%c247] : memref<298xf32, #tpu.memory_space<smem>>
    %1206 = vector.broadcast %1205 : f32 to vector<8x16xf32>
    %1207 = arith.mulf %1206, %1200 : vector<8x16xf32>
    %1208 = arith.addf %1198, %1207 : vector<8x16xf32>
    %c0_268 = arith.constant 0 : index
    %c2_269 = arith.constant 2 : index
    %c0_270 = arith.constant 0 : index
    %1209 = vector.load %arg8[%c0_268, %c2_269, %c0_270] : memref<8x10x18xf32, #tpu.memory_space<vmem>>, vector<1x8x16xf32>
    %1210 = vector.shape_cast %1209 : vector<1x8x16xf32> to vector<8x16xf32>
    %c248 = arith.constant 248 : index
    %1211 = memref.load %arg2[%c248] : memref<298xf32, #tpu.memory_space<smem>>
    %1212 = vector.broadcast %1211 : f32 to vector<8x16xf32>
    %1213 = arith.mulf %1212, %1210 : vector<8x16xf32>
    %1214 = arith.addf %1204, %1213 : vector<8x16xf32>
    %c249 = arith.constant 249 : index
    %1215 = memref.load %arg2[%c249] : memref<298xf32, #tpu.memory_space<smem>>
    %1216 = vector.broadcast %1215 : f32 to vector<8x16xf32>
    %1217 = arith.mulf %1216, %1210 : vector<8x16xf32>
    %1218 = arith.addf %1208, %1217 : vector<8x16xf32>
    %c1_271 = arith.constant 1 : index
    %c2_272 = arith.constant 2 : index
    %c0_273 = arith.constant 0 : index
    %1219 = vector.load %arg8[%c1_271, %c2_272, %c0_273] : memref<8x10x18xf32, #tpu.memory_space<vmem>>, vector<1x8x16xf32>
    %1220 = vector.shape_cast %1219 : vector<1x8x16xf32> to vector<8x16xf32>
    %c250 = arith.constant 250 : index
    %1221 = memref.load %arg2[%c250] : memref<298xf32, #tpu.memory_space<smem>>
    %1222 = vector.broadcast %1221 : f32 to vector<8x16xf32>
    %1223 = arith.mulf %1222, %1220 : vector<8x16xf32>
    %1224 = arith.addf %1214, %1223 : vector<8x16xf32>
    %c251 = arith.constant 251 : index
    %1225 = memref.load %arg2[%c251] : memref<298xf32, #tpu.memory_space<smem>>
    %1226 = vector.broadcast %1225 : f32 to vector<8x16xf32>
    %1227 = arith.mulf %1226, %1220 : vector<8x16xf32>
    %1228 = arith.addf %1218, %1227 : vector<8x16xf32>
    %c2_274 = arith.constant 2 : index
    %c2_275 = arith.constant 2 : index
    %c0_276 = arith.constant 0 : index
    %1229 = vector.load %arg8[%c2_274, %c2_275, %c0_276] : memref<8x10x18xf32, #tpu.memory_space<vmem>>, vector<1x8x16xf32>
    %1230 = vector.shape_cast %1229 : vector<1x8x16xf32> to vector<8x16xf32>
    %c252 = arith.constant 252 : index
    %1231 = memref.load %arg2[%c252] : memref<298xf32, #tpu.memory_space<smem>>
    %1232 = vector.broadcast %1231 : f32 to vector<8x16xf32>
    %1233 = arith.mulf %1232, %1230 : vector<8x16xf32>
    %1234 = arith.addf %1224, %1233 : vector<8x16xf32>
    %c253 = arith.constant 253 : index
    %1235 = memref.load %arg2[%c253] : memref<298xf32, #tpu.memory_space<smem>>
    %1236 = vector.broadcast %1235 : f32 to vector<8x16xf32>
    %1237 = arith.mulf %1236, %1230 : vector<8x16xf32>
    %1238 = arith.addf %1228, %1237 : vector<8x16xf32>
    %c3_277 = arith.constant 3 : index
    %c2_278 = arith.constant 2 : index
    %c0_279 = arith.constant 0 : index
    %1239 = vector.load %arg8[%c3_277, %c2_278, %c0_279] : memref<8x10x18xf32, #tpu.memory_space<vmem>>, vector<1x8x16xf32>
    %1240 = vector.shape_cast %1239 : vector<1x8x16xf32> to vector<8x16xf32>
    %c254 = arith.constant 254 : index
    %1241 = memref.load %arg2[%c254] : memref<298xf32, #tpu.memory_space<smem>>
    %1242 = vector.broadcast %1241 : f32 to vector<8x16xf32>
    %1243 = arith.mulf %1242, %1240 : vector<8x16xf32>
    %1244 = arith.addf %1234, %1243 : vector<8x16xf32>
    %c255 = arith.constant 255 : index
    %1245 = memref.load %arg2[%c255] : memref<298xf32, #tpu.memory_space<smem>>
    %1246 = vector.broadcast %1245 : f32 to vector<8x16xf32>
    %1247 = arith.mulf %1246, %1240 : vector<8x16xf32>
    %1248 = arith.addf %1238, %1247 : vector<8x16xf32>
    %c4_280 = arith.constant 4 : index
    %c2_281 = arith.constant 2 : index
    %c0_282 = arith.constant 0 : index
    %1249 = vector.load %arg8[%c4_280, %c2_281, %c0_282] : memref<8x10x18xf32, #tpu.memory_space<vmem>>, vector<1x8x16xf32>
    %1250 = vector.shape_cast %1249 : vector<1x8x16xf32> to vector<8x16xf32>
    %c256 = arith.constant 256 : index
    %1251 = memref.load %arg2[%c256] : memref<298xf32, #tpu.memory_space<smem>>
    %1252 = vector.broadcast %1251 : f32 to vector<8x16xf32>
    %1253 = arith.mulf %1252, %1250 : vector<8x16xf32>
    %1254 = arith.addf %1244, %1253 : vector<8x16xf32>
    %c257 = arith.constant 257 : index
    %1255 = memref.load %arg2[%c257] : memref<298xf32, #tpu.memory_space<smem>>
    %1256 = vector.broadcast %1255 : f32 to vector<8x16xf32>
    %1257 = arith.mulf %1256, %1250 : vector<8x16xf32>
    %1258 = arith.addf %1248, %1257 : vector<8x16xf32>
    %c5_283 = arith.constant 5 : index
    %c2_284 = arith.constant 2 : index
    %c0_285 = arith.constant 0 : index
    %1259 = vector.load %arg8[%c5_283, %c2_284, %c0_285] : memref<8x10x18xf32, #tpu.memory_space<vmem>>, vector<1x8x16xf32>
    %1260 = vector.shape_cast %1259 : vector<1x8x16xf32> to vector<8x16xf32>
    %c258 = arith.constant 258 : index
    %1261 = memref.load %arg2[%c258] : memref<298xf32, #tpu.memory_space<smem>>
    %1262 = vector.broadcast %1261 : f32 to vector<8x16xf32>
    %1263 = arith.mulf %1262, %1260 : vector<8x16xf32>
    %1264 = arith.addf %1254, %1263 : vector<8x16xf32>
    %c259 = arith.constant 259 : index
    %1265 = memref.load %arg2[%c259] : memref<298xf32, #tpu.memory_space<smem>>
    %1266 = vector.broadcast %1265 : f32 to vector<8x16xf32>
    %1267 = arith.mulf %1266, %1260 : vector<8x16xf32>
    %1268 = arith.addf %1258, %1267 : vector<8x16xf32>
    %c6_286 = arith.constant 6 : index
    %c2_287 = arith.constant 2 : index
    %c0_288 = arith.constant 0 : index
    %1269 = vector.load %arg8[%c6_286, %c2_287, %c0_288] : memref<8x10x18xf32, #tpu.memory_space<vmem>>, vector<1x8x16xf32>
    %1270 = vector.shape_cast %1269 : vector<1x8x16xf32> to vector<8x16xf32>
    %c260 = arith.constant 260 : index
    %1271 = memref.load %arg2[%c260] : memref<298xf32, #tpu.memory_space<smem>>
    %1272 = vector.broadcast %1271 : f32 to vector<8x16xf32>
    %1273 = arith.mulf %1272, %1270 : vector<8x16xf32>
    %1274 = arith.addf %1264, %1273 : vector<8x16xf32>
    %c261 = arith.constant 261 : index
    %1275 = memref.load %arg2[%c261] : memref<298xf32, #tpu.memory_space<smem>>
    %1276 = vector.broadcast %1275 : f32 to vector<8x16xf32>
    %1277 = arith.mulf %1276, %1270 : vector<8x16xf32>
    %1278 = arith.addf %1268, %1277 : vector<8x16xf32>
    %c7_289 = arith.constant 7 : index
    %c2_290 = arith.constant 2 : index
    %c0_291 = arith.constant 0 : index
    %1279 = vector.load %arg8[%c7_289, %c2_290, %c0_291] : memref<8x10x18xf32, #tpu.memory_space<vmem>>, vector<1x8x16xf32>
    %1280 = vector.shape_cast %1279 : vector<1x8x16xf32> to vector<8x16xf32>
    %c262 = arith.constant 262 : index
    %1281 = memref.load %arg2[%c262] : memref<298xf32, #tpu.memory_space<smem>>
    %1282 = vector.broadcast %1281 : f32 to vector<8x16xf32>
    %1283 = arith.mulf %1282, %1280 : vector<8x16xf32>
    %1284 = arith.addf %1274, %1283 : vector<8x16xf32>
    %c263 = arith.constant 263 : index
    %1285 = memref.load %arg2[%c263] : memref<298xf32, #tpu.memory_space<smem>>
    %1286 = vector.broadcast %1285 : f32 to vector<8x16xf32>
    %1287 = arith.mulf %1286, %1280 : vector<8x16xf32>
    %1288 = arith.addf %1278, %1287 : vector<8x16xf32>
    %c0_292 = arith.constant 0 : index
    %c2_293 = arith.constant 2 : index
    %c1_294 = arith.constant 1 : index
    %1289 = vector.load %arg8[%c0_292, %c2_293, %c1_294] : memref<8x10x18xf32, #tpu.memory_space<vmem>>, vector<1x8x16xf32>
    %1290 = vector.shape_cast %1289 : vector<1x8x16xf32> to vector<8x16xf32>
    %c264 = arith.constant 264 : index
    %1291 = memref.load %arg2[%c264] : memref<298xf32, #tpu.memory_space<smem>>
    %1292 = vector.broadcast %1291 : f32 to vector<8x16xf32>
    %1293 = arith.mulf %1292, %1290 : vector<8x16xf32>
    %1294 = arith.addf %1284, %1293 : vector<8x16xf32>
    %c265 = arith.constant 265 : index
    %1295 = memref.load %arg2[%c265] : memref<298xf32, #tpu.memory_space<smem>>
    %1296 = vector.broadcast %1295 : f32 to vector<8x16xf32>
    %1297 = arith.mulf %1296, %1290 : vector<8x16xf32>
    %1298 = arith.addf %1288, %1297 : vector<8x16xf32>
    %c1_295 = arith.constant 1 : index
    %c2_296 = arith.constant 2 : index
    %c1_297 = arith.constant 1 : index
    %1299 = vector.load %arg8[%c1_295, %c2_296, %c1_297] : memref<8x10x18xf32, #tpu.memory_space<vmem>>, vector<1x8x16xf32>
    %1300 = vector.shape_cast %1299 : vector<1x8x16xf32> to vector<8x16xf32>
    %c266 = arith.constant 266 : index
    %1301 = memref.load %arg2[%c266] : memref<298xf32, #tpu.memory_space<smem>>
    %1302 = vector.broadcast %1301 : f32 to vector<8x16xf32>
    %1303 = arith.mulf %1302, %1300 : vector<8x16xf32>
    %1304 = arith.addf %1294, %1303 : vector<8x16xf32>
    %c267 = arith.constant 267 : index
    %1305 = memref.load %arg2[%c267] : memref<298xf32, #tpu.memory_space<smem>>
    %1306 = vector.broadcast %1305 : f32 to vector<8x16xf32>
    %1307 = arith.mulf %1306, %1300 : vector<8x16xf32>
    %1308 = arith.addf %1298, %1307 : vector<8x16xf32>
    %c2_298 = arith.constant 2 : index
    %c2_299 = arith.constant 2 : index
    %c1_300 = arith.constant 1 : index
    %1309 = vector.load %arg8[%c2_298, %c2_299, %c1_300] : memref<8x10x18xf32, #tpu.memory_space<vmem>>, vector<1x8x16xf32>
    %1310 = vector.shape_cast %1309 : vector<1x8x16xf32> to vector<8x16xf32>
    %c268 = arith.constant 268 : index
    %1311 = memref.load %arg2[%c268] : memref<298xf32, #tpu.memory_space<smem>>
    %1312 = vector.broadcast %1311 : f32 to vector<8x16xf32>
    %1313 = arith.mulf %1312, %1310 : vector<8x16xf32>
    %1314 = arith.addf %1304, %1313 : vector<8x16xf32>
    %c269 = arith.constant 269 : index
    %1315 = memref.load %arg2[%c269] : memref<298xf32, #tpu.memory_space<smem>>
    %1316 = vector.broadcast %1315 : f32 to vector<8x16xf32>
    %1317 = arith.mulf %1316, %1310 : vector<8x16xf32>
    %1318 = arith.addf %1308, %1317 : vector<8x16xf32>
    %c3_301 = arith.constant 3 : index
    %c2_302 = arith.constant 2 : index
    %c1_303 = arith.constant 1 : index
    %1319 = vector.load %arg8[%c3_301, %c2_302, %c1_303] : memref<8x10x18xf32, #tpu.memory_space<vmem>>, vector<1x8x16xf32>
    %1320 = vector.shape_cast %1319 : vector<1x8x16xf32> to vector<8x16xf32>
    %c270 = arith.constant 270 : index
    %1321 = memref.load %arg2[%c270] : memref<298xf32, #tpu.memory_space<smem>>
    %1322 = vector.broadcast %1321 : f32 to vector<8x16xf32>
    %1323 = arith.mulf %1322, %1320 : vector<8x16xf32>
    %1324 = arith.addf %1314, %1323 : vector<8x16xf32>
    %c271 = arith.constant 271 : index
    %1325 = memref.load %arg2[%c271] : memref<298xf32, #tpu.memory_space<smem>>
    %1326 = vector.broadcast %1325 : f32 to vector<8x16xf32>
    %1327 = arith.mulf %1326, %1320 : vector<8x16xf32>
    %1328 = arith.addf %1318, %1327 : vector<8x16xf32>
    %c4_304 = arith.constant 4 : index
    %c2_305 = arith.constant 2 : index
    %c1_306 = arith.constant 1 : index
    %1329 = vector.load %arg8[%c4_304, %c2_305, %c1_306] : memref<8x10x18xf32, #tpu.memory_space<vmem>>, vector<1x8x16xf32>
    %1330 = vector.shape_cast %1329 : vector<1x8x16xf32> to vector<8x16xf32>
    %c272 = arith.constant 272 : index
    %1331 = memref.load %arg2[%c272] : memref<298xf32, #tpu.memory_space<smem>>
    %1332 = vector.broadcast %1331 : f32 to vector<8x16xf32>
    %1333 = arith.mulf %1332, %1330 : vector<8x16xf32>
    %1334 = arith.addf %1324, %1333 : vector<8x16xf32>
    %c273 = arith.constant 273 : index
    %1335 = memref.load %arg2[%c273] : memref<298xf32, #tpu.memory_space<smem>>
    %1336 = vector.broadcast %1335 : f32 to vector<8x16xf32>
    %1337 = arith.mulf %1336, %1330 : vector<8x16xf32>
    %1338 = arith.addf %1328, %1337 : vector<8x16xf32>
    %c5_307 = arith.constant 5 : index
    %c2_308 = arith.constant 2 : index
    %c1_309 = arith.constant 1 : index
    %1339 = vector.load %arg8[%c5_307, %c2_308, %c1_309] : memref<8x10x18xf32, #tpu.memory_space<vmem>>, vector<1x8x16xf32>
    %1340 = vector.shape_cast %1339 : vector<1x8x16xf32> to vector<8x16xf32>
    %c274 = arith.constant 274 : index
    %1341 = memref.load %arg2[%c274] : memref<298xf32, #tpu.memory_space<smem>>
    %1342 = vector.broadcast %1341 : f32 to vector<8x16xf32>
    %1343 = arith.mulf %1342, %1340 : vector<8x16xf32>
    %1344 = arith.addf %1334, %1343 : vector<8x16xf32>
    %c275 = arith.constant 275 : index
    %1345 = memref.load %arg2[%c275] : memref<298xf32, #tpu.memory_space<smem>>
    %1346 = vector.broadcast %1345 : f32 to vector<8x16xf32>
    %1347 = arith.mulf %1346, %1340 : vector<8x16xf32>
    %1348 = arith.addf %1338, %1347 : vector<8x16xf32>
    %c6_310 = arith.constant 6 : index
    %c2_311 = arith.constant 2 : index
    %c1_312 = arith.constant 1 : index
    %1349 = vector.load %arg8[%c6_310, %c2_311, %c1_312] : memref<8x10x18xf32, #tpu.memory_space<vmem>>, vector<1x8x16xf32>
    %1350 = vector.shape_cast %1349 : vector<1x8x16xf32> to vector<8x16xf32>
    %c276 = arith.constant 276 : index
    %1351 = memref.load %arg2[%c276] : memref<298xf32, #tpu.memory_space<smem>>
    %1352 = vector.broadcast %1351 : f32 to vector<8x16xf32>
    %1353 = arith.mulf %1352, %1350 : vector<8x16xf32>
    %1354 = arith.addf %1344, %1353 : vector<8x16xf32>
    %c277 = arith.constant 277 : index
    %1355 = memref.load %arg2[%c277] : memref<298xf32, #tpu.memory_space<smem>>
    %1356 = vector.broadcast %1355 : f32 to vector<8x16xf32>
    %1357 = arith.mulf %1356, %1350 : vector<8x16xf32>
    %1358 = arith.addf %1348, %1357 : vector<8x16xf32>
    %c7_313 = arith.constant 7 : index
    %c2_314 = arith.constant 2 : index
    %c1_315 = arith.constant 1 : index
    %1359 = vector.load %arg8[%c7_313, %c2_314, %c1_315] : memref<8x10x18xf32, #tpu.memory_space<vmem>>, vector<1x8x16xf32>
    %1360 = vector.shape_cast %1359 : vector<1x8x16xf32> to vector<8x16xf32>
    %c278 = arith.constant 278 : index
    %1361 = memref.load %arg2[%c278] : memref<298xf32, #tpu.memory_space<smem>>
    %1362 = vector.broadcast %1361 : f32 to vector<8x16xf32>
    %1363 = arith.mulf %1362, %1360 : vector<8x16xf32>
    %1364 = arith.addf %1354, %1363 : vector<8x16xf32>
    %c279 = arith.constant 279 : index
    %1365 = memref.load %arg2[%c279] : memref<298xf32, #tpu.memory_space<smem>>
    %1366 = vector.broadcast %1365 : f32 to vector<8x16xf32>
    %1367 = arith.mulf %1366, %1360 : vector<8x16xf32>
    %1368 = arith.addf %1358, %1367 : vector<8x16xf32>
    %c0_316 = arith.constant 0 : index
    %c2_317 = arith.constant 2 : index
    %c2_318 = arith.constant 2 : index
    %1369 = vector.load %arg8[%c0_316, %c2_317, %c2_318] : memref<8x10x18xf32, #tpu.memory_space<vmem>>, vector<1x8x16xf32>
    %1370 = vector.shape_cast %1369 : vector<1x8x16xf32> to vector<8x16xf32>
    %c280 = arith.constant 280 : index
    %1371 = memref.load %arg2[%c280] : memref<298xf32, #tpu.memory_space<smem>>
    %1372 = vector.broadcast %1371 : f32 to vector<8x16xf32>
    %1373 = arith.mulf %1372, %1370 : vector<8x16xf32>
    %1374 = arith.addf %1364, %1373 : vector<8x16xf32>
    %c281 = arith.constant 281 : index
    %1375 = memref.load %arg2[%c281] : memref<298xf32, #tpu.memory_space<smem>>
    %1376 = vector.broadcast %1375 : f32 to vector<8x16xf32>
    %1377 = arith.mulf %1376, %1370 : vector<8x16xf32>
    %1378 = arith.addf %1368, %1377 : vector<8x16xf32>
    %c1_319 = arith.constant 1 : index
    %c2_320 = arith.constant 2 : index
    %c2_321 = arith.constant 2 : index
    %1379 = vector.load %arg8[%c1_319, %c2_320, %c2_321] : memref<8x10x18xf32, #tpu.memory_space<vmem>>, vector<1x8x16xf32>
    %1380 = vector.shape_cast %1379 : vector<1x8x16xf32> to vector<8x16xf32>
    %c282 = arith.constant 282 : index
    %1381 = memref.load %arg2[%c282] : memref<298xf32, #tpu.memory_space<smem>>
    %1382 = vector.broadcast %1381 : f32 to vector<8x16xf32>
    %1383 = arith.mulf %1382, %1380 : vector<8x16xf32>
    %1384 = arith.addf %1374, %1383 : vector<8x16xf32>
    %c283 = arith.constant 283 : index
    %1385 = memref.load %arg2[%c283] : memref<298xf32, #tpu.memory_space<smem>>
    %1386 = vector.broadcast %1385 : f32 to vector<8x16xf32>
    %1387 = arith.mulf %1386, %1380 : vector<8x16xf32>
    %1388 = arith.addf %1378, %1387 : vector<8x16xf32>
    %c2_322 = arith.constant 2 : index
    %c2_323 = arith.constant 2 : index
    %c2_324 = arith.constant 2 : index
    %1389 = vector.load %arg8[%c2_322, %c2_323, %c2_324] : memref<8x10x18xf32, #tpu.memory_space<vmem>>, vector<1x8x16xf32>
    %1390 = vector.shape_cast %1389 : vector<1x8x16xf32> to vector<8x16xf32>
    %c284 = arith.constant 284 : index
    %1391 = memref.load %arg2[%c284] : memref<298xf32, #tpu.memory_space<smem>>
    %1392 = vector.broadcast %1391 : f32 to vector<8x16xf32>
    %1393 = arith.mulf %1392, %1390 : vector<8x16xf32>
    %1394 = arith.addf %1384, %1393 : vector<8x16xf32>
    %c285 = arith.constant 285 : index
    %1395 = memref.load %arg2[%c285] : memref<298xf32, #tpu.memory_space<smem>>
    %1396 = vector.broadcast %1395 : f32 to vector<8x16xf32>
    %1397 = arith.mulf %1396, %1390 : vector<8x16xf32>
    %1398 = arith.addf %1388, %1397 : vector<8x16xf32>
    %c3_325 = arith.constant 3 : index
    %c2_326 = arith.constant 2 : index
    %c2_327 = arith.constant 2 : index
    %1399 = vector.load %arg8[%c3_325, %c2_326, %c2_327] : memref<8x10x18xf32, #tpu.memory_space<vmem>>, vector<1x8x16xf32>
    %1400 = vector.shape_cast %1399 : vector<1x8x16xf32> to vector<8x16xf32>
    %c286 = arith.constant 286 : index
    %1401 = memref.load %arg2[%c286] : memref<298xf32, #tpu.memory_space<smem>>
    %1402 = vector.broadcast %1401 : f32 to vector<8x16xf32>
    %1403 = arith.mulf %1402, %1400 : vector<8x16xf32>
    %1404 = arith.addf %1394, %1403 : vector<8x16xf32>
    %c287 = arith.constant 287 : index
    %1405 = memref.load %arg2[%c287] : memref<298xf32, #tpu.memory_space<smem>>
    %1406 = vector.broadcast %1405 : f32 to vector<8x16xf32>
    %1407 = arith.mulf %1406, %1400 : vector<8x16xf32>
    %1408 = arith.addf %1398, %1407 : vector<8x16xf32>
    %c4_328 = arith.constant 4 : index
    %c2_329 = arith.constant 2 : index
    %c2_330 = arith.constant 2 : index
    %1409 = vector.load %arg8[%c4_328, %c2_329, %c2_330] : memref<8x10x18xf32, #tpu.memory_space<vmem>>, vector<1x8x16xf32>
    %1410 = vector.shape_cast %1409 : vector<1x8x16xf32> to vector<8x16xf32>
    %c288 = arith.constant 288 : index
    %1411 = memref.load %arg2[%c288] : memref<298xf32, #tpu.memory_space<smem>>
    %1412 = vector.broadcast %1411 : f32 to vector<8x16xf32>
    %1413 = arith.mulf %1412, %1410 : vector<8x16xf32>
    %1414 = arith.addf %1404, %1413 : vector<8x16xf32>
    %c289 = arith.constant 289 : index
    %1415 = memref.load %arg2[%c289] : memref<298xf32, #tpu.memory_space<smem>>
    %1416 = vector.broadcast %1415 : f32 to vector<8x16xf32>
    %1417 = arith.mulf %1416, %1410 : vector<8x16xf32>
    %1418 = arith.addf %1408, %1417 : vector<8x16xf32>
    %c5_331 = arith.constant 5 : index
    %c2_332 = arith.constant 2 : index
    %c2_333 = arith.constant 2 : index
    %1419 = vector.load %arg8[%c5_331, %c2_332, %c2_333] : memref<8x10x18xf32, #tpu.memory_space<vmem>>, vector<1x8x16xf32>
    %1420 = vector.shape_cast %1419 : vector<1x8x16xf32> to vector<8x16xf32>
    %c290 = arith.constant 290 : index
    %1421 = memref.load %arg2[%c290] : memref<298xf32, #tpu.memory_space<smem>>
    %1422 = vector.broadcast %1421 : f32 to vector<8x16xf32>
    %1423 = arith.mulf %1422, %1420 : vector<8x16xf32>
    %1424 = arith.addf %1414, %1423 : vector<8x16xf32>
    %c291 = arith.constant 291 : index
    %1425 = memref.load %arg2[%c291] : memref<298xf32, #tpu.memory_space<smem>>
    %1426 = vector.broadcast %1425 : f32 to vector<8x16xf32>
    %1427 = arith.mulf %1426, %1420 : vector<8x16xf32>
    %1428 = arith.addf %1418, %1427 : vector<8x16xf32>
    %c6_334 = arith.constant 6 : index
    %c2_335 = arith.constant 2 : index
    %c2_336 = arith.constant 2 : index
    %1429 = vector.load %arg8[%c6_334, %c2_335, %c2_336] : memref<8x10x18xf32, #tpu.memory_space<vmem>>, vector<1x8x16xf32>
    %1430 = vector.shape_cast %1429 : vector<1x8x16xf32> to vector<8x16xf32>
    %c292 = arith.constant 292 : index
    %1431 = memref.load %arg2[%c292] : memref<298xf32, #tpu.memory_space<smem>>
    %1432 = vector.broadcast %1431 : f32 to vector<8x16xf32>
    %1433 = arith.mulf %1432, %1430 : vector<8x16xf32>
    %1434 = arith.addf %1424, %1433 : vector<8x16xf32>
    %c293 = arith.constant 293 : index
    %1435 = memref.load %arg2[%c293] : memref<298xf32, #tpu.memory_space<smem>>
    %1436 = vector.broadcast %1435 : f32 to vector<8x16xf32>
    %1437 = arith.mulf %1436, %1430 : vector<8x16xf32>
    %1438 = arith.addf %1428, %1437 : vector<8x16xf32>
    %c7_337 = arith.constant 7 : index
    %c2_338 = arith.constant 2 : index
    %c2_339 = arith.constant 2 : index
    %1439 = vector.load %arg8[%c7_337, %c2_338, %c2_339] : memref<8x10x18xf32, #tpu.memory_space<vmem>>, vector<1x8x16xf32>
    %1440 = vector.shape_cast %1439 : vector<1x8x16xf32> to vector<8x16xf32>
    %c294 = arith.constant 294 : index
    %1441 = memref.load %arg2[%c294] : memref<298xf32, #tpu.memory_space<smem>>
    %1442 = vector.broadcast %1441 : f32 to vector<8x16xf32>
    %1443 = arith.mulf %1442, %1440 : vector<8x16xf32>
    %1444 = arith.addf %1434, %1443 : vector<8x16xf32>
    %c295 = arith.constant 295 : index
    %1445 = memref.load %arg2[%c295] : memref<298xf32, #tpu.memory_space<smem>>
    %1446 = vector.broadcast %1445 : f32 to vector<8x16xf32>
    %1447 = arith.mulf %1446, %1440 : vector<8x16xf32>
    %1448 = arith.addf %1438, %1447 : vector<8x16xf32>
    %c296 = arith.constant 296 : index
    %1449 = memref.load %arg2[%c296] : memref<298xf32, #tpu.memory_space<smem>>
    %1450 = vector.broadcast %1449 : f32 to vector<8x16xf32>
    %1451 = arith.addf %1444, %1450 : vector<8x16xf32>
    %c0_340 = arith.constant 0 : index
    %c0_341 = arith.constant 0 : index
    %c0_342 = arith.constant 0 : index
    %c0_343 = arith.constant 0 : index
    %1452 = vector.load %arg6[%c0_340, %c0_341, %c0_342, %c0_343] : memref<1x2x8x16xf32, #tpu.memory_space<vmem>>, vector<1x1x8x16xf32>
    %1453 = vector.shape_cast %1452 : vector<1x1x8x16xf32> to vector<8x16xf32>
    %1454 = vector.shape_cast %1451 : vector<8x16xf32> to vector<1x1x8x16xf32>
    tpu.vector_store %arg6[%c0_340, %c0_341, %c0_342, %c0_343], %1454 {strides = array<i32>} : memref<1x2x8x16xf32, #tpu.memory_space<vmem>>, vector<1x1x8x16xf32>,
    %c297 = arith.constant 297 : index
    %1455 = memref.load %arg2[%c297] : memref<298xf32, #tpu.memory_space<smem>>
    %1456 = vector.broadcast %1455 : f32 to vector<8x16xf32>
    %1457 = arith.addf %1448, %1456 : vector<8x16xf32>
    %c0_344 = arith.constant 0 : index
    %c1_345 = arith.constant 1 : index
    %c0_346 = arith.constant 0 : index
    %c0_347 = arith.constant 0 : index
    %1458 = vector.load %arg6[%c0_344, %c1_345, %c0_346, %c0_347] : memref<1x2x8x16xf32, #tpu.memory_space<vmem>>, vector<1x1x8x16xf32>
    %1459 = vector.shape_cast %1458 : vector<1x1x8x16xf32> to vector<8x16xf32>
    %1460 = vector.shape_cast %1457 : vector<8x16xf32> to vector<1x1x8x16xf32>
    tpu.vector_store %arg6[%c0_344, %c1_345, %c0_346, %c0_347], %1460 {strides = array<i32>} : memref<1x2x8x16xf32, #tpu.memory_space<vmem>>, vector<1x1x8x16xf32>,
    return
  }
  func.func @transform_0(%arg0: i32, %arg1: i32) -> i32 {
    %c0_i32 = arith.constant 0 : i32
    %c0_i32_0 = arith.constant 0 : i32
    return %c0_i32 : i32
  }
  func.func @transform_1(%arg0: i32, %arg1: i32) -> (i32, i32, i32, i32) {
    %c0_i32 = arith.constant 0 : i32
    %c0_i32_0 = arith.constant 0 : i32
    %c0_i32_1 = arith.constant 0 : i32
    return %arg0, %c0_i32, %arg1, %c0_i32_0 : i32, i32, i32, i32
  }
  func.func @transform_2(%arg0: i32, %arg1: i32) -> (i32, i32, i32, i32) {
    %c1_i32 = arith.constant 1 : i32
    %0 = arith.muli %arg1, %c1_i32 : i32
    %c1_i32_0 = arith.constant 1 : i32
    %1 = arith.subi %0, %c1_i32_0 : i32
    %c0_i32 = arith.constant 0 : i32
    %2 = arith.maxsi %1, %c0_i32 : i32
    %c0_i32_1 = arith.constant 0 : i32
    %c0_i32_2 = arith.constant 0 : i32
    %c0_i32_3 = arith.constant 0 : i32
    return %arg0, %c0_i32_1, %2, %c0_i32_2 : i32, i32, i32, i32
  }
  func.func @transform_3(%arg0: i32, %arg1: i32) -> (i32, i32, i32, i32) {
    %c1_i32 = arith.constant 1 : i32
    %0 = arith.addi %arg1, %c1_i32 : i32
    %c1_i32_0 = arith.constant 1 : i32
    %1 = arith.muli %0, %c1_i32_0 : i32
    %c1_i32_1 = arith.constant 1 : i32
    %2 = arith.minsi %1, %c1_i32_1 : i32
    %c0_i32 = arith.constant 0 : i32
    %c0_i32_2 = arith.constant 0 : i32
    %c0_i32_3 = arith.constant 0 : i32
    return %arg0, %c0_i32, %2, %c0_i32_2 : i32, i32, i32, i32
  }
  func.func @transform_4(%arg0: i32, %arg1: i32) -> (i32, i32, i32, i32) {
    %c0_i32 = arith.constant 0 : i32
    %c0_i32_0 = arith.constant 0 : i32
    %c0_i32_1 = arith.constant 0 : i32
    return %arg0, %c0_i32, %arg1, %c0_i32_0 : i32, i32, i32, i32
  }
}

</mosaic_0001>

<llo_original>
// kernel: tpu_custom_call.1
$region0: #{tpu_custom_call.1}
  #allocation0 [shape = 'u32[]', space=smem, size = 0x4, offset = 0x4, fixed_abs, tag = 'smem constant byte address 0x4 - core index']
  #allocation1 [shape = 'u32[144,128]{1,0:T(1,128)}', space=vmem, size = 0x12000, scoped, tag = 'internal scratch']
  #allocation2 [shape = 'f32[2,12,18]{2,1,0:T(8,128)}', space=vmem, size = 0x4000, scoped, tag = 'scratch operand']
  #allocation3 [shape = 'f32[8,10,18]{2,1,0:T(8,128)}', space=vmem, size = 0x10000, scoped, tag = 'scratch operand']
  %s0 = inlined_call_operand.hbm [shape: f32[298], index: 0, kind: input, shape index: {}]
  %s1 = inlined_call_operand.hbm [shape: f32[2,2,16,16], index: 1, kind: input, shape index: {}]
  %s2 = inlined_call_operand.hbm [shape: f32[2,2,16,16], index: 2, kind: input, shape index: {}]
  %s3 = inlined_call_operand.hbm [shape: f32[2,2,16,16], index: 3, kind: input, shape index: {}]
  %s4 = inlined_call_operand.hbm [shape: f32[2,2,16,16], index: 4, kind: output, shape index: {}]
  %s5 = sld [smem:[#allocation0]]
  $region81: #{tpu_custom_call.1} parent=0
    _
  %s7 = ssub.s32 1, %s5
  %s8 = scalar_select 0, %s7, %s5
  $region1: #{tpu_custom_call.1} parent=0
    #allocation4 [shape = 'u8[1536]{0}', space=smem, size = 0x600, scoped, tag = 'input window, operand 0, single buffered']
    #allocation5 [shape = 's32[2]{0}', space=sflag, size = 0x8, scoped, tag = 'scoped memory for tpu_custom_call.1']
    #allocation6 [shape = 's32[2]{0}', space=sflag, size = 0x8, scoped, tag = 'scoped memory for tpu_custom_call.1']
    #allocation7 [shape = 's32[2]{0}', space=sflag, size = 0x8, scoped, tag = 'scoped memory for tpu_custom_call.1']
    #allocation8 [shape = 'u8[16384]{0}', space=vmem, size = 0x4000, scoped, tag = 'input window, operand 1']
    #allocation9 [shape = 'u8[16384]{0}', space=vmem, size = 0x4000, scoped, tag = 'input window, operand 2']
    #allocation10 [shape = 's32[2]{0}', space=sflag, size = 0x8, scoped, tag = 'scoped memory for tpu_custom_call.1']
    #allocation11 [shape = 'u8[16384]{0}', space=vmem, size = 0x4000, scoped, tag = 'input window, operand 3']
    #allocation12 [shape = 'u8[16384]{0}', space=vmem, size = 0x4000, scoped, tag = 'output window, operand 0']
    %9 = vsyncpa [#allocation7], 0
    %10 = vsyncpa [#allocation5], 0
    %s11 = scalar_lea.sflag [#allocation5], 1
    %12 = vsyncpa %s11, 0
    %13 = vsyncpa [#allocation10], 0
    %s14 = scalar_lea.sflag [#allocation10], 1
    %15 = vsyncpa %s14, 0
    %16 = vsyncpa [#allocation6], 0
    %s17 = scalar_lea.sflag [#allocation6], 1
    %18 = vsyncpa %s17, 0
    loop: start=0, step=1, limit=6
    $region2: #{tpu_custom_call.1} parent=1 // loop_pre_header
      _
    $region3: #{tpu_custom_call.1} parent=1 // loop_header
      %s20 = sphi 0, %s24
      %p21 = scmp.ge.s32.totalorder %s20, 6
      %s27 = sphi 0, %s39
      %s28 = sphi 0, %s35
      %s29 = sphi 0, %s27
      %s30 = sphi 0, %s28
      %s31 = sphi 0, %s29
      %s32 = sphi 0, %s30
      %s40 = sphi 0, %s40
      %s42 = sphi 0, %s40
      %s43 = sphi 0, %s42
      %s57 = sphi 0, %s43
      %s65 = sphi 0, %s67
      %s68 = sphi 0, %s65
      %s69 = sphi 0, %s68
      %s85 = sphi 0, %s69
      %s99 = sphi 0, %s101
      %s102 = sphi 0, %s99
      %s103 = sphi 0, %s102
      %s119 = sphi 0, %s103
      %s133 = sphi 0, %s135
      %s136 = sphi 0, %s133
      %s137 = sphi 0, %s136
      %s153 = sphi 0, %s137
      %s161 = sphi 0, %s163
      %s164 = sphi 0, %s161
      %s165 = sphi 0, %s164
      %s181 = sphi 0, %s165
    $region4: #{tpu_custom_call.1} parent=1 // loop_header_branch
      %23 = sbr.rel (%p21) target = $region8
    $region5: #{tpu_custom_call.1} parent=1 // loop_body
      %s25 = ssub.s32 %s20, 1
      %s26 = ssub.s32 %s20, 2
      %s33 = sadd.s32 1, %s28
      %p34 = scmp.ge.s32.totalorder %s33, 2
      %s35 = scalar_select %p34, 0, %s33
      %s36 = sadd.s32 1, %s27
      %s37 = scalar_select %p34, %s36, %s27
      %p38 = scmp.ge.s32.totalorder %s37, 2
      %s39 = scalar_select %p38, 0, %s37
      %s41 = sadd.s32 %s40, 1
      %p44 = scmp.eq.s32.totalorder %s20, 3
      %p45 = scmp.ne.s32.totalorder %s40, %s42
      %p46 = scmp.eq.s32.totalorder %s20, 0
      %p47 = por %p45, %p46
      %p48 = scmp.ne.s32.totalorder %s40, %s42
      %p49 = scmp.eq.s32.totalorder %s25, 3
      %p50 = por %p48, %p49
      %p51 = scmp.ne.s32.totalorder %s42, %s43
      %p52 = scmp.eq.s32.totalorder %s25, 0
      %p53 = por %p51, %p52
      %p54 = scmp.ne.s32.totalorder %s42, %s43
      %p55 = scmp.eq.s32.totalorder %s26, 3
      %p56 = por %p54, %p55
      %p58 = scmp.ne.s32.totalorder %s43, %s57
      %p59 = scmp.eq.s32.totalorder %s26, 0
      %p60 = por %p58, %p59
      %s61 = ssub.s32 %s27, %s39
      %s62 = ssub.s32 %s28, %s35
      %s63 = sor.u32 %s61, %s62
      %p64 = scmp.eq.s32.totalorder %s63, 0
      %s66 = sadd.s32 %s65, 1
      %s67 = scalar_select %p64, %s65, %s66
      %p70 = pneg %p64
      %p71 = scmp.eq.s32.totalorder %s20, 3
      %p72 = por %p70, %p71
      %p73 = scmp.ne.s32.totalorder %s65, %s68
      %p74 = scmp.eq.s32.totalorder %s20, 0
      %p75 = por %p73, %p74
      %p76 = scmp.ne.s32.totalorder %s65, %s68
      %p77 = scmp.eq.s32.totalorder %s25, 3
      %p78 = por %p76, %p77
      %p79 = scmp.ne.s32.totalorder %s68, %s69
      %p80 = scmp.eq.s32.totalorder %s25, 0
      %p81 = por %p79, %p80
      %p82 = scmp.ne.s32.totalorder %s68, %s69
      %p83 = scmp.eq.s32.totalorder %s26, 3
      %p84 = por %p82, %p83
      %p86 = scmp.ne.s32.totalorder %s69, %s85
      %p87 = scmp.eq.s32.totalorder %s26, 0
      %p88 = por %p86, %p87
      %s89 = ssub.s32 %s28, 1
      %p90 = scmp.gt.s32.totalorder %s89, 0
      %s91 = scalar_select %p90, %s89, 0
      %s92 = ssub.s32 %s35, 1
      %p93 = scmp.gt.s32.totalorder %s92, 0
      %s94 = scalar_select %p93, %s92, 0
      %s95 = ssub.s32 %s27, %s39
      %s96 = ssub.s32 %s91, %s94
      %s97 = sor.u32 %s95, %s96
      %p98 = scmp.eq.s32.totalorder %s97, 0
      %s100 = sadd.s32 %s99, 1
      %s101 = scalar_select %p98, %s99, %s100
      %p104 = pneg %p98
      %p105 = scmp.eq.s32.totalorder %s20, 3
      %p106 = por %p104, %p105
      %p107 = scmp.ne.s32.totalorder %s99, %s102
      %p108 = scmp.eq.s32.totalorder %s20, 0
      %p109 = por %p107, %p108
      %p110 = scmp.ne.s32.totalorder %s99, %s102
      %p111 = scmp.eq.s32.totalorder %s25, 3
      %p112 = por %p110, %p111
      %p113 = scmp.ne.s32.totalorder %s102, %s103
      %p114 = scmp.eq.s32.totalorder %s25, 0
      %p115 = por %p113, %p114
      %p116 = scmp.ne.s32.totalorder %s102, %s103
      %p117 = scmp.eq.s32.totalorder %s26, 3
      %p118 = por %p116, %p117
      %p120 = scmp.ne.s32.totalorder %s103, %s119
      %p121 = scmp.eq.s32.totalorder %s26, 0
      %p122 = por %p120, %p121
      %s123 = sadd.s32 %s28, 1
      %p124 = scmp.lt.s32.totalorder %s123, 1
      %s125 = scalar_select %p124, %s123, 1
      %s126 = sadd.s32 %s35, 1
      %p127 = scmp.lt.s32.totalorder %s126, 1
      %s128 = scalar_select %p127, %s126, 1
      %s129 = ssub.s32 %s27, %s39
      %s130 = ssub.s32 %s125, %s128
      %s131 = sor.u32 %s129, %s130
      %p132 = scmp.eq.s32.totalorder %s131, 0
      %s134 = sadd.s32 %s133, 1
      %s135 = scalar_select %p132, %s133, %s134
      %p138 = pneg %p132
      %p139 = scmp.eq.s32.totalorder %s20, 3
      %p140 = por %p138, %p139
      %p141 = scmp.ne.s32.totalorder %s133, %s136
      %p142 = scmp.eq.s32.totalorder %s20, 0
      %p143 = por %p141, %p142
      %p144 = scmp.ne.s32.totalorder %s133, %s136
      %p145 = scmp.eq.s32.totalorder %s25, 3
      %p146 = por %p144, %p145
      %p147 = scmp.ne.s32.totalorder %s136, %s137
      %p148 = scmp.eq.s32.totalorder %s25, 0
      %p149 = por %p147, %p148
      %p150 = scmp.ne.s32.totalorder %s136, %s137
      %p151 = scmp.eq.s32.totalorder %s26, 3
      %p152 = por %p150, %p151
      %p154 = scmp.ne.s32.totalorder %s137, %s153
      %p155 = scmp.eq.s32.totalorder %s26, 0
      %p156 = por %p154, %p155
      %s157 = ssub.s32 %s27, %s39
      %s158 = ssub.s32 %s28, %s35
      %s159 = sor.u32 %s157, %s158
      %p160 = scmp.eq.s32.totalorder %s159, 0
      %s162 = sadd.s32 %s161, 1
      %s163 = scalar_select %p160, %s161, %s162
      %p166 = pneg %p160
      %p167 = scmp.eq.s32.totalorder %s20, 3
      %p168 = por %p166, %p167
      %p169 = scmp.ne.s32.totalorder %s161, %s164
      %p170 = scmp.eq.s32.totalorder %s20, 0
      %p171 = por %p169, %p170
      %p172 = scmp.ne.s32.totalorder %s161, %s164
      %p173 = scmp.eq.s32.totalorder %s25, 3
      %p174 = por %p172, %p173
      %p175 = scmp.ne.s32.totalorder %s164, %s165
      %p176 = scmp.eq.s32.totalorder %s25, 0
      %p177 = por %p175, %p176
      %p178 = scmp.ne.s32.totalorder %s164, %s165
      %p179 = scmp.eq.s32.totalorder %s26, 3
      %p180 = por %p178, %p179
      %p182 = scmp.ne.s32.totalorder %s165, %s181
      %p183 = scmp.eq.s32.totalorder %s26, 0
      %p184 = por %p182, %p183
      %p185 = scmp.le.s32.totalorder 1, %s20
      %p186 = scmp.lt.s32.totalorder %s20, 5
      %p187 = pnand %p185, %p186
      %p188 = pneg %p187
      // Predicated region
      $region9: #{tpu_custom_call.1} parent=5 // pred_check
        _
      $region10: #{tpu_custom_call.1} parent=5 // pred_check_branch
        %190 = sbr.rel (%p187) target = $region12
      $region11: #{tpu_custom_call.1} parent=5 // pred_region
        %s191 = ssub.s32 %s20, 1
        // Predicated region
        $region13: #{tpu_custom_call.1} parent=11 // pred_check
          %p192 = pneg %p53
        $region14: #{tpu_custom_call.1} parent=11 // pred_check_branch
          %194 = sbr.rel (%p192) target = $region16
        $region15: #{tpu_custom_call.1} parent=11 // pred_region
          %s196 = ssub.s32 48, 48
          %197 = vsyncadd [#allocation7], %s196
          %200 = dma.hbm_to_smem %s0, 48, [#allocation4], [#allocation7]
        $region16: #{tpu_custom_call.1} parent=11 // pred_fallthru
          _
      $region12: #{tpu_custom_call.1} parent=5 // pred_fallthru
        _
      %p201 = scmp.lt.s32.totalorder %s20, 4
      // Predicated region
      $region17: #{tpu_custom_call.1} parent=5 // pred_check
        %p202 = pneg %p201
      $region18: #{tpu_custom_call.1} parent=5 // pred_check_branch
        %204 = sbr.rel (%p202) target = $region20
      $region19: #{tpu_custom_call.1} parent=5 // pred_region
        // Predicated region
        $region21: #{tpu_custom_call.1} parent=19 // pred_check
          %p205 = pneg %p75
        $region22: #{tpu_custom_call.1} parent=19 // pred_check_branch
          %207 = sbr.rel (%p205) target = $region24
        $region23: #{tpu_custom_call.1} parent=19 // pred_region
          %s208 = sand.u32 %s65, 1
          %s209 = scalar_lea.sflag [#allocation5], %s208
          %s210 = sand.u32 %s65, 1
          %s211 = smul.addr %s210, 16
          %s212 = scalar_lea.vmem [#allocation8], %s211
          %s214 = ssub.s32 256, 256
          %215 = vsyncadd %s209, %s214
          %s216 = smul.addr %s27, 4
          %s217 = sadd.s32 %s28, %s216
          %s218 = smul.addr %s217, 128
          %s219 = scalar_lea.hbm %s1, %s218
          %s220 = sshll.u32 %s212, 4
          %s221 = int_to_ptr.vmem [resolvable:$true] %s220
          %226 = dma.hbm_to_vmem [thread:$0]  %s219, 256, %s221, %s209, 256, 128, 8
        $region24: #{tpu_custom_call.1} parent=19 // pred_fallthru
          _
        // Predicated region
        $region25: #{tpu_custom_call.1} parent=19 // pred_check
          %p227 = pneg %p109
        $region26: #{tpu_custom_call.1} parent=19 // pred_check_branch
          %229 = sbr.rel (%p227) target = $region28
        $region27: #{tpu_custom_call.1} parent=19 // pred_region
          %s230 = sand.u32 %s20, 1
          %s231 = scalar_lea.sflag [#allocation10], %s230
          %s232 = sand.u32 %s99, 1
          %s233 = smul.addr %s232, 16
          %s234 = scalar_lea.vmem [#allocation9], %s233
          %s235 = ssub.s32 %s28, 1
          %p236 = scmp.gt.s32.totalorder %s235, 0
          %s237 = scalar_select %p236, %s235, 0
          %s239 = ssub.s32 256, 256
          %240 = vsyncadd %s231, %s239
          %s241 = smul.addr %s27, 4
          %s242 = sadd.s32 %s237, %s241
          %s243 = smul.addr %s242, 128
          %s244 = scalar_lea.hbm %s2, %s243
          %s245 = sshll.u32 %s234, 4
          %s246 = int_to_ptr.vmem [resolvable:$true] %s245
          %251 = dma.hbm_to_vmem [thread:$0]  %s244, 256, %s246, %s231, 256, 128, 8
        $region28: #{tpu_custom_call.1} parent=19 // pred_fallthru
          _
        // Predicated region
        $region29: #{tpu_custom_call.1} parent=19 // pred_check
          %p252 = pneg %p143
        $region30: #{tpu_custom_call.1} parent=19 // pred_check_branch
          %254 = sbr.rel (%p252) target = $region32
        $region31: #{tpu_custom_call.1} parent=19 // pred_region
          %s255 = sand.u32 %s20, 1
          %s256 = scalar_lea.sflag [#allocation10], %s255
          %s257 = sand.u32 %s133, 1
          %s258 = smul.addr %s257, 16
          %s259 = scalar_lea.vmem [#allocation11], %s258
          %s260 = sadd.s32 %s28, 1
          %p261 = scmp.lt.s32.totalorder %s260, 1
          %s262 = scalar_select %p261, %s260, 1
          %s264 = ssub.s32 256, 256
          %265 = vsyncadd %s256, %s264
          %s266 = smul.addr %s27, 4
          %s267 = sadd.s32 %s262, %s266
          %s268 = smul.addr %s267, 128
          %s269 = scalar_lea.hbm %s3, %s268
          %s270 = sshll.u32 %s259, 4
          %s271 = int_to_ptr.vmem [resolvable:$true] %s270
          %276 = dma.hbm_to_vmem [thread:$0]  %s269, 256, %s271, %s256, 256, 128, 8
        $region32: #{tpu_custom_call.1} parent=19 // pred_fallthru
          _
      $region20: #{tpu_custom_call.1} parent=5 // pred_fallthru
        _
      %p277 = scmp.le.s32.totalorder 1, %s20
      %p278 = scmp.lt.s32.totalorder %s20, 5
      %p279 = pnand %p277, %p278
      %p280 = pneg %p279
      // Predicated region
      $region33: #{tpu_custom_call.1} parent=5 // pred_check
        _
      $region34: #{tpu_custom_call.1} parent=5 // pred_check_branch
        %282 = sbr.rel (%p279) target = $region36
      $region35: #{tpu_custom_call.1} parent=5 // pred_region
        %s283 = ssub.s32 %s20, 1
        // Predicated region
        $region37: #{tpu_custom_call.1} parent=35 // pred_check
          %p284 = pneg %p53
        $region38: #{tpu_custom_call.1} parent=35 // pred_check_branch
          %286 = sbr.rel (%p284) target = $region40
        $region39: #{tpu_custom_call.1} parent=35 // pred_region
          %287 = dma.done [#allocation7], 48
        $region40: #{tpu_custom_call.1} parent=35 // pred_fallthru
          _
        %s288 = sand.u32 %s68, 1
        %s289 = scalar_lea.sflag [#allocation5], %s288
        %s290 = sand.u32 %s68, 1
        %s291 = smul.addr %s290, 16
        %s292 = scalar_lea.vmem [#allocation8], %s291
        // Predicated region
        $region41: #{tpu_custom_call.1} parent=35 // pred_check
          %p293 = pneg %p81
        $region42: #{tpu_custom_call.1} parent=35 // pred_check_branch
          %295 = sbr.rel (%p293) target = $region44
        $region43: #{tpu_custom_call.1} parent=35 // pred_region
          %296 = dma.done %s289, 256
        $region44: #{tpu_custom_call.1} parent=35 // pred_fallthru
          _
        %s297 = sand.u32 %s25, 1
        %s298 = scalar_lea.sflag [#allocation10], %s297
        %s299 = sand.u32 %s102, 1
        %s300 = smul.addr %s299, 16
        %s301 = scalar_lea.vmem [#allocation9], %s300
        // Predicated region
        $region45: #{tpu_custom_call.1} parent=35 // pred_check
          %p302 = pneg %p115
        $region46: #{tpu_custom_call.1} parent=35 // pred_check_branch
          %304 = sbr.rel (%p302) target = $region48
        $region47: #{tpu_custom_call.1} parent=35 // pred_region
          %305 = dma.done %s298, 256
        $region48: #{tpu_custom_call.1} parent=35 // pred_fallthru
          _
        %s306 = sand.u32 %s25, 1
        %s307 = scalar_lea.sflag [#allocation10], %s306
        %s308 = sand.u32 %s136, 1
        %s309 = smul.addr %s308, 16
        %s310 = scalar_lea.vmem [#allocation11], %s309
        // Predicated region
        $region49: #{tpu_custom_call.1} parent=35 // pred_check
          %p311 = pneg %p149
        $region50: #{tpu_custom_call.1} parent=35 // pred_check_branch
          %313 = sbr.rel (%p311) target = $region52
        $region51: #{tpu_custom_call.1} parent=35 // pred_region
          %314 = dma.done %s307, 256
        $region52: #{tpu_custom_call.1} parent=35 // pred_fallthru
          _
        %315 = sfence
        %p316 = pneg %p53
        %p317 = pneg %p50
        %s318 = sand.u32 %s68, 1
        %s319 = scalar_lea.sflag [#allocation5], %s318
        %s320 = sand.u32 %s68, 1
        %s321 = smul.addr %s320, 16
        %s322 = scalar_lea.vmem [#allocation8], %s321
        %p323 = pneg %p81
        %p324 = pneg %p78
        %s325 = sand.u32 %s25, 1
        %s326 = scalar_lea.sflag [#allocation10], %s325
        %s327 = sand.u32 %s102, 1
        %s328 = smul.addr %s327, 16
        %s329 = scalar_lea.vmem [#allocation9], %s328
        %p330 = pneg %p115
        %p331 = pneg %p112
        %s332 = sand.u32 %s25, 1
        %s333 = scalar_lea.sflag [#allocation10], %s332
        %s334 = sand.u32 %s136, 1
        %s335 = smul.addr %s334, 16
        %s336 = scalar_lea.vmem [#allocation11], %s335
        %p337 = pneg %p149
        %p338 = pneg %p146
        %p339 = pneg %p177
        %p340 = pneg %p174
        %s341 = sand.u32 %s164, 1
        %s342 = scalar_lea.sflag [#allocation6], %s341
        %s343 = sand.u32 %s164, 1
        %s344 = smul.addr %s343, 16
        %s345 = scalar_lea.vmem [#allocation12], %s344
        %s346 = ssub.s32 %s30, 1
        %p347 = scmp.gt.s32.totalorder %s346, 0
        %s348 = scalar_select %p347, %s346, 0
        %s349 = sadd.s32 %s30, 1
        %p350 = scmp.lt.s32.totalorder %s349, 1
        %s351 = scalar_select %p350, %s349, 1
        %vm352 = vcmask 146432
        %353 = vst.msk [vmem:[#allocation2] sm:$0xff] %vm352, 0.0
        %vm354 = vcmask 142336
        %355 = vst.msk [vmem:[#allocation2 + $0x8] sm:$0xf] %vm354, 0.0
        %356 = vst.msk [vmem:[#allocation2 + $0x10] sm:$0xff] %vm352, 0.0
        %357 = vst.msk [vmem:[#allocation2 + $0x18] sm:$0xf] %vm354, 0.0
        %v358 = vld [vmem:[%s292] sm:$0xff]
        %v359 = vld [vmem:[%s292 + $0x8] sm:$0xff]
        %362 = vrot.lane.b32.xlu0 %v358, 1
        %v363 = vpop.permute.xlu0 %362
        %364 = vrot.lane.b32.xlu0 %v359, 1
        %v365 = vpop.permute.xlu0 %364
        %vm368 = vcmask 138248
        %369 = vst.msk [vmem:[#allocation2 + $0x2] sm:$0xff] %vm368, %v363
        %370 = vst.msk [vmem:[#allocation2 + $0x12] sm:$0xff] %vm368, %v365
        %p371 = scmp.gt.s32.totalorder %s30, 0
        // Predicated region
        $region53: #{tpu_custom_call.1} parent=35 // pred_check
          %p372 = pneg %p371
        $region54: #{tpu_custom_call.1} parent=35 // pred_check_branch
          %374 = sbr.rel (%p372) target = $region56
        $region55: #{tpu_custom_call.1} parent=35 // pred_region
          %v375 = vld [vmem:[%s301 + $0x6] sm:$0x3]
          %v376 = vld [vmem:[%s301 + $0xe] sm:$0x3]
          %379 = vrot.lane.b32.xlu0 %v375, 1
          %v380 = vpop.permute.xlu0 %379
          %381 = vrot.lane.b32.xlu0 %v376, 1
          %v382 = vpop.permute.xlu0 %381
          %vm385 = vcmask 132104
          %386 = vst.msk [vmem:[#allocation2] sm:$0x3] %vm385, %v380
          %387 = vst.msk [vmem:[#allocation2 + $0x10] sm:$0x3] %vm385, %v382
        $region56: #{tpu_custom_call.1} parent=35 // pred_fallthru
          _
        %p388 = scmp.lt.s32.totalorder %s30, 1
        // Predicated region
        $region57: #{tpu_custom_call.1} parent=35 // pred_check
          %p389 = pneg %p388
        $region58: #{tpu_custom_call.1} parent=35 // pred_check_branch
          %391 = sbr.rel (%p389) target = $region60
        $region59: #{tpu_custom_call.1} parent=35 // pred_region
          %v392 = vld [vmem:[%s310] sm:$0x3]
          %v393 = vld [vmem:[%s310 + $0x8] sm:$0x3]
          %396 = vrot.lane.b32.xlu0 %v392, 1
          %v397 = vpop.permute.xlu0 %396
          %398 = vrot.lane.b32.xlu0 %v393, 1
          %v399 = vpop.permute.xlu0 %398
          %vm402 = vcmask 132104
          %403 = vst.msk [vmem:[#allocation2 + $0xa] sm:$0x3] %vm402, %v397
          %404 = vst.msk [vmem:[#allocation2 + $0x1a] sm:$0x3] %vm402, %v399
        $region60: #{tpu_custom_call.1} parent=35 // pred_fallthru
          _
        %v405 = vld [vmem:[#allocation2] sm:$0xff]
        %v406 = vld [vmem:[#allocation2 + $0x8] sm:$0x3]
        %s407 = sld [smem:[#allocation4]]
        %v408 = vstv %s407
        %v409 = vmul.f32 %v408, %v405
        %v410 = vmul.f32 %v408, %v406
        %v411 = vadd.f32 %v409, 0.0
        %v412 = vadd.f32 %v410, 0.0
        %s413 = sld [smem:[#allocation4 + $0x1]]
        %v414 = vstv %s413
        %v415 = vmul.f32 %v414, %v405
        %v416 = vmul.f32 %v414, %v406
        %v417 = vadd.f32 %v415, 0.0
        %v418 = vadd.f32 %v416, 0.0
        %s419 = sld [smem:[#allocation4 + $0x2]]
        %v420 = vstv %s419
        %v421 = vmul.f32 %v420, %v405
        %v422 = vmul.f32 %v420, %v406
        %v423 = vadd.f32 %v421, 0.0
        %v424 = vadd.f32 %v422, 0.0
        %s425 = sld [smem:[#allocation4 + $0x3]]
        %v426 = vstv %s425
        %v427 = vmul.f32 %v426, %v405
        %v428 = vmul.f32 %v426, %v406
        %v429 = vadd.f32 %v427, 0.0
        %v430 = vadd.f32 %v428, 0.0
        %s431 = sld [smem:[#allocation4 + $0x4]]
        %v432 = vstv %s431
        %v433 = vmul.f32 %v432, %v405
        %v434 = vmul.f32 %v432, %v406
        %v435 = vadd.f32 %v433, 0.0
        %v436 = vadd.f32 %v434, 0.0
        %s437 = sld [smem:[#allocation4 + $0x5]]
        %v438 = vstv %s437
        %v439 = vmul.f32 %v438, %v405
        %v440 = vmul.f32 %v438, %v406
        %v441 = vadd.f32 %v439, 0.0
        %v442 = vadd.f32 %v440, 0.0
        %s443 = sld [smem:[#allocation4 + $0x6]]
        %v444 = vstv %s443
        %v445 = vmul.f32 %v444, %v405
        %v446 = vmul.f32 %v444, %v406
        %v447 = vadd.f32 %v445, 0.0
        %v448 = vadd.f32 %v446, 0.0
        %s449 = sld [smem:[#allocation4 + $0x7]]
        %v450 = vstv %s449
        %v451 = vmul.f32 %v450, %v405
        %v452 = vmul.f32 %v450, %v406
        %v453 = vadd.f32 %v451, 0.0
        %v454 = vadd.f32 %v452, 0.0
        %s455 = scalar_lea.vmem [#allocation2], 16
        %v456 = vld [vmem:[%s455] sm:$0xff]
        %v457 = vld [vmem:[%s455 + $0x8] sm:$0x3]
        %s458 = sld [smem:[#allocation4 + $0x8]]
        %v459 = vstv %s458
        %v460 = vmul.f32 %v459, %v456
        %v461 = vmul.f32 %v459, %v457
        %v462 = vadd.f32 %v411, %v460
        %v463 = vadd.f32 %v412, %v461
        %s464 = sld [smem:[#allocation4 + $0x9]]
        %v465 = vstv %s464
        %v466 = vmul.f32 %v465, %v456
        %v467 = vmul.f32 %v465, %v457
        %v468 = vadd.f32 %v417, %v466
        %v469 = vadd.f32 %v418, %v467
        %s470 = sld [smem:[#allocation4 + $0xa]]
        %v471 = vstv %s470
        %v472 = vmul.f32 %v471, %v456
        %v473 = vmul.f32 %v471, %v457
        %v474 = vadd.f32 %v423, %v472
        %v475 = vadd.f32 %v424, %v473
        %s476 = sld [smem:[#allocation4 + $0xb]]
        %v477 = vstv %s476
        %v478 = vmul.f32 %v477, %v456
        %v479 = vmul.f32 %v477, %v457
        %v480 = vadd.f32 %v429, %v478
        %v481 = vadd.f32 %v430, %v479
        %s482 = sld [smem:[#allocation4 + $0xc]]
        %v483 = vstv %s482
        %v484 = vmul.f32 %v483, %v456
        %v485 = vmul.f32 %v483, %v457
        %v486 = vadd.f32 %v435, %v484
        %v487 = vadd.f32 %v436, %v485
        %s488 = sld [smem:[#allocation4 + $0xd]]
        %v489 = vstv %s488
        %v490 = vmul.f32 %v489, %v456
        %v491 = vmul.f32 %v489, %v457
        %v492 = vadd.f32 %v441, %v490
        %v493 = vadd.f32 %v442, %v491
        %s494 = sld [smem:[#allocation4 + $0xe]]
        %v495 = vstv %s494
        %v496 = vmul.f32 %v495, %v456
        %v497 = vmul.f32 %v495, %v457
        %v498 = vadd.f32 %v447, %v496
        %v499 = vadd.f32 %v448, %v497
        %s500 = sld [smem:[#allocation4 + $0xf]]
        %v501 = vstv %s500
        %v502 = vmul.f32 %v501, %v456
        %v503 = vmul.f32 %v501, %v457
        %v504 = vadd.f32 %v453, %v502
        %v505 = vadd.f32 %v454, %v503
        %s506 = sld [smem:[#allocation4 + $0x10]]
        %v507 = vstv %s506
        %v508 = vmul.f32 %v507, %v405
        %v509 = vmul.f32 %v507, %v406
        %512 = vrot.lane.b32.xlu0 %v508, 127
        %v513 = vpop.permute.xlu0 %512
        %514 = vrot.lane.b32.xlu0 %v509, 127
        %v515 = vpop.permute.xlu0 %514
        %v518 = vadd.f32 %v462, %v513
        %v519 = vadd.f32 %v463, %v515
        %s520 = sld [smem:[#allocation4 + $0x11]]
        %v521 = vstv %s520
        %v522 = vmul.f32 %v521, %v405
        %v523 = vmul.f32 %v521, %v406
        %526 = vrot.lane.b32.xlu0 %v522, 127
        %v527 = vpop.permute.xlu0 %526
        %528 = vrot.lane.b32.xlu0 %v523, 127
        %v529 = vpop.permute.xlu0 %528
        %v532 = vadd.f32 %v468, %v527
        %v533 = vadd.f32 %v469, %v529
        %s534 = sld [smem:[#allocation4 + $0x12]]
        %v535 = vstv %s534
        %v536 = vmul.f32 %v535, %v405
        %v537 = vmul.f32 %v535, %v406
        %540 = vrot.lane.b32.xlu0 %v536, 127
        %v541 = vpop.permute.xlu0 %540
        %542 = vrot.lane.b32.xlu0 %v537, 127
        %v543 = vpop.permute.xlu0 %542
        %v546 = vadd.f32 %v474, %v541
        %v547 = vadd.f32 %v475, %v543
        %s548 = sld [smem:[#allocation4 + $0x13]]
        %v549 = vstv %s548
        %v550 = vmul.f32 %v549, %v405
        %v551 = vmul.f32 %v549, %v406
        %554 = vrot.lane.b32.xlu0 %v550, 127
        %v555 = vpop.permute.xlu0 %554
        %556 = vrot.lane.b32.xlu0 %v551, 127
        %v557 = vpop.permute.xlu0 %556
        %v560 = vadd.f32 %v480, %v555
        %v561 = vadd.f32 %v481, %v557
        %s562 = sld [smem:[#allocation4 + $0x14]]
        %v563 = vstv %s562
        %v564 = vmul.f32 %v563, %v405
        %v565 = vmul.f32 %v563, %v406
        %568 = vrot.lane.b32.xlu0 %v564, 127
        %v569 = vpop.permute.xlu0 %568
        %570 = vrot.lane.b32.xlu0 %v565, 127
        %v571 = vpop.permute.xlu0 %570
        %v574 = vadd.f32 %v486, %v569
        %v575 = vadd.f32 %v487, %v571
        %s576 = sld [smem:[#allocation4 + $0x15]]
        %v577 = vstv %s576
        %v578 = vmul.f32 %v577, %v405
        %v579 = vmul.f32 %v577, %v406
        %582 = vrot.lane.b32.xlu0 %v578, 127
        %v583 = vpop.permute.xlu0 %582
        %584 = vrot.lane.b32.xlu0 %v579, 127
        %v585 = vpop.permute.xlu0 %584
        %v588 = vadd.f32 %v492, %v583
        %v589 = vadd.f32 %v493, %v585
        %s590 = sld [smem:[#allocation4 + $0x16]]
        %v591 = vstv %s590
        %v592 = vmul.f32 %v591, %v405
        %v593 = vmul.f32 %v591, %v406
        %596 = vrot.lane.b32.xlu0 %v592, 127
        %v597 = vpop.permute.xlu0 %596
        %598 = vrot.lane.b32.xlu0 %v593, 127
        %v599 = vpop.permute.xlu0 %598
        %v602 = vadd.f32 %v498, %v597
        %v603 = vadd.f32 %v499, %v599
        %s604 = sld [smem:[#allocation4 + $0x17]]
        %v605 = vstv %s604
        %v606 = vmul.f32 %v605, %v405
        %v607 = vmul.f32 %v605, %v406
        %610 = vrot.lane.b32.xlu0 %v606, 127
        %v611 = vpop.permute.xlu0 %610
        %612 = vrot.lane.b32.xlu0 %v607, 127
        %v613 = vpop.permute.xlu0 %612
        %v616 = vadd.f32 %v504, %v611
        %v617 = vadd.f32 %v505, %v613
        %s618 = sld [smem:[#allocation4 + $0x18]]
        %v619 = vstv %s618
        %v620 = vmul.f32 %v619, %v456
        %v621 = vmul.f32 %v619, %v457
        %624 = vrot.lane.b32.xlu0 %v620, 127
        %v625 = vpop.permute.xlu0 %624
        %626 = vrot.lane.b32.xlu0 %v621, 127
        %v627 = vpop.permute.xlu0 %626
        %v630 = vadd.f32 %v518, %v625
        %v631 = vadd.f32 %v519, %v627
        %s632 = sld [smem:[#allocation4 + $0x19]]
        %v633 = vstv %s632
        %v634 = vmul.f32 %v633, %v456
        %v635 = vmul.f32 %v633, %v457
        %638 = vrot.lane.b32.xlu0 %v634, 127
        %v639 = vpop.permute.xlu0 %638
        %640 = vrot.lane.b32.xlu0 %v635, 127
        %v641 = vpop.permute.xlu0 %640
        %v644 = vadd.f32 %v532, %v639
        %v645 = vadd.f32 %v533, %v641
        %s646 = sld [smem:[#allocation4 + $0x1a]]
        %v647 = vstv %s646
        %v648 = vmul.f32 %v647, %v456
        %v649 = vmul.f32 %v647, %v457
        %652 = vrot.lane.b32.xlu0 %v648, 127
        %v653 = vpop.permute.xlu0 %652
        %654 = vrot.lane.b32.xlu0 %v649, 127
        %v655 = vpop.permute.xlu0 %654
        %v658 = vadd.f32 %v546, %v653
        %v659 = vadd.f32 %v547, %v655
        %s660 = sld [smem:[#allocation4 + $0x1b]]
        %v661 = vstv %s660
        %v662 = vmul.f32 %v661, %v456
        %v663 = vmul.f32 %v661, %v457
        %666 = vrot.lane.b32.xlu0 %v662, 127
        %v667 = vpop.permute.xlu0 %666
        %668 = vrot.lane.b32.xlu0 %v663, 127
        %v669 = vpop.permute.xlu0 %668
        %v672 = vadd.f32 %v560, %v667
        %v673 = vadd.f32 %v561, %v669
        %s674 = sld [smem:[#allocation4 + $0x1c]]
        %v675 = vstv %s674
        %v676 = vmul.f32 %v675, %v456
        %v677 = vmul.f32 %v675, %v457
        %680 = vrot.lane.b32.xlu0 %v676, 127
        %v681 = vpop.permute.xlu0 %680
        %682 = vrot.lane.b32.xlu0 %v677, 127
        %v683 = vpop.permute.xlu0 %682
        %v686 = vadd.f32 %v574, %v681
        %v687 = vadd.f32 %v575, %v683
        %s688 = sld [smem:[#allocation4 + $0x1d]]
        %v689 = vstv %s688
        %v690 = vmul.f32 %v689, %v456
        %v691 = vmul.f32 %v689, %v457
        %694 = vrot.lane.b32.xlu0 %v690, 127
        %v695 = vpop.permute.xlu0 %694
        %696 = vrot.lane.b32.xlu0 %v691, 127
        %v697 = vpop.permute.xlu0 %696
        %v700 = vadd.f32 %v588, %v695
        %v701 = vadd.f32 %v589, %v697
        %s702 = sld [smem:[#allocation4 + $0x1e]]
        %v703 = vstv %s702
        %v704 = vmul.f32 %v703, %v456
        %v705 = vmul.f32 %v703, %v457
        %708 = vrot.lane.b32.xlu0 %v704, 127
        %v709 = vpop.permute.xlu0 %708
        %710 = vrot.lane.b32.xlu0 %v705, 127
        %v711 = vpop.permute.xlu0 %710
        %v714 = vadd.f32 %v602, %v709
        %v715 = vadd.f32 %v603, %v711
        %s716 = sld [smem:[#allocation4 + $0x1f]]
        %v717 = vstv %s716
        %v718 = vmul.f32 %v717, %v456
        %v719 = vmul.f32 %v717, %v457
        %722 = vrot.lane.b32.xlu0 %v718, 127
        %v723 = vpop.permute.xlu0 %722
        %724 = vrot.lane.b32.xlu0 %v719, 127
        %v725 = vpop.permute.xlu0 %724
        %v728 = vadd.f32 %v616, %v723
        %v729 = vadd.f32 %v617, %v725
        %s730 = sld [smem:[#allocation4 + $0x20]]
        %v731 = vstv %s730
        %v732 = vmul.f32 %v731, %v405
        %v733 = vmul.f32 %v731, %v406
        %736 = vrot.lane.b32.xlu0 %v732, 126
        %v737 = vpop.permute.xlu0 %736
        %738 = vrot.lane.b32.xlu0 %v733, 126
        %v739 = vpop.permute.xlu0 %738
        %v742 = vadd.f32 %v630, %v737
        %v743 = vadd.f32 %v631, %v739
        %s744 = sld [smem:[#allocation4 + $0x21]]
        %v745 = vstv %s744
        %v746 = vmul.f32 %v745, %v405
        %v747 = vmul.f32 %v745, %v406
        %750 = vrot.lane.b32.xlu0 %v746, 126
        %v751 = vpop.permute.xlu0 %750
        %752 = vrot.lane.b32.xlu0 %v747, 126
        %v753 = vpop.permute.xlu0 %752
        %v756 = vadd.f32 %v644, %v751
        %v757 = vadd.f32 %v645, %v753
        %s758 = sld [smem:[#allocation4 + $0x22]]
        %v759 = vstv %s758
        %v760 = vmul.f32 %v759, %v405
        %v761 = vmul.f32 %v759, %v406
        %764 = vrot.lane.b32.xlu0 %v760, 126
        %v765 = vpop.permute.xlu0 %764
        %766 = vrot.lane.b32.xlu0 %v761, 126
        %v767 = vpop.permute.xlu0 %766
        %v770 = vadd.f32 %v658, %v765
        %v771 = vadd.f32 %v659, %v767
        %s772 = sld [smem:[#allocation4 + $0x23]]
        %v773 = vstv %s772
        %v774 = vmul.f32 %v773, %v405
        %v775 = vmul.f32 %v773, %v406
        %778 = vrot.lane.b32.xlu0 %v774, 126
        %v779 = vpop.permute.xlu0 %778
        %780 = vrot.lane.b32.xlu0 %v775, 126
        %v781 = vpop.permute.xlu0 %780
        %v784 = vadd.f32 %v672, %v779
        %v785 = vadd.f32 %v673, %v781
        %s786 = sld [smem:[#allocation4 + $0x24]]
        %v787 = vstv %s786
        %v788 = vmul.f32 %v787, %v405
        %v789 = vmul.f32 %v787, %v406
        %792 = vrot.lane.b32.xlu0 %v788, 126
        %v793 = vpop.permute.xlu0 %792
        %794 = vrot.lane.b32.xlu0 %v789, 126
        %v795 = vpop.permute.xlu0 %794
        %v798 = vadd.f32 %v686, %v793
        %v799 = vadd.f32 %v687, %v795
        %s800 = sld [smem:[#allocation4 + $0x25]]
        %v801 = vstv %s800
        %v802 = vmul.f32 %v801, %v405
        %v803 = vmul.f32 %v801, %v406
        %806 = vrot.lane.b32.xlu0 %v802, 126
        %v807 = vpop.permute.xlu0 %806
        %808 = vrot.lane.b32.xlu0 %v803, 126
        %v809 = vpop.permute.xlu0 %808
        %v812 = vadd.f32 %v700, %v807
        %v813 = vadd.f32 %v701, %v809
        %s814 = sld [smem:[#allocation4 + $0x26]]
        %v815 = vstv %s814
        %v816 = vmul.f32 %v815, %v405
        %v817 = vmul.f32 %v815, %v406
        %820 = vrot.lane.b32.xlu0 %v816, 126
        %v821 = vpop.permute.xlu0 %820
        %822 = vrot.lane.b32.xlu0 %v817, 126
        %v823 = vpop.permute.xlu0 %822
        %v826 = vadd.f32 %v714, %v821
        %v827 = vadd.f32 %v715, %v823
        %s828 = sld [smem:[#allocation4 + $0x27]]
        %v829 = vstv %s828
        %v830 = vmul.f32 %v829, %v405
        %v831 = vmul.f32 %v829, %v406
        %834 = vrot.lane.b32.xlu0 %v830, 126
        %v835 = vpop.permute.xlu0 %834
        %836 = vrot.lane.b32.xlu0 %v831, 126
        %v837 = vpop.permute.xlu0 %836
        %v840 = vadd.f32 %v728, %v835
        %v841 = vadd.f32 %v729, %v837
        %s842 = sld [smem:[#allocation4 + $0x28]]
        %v843 = vstv %s842
        %v844 = vmul.f32 %v843, %v456
        %v845 = vmul.f32 %v843, %v457
        %848 = vrot.lane.b32.xlu0 %v844, 126
        %v849 = vpop.permute.xlu0 %848
        %850 = vrot.lane.b32.xlu0 %v845, 126
        %v851 = vpop.permute.xlu0 %850
        %v854 = vadd.f32 %v742, %v849
        %v855 = vadd.f32 %v743, %v851
        %s856 = sld [smem:[#allocation4 + $0x29]]
        %v857 = vstv %s856
        %v858 = vmul.f32 %v857, %v456
        %v859 = vmul.f32 %v857, %v457
        %862 = vrot.lane.b32.xlu0 %v858, 126
        %v863 = vpop.permute.xlu0 %862
        %864 = vrot.lane.b32.xlu0 %v859, 126
        %v865 = vpop.permute.xlu0 %864
        %v868 = vadd.f32 %v756, %v863
        %v869 = vadd.f32 %v757, %v865
        %s870 = sld [smem:[#allocation4 + $0x2a]]
        %v871 = vstv %s870
        %v872 = vmul.f32 %v871, %v456
        %v873 = vmul.f32 %v871, %v457
        %876 = vrot.lane.b32.xlu0 %v872, 126
        %v877 = vpop.permute.xlu0 %876
        %878 = vrot.lane.b32.xlu0 %v873, 126
        %v879 = vpop.permute.xlu0 %878
        %v882 = vadd.f32 %v770, %v877
        %v883 = vadd.f32 %v771, %v879
        %s884 = sld [smem:[#allocation4 + $0x2b]]
        %v885 = vstv %s884
        %v886 = vmul.f32 %v885, %v456
        %v887 = vmul.f32 %v885, %v457
        %890 = vrot.lane.b32.xlu0 %v886, 126
        %v891 = vpop.permute.xlu0 %890
        %892 = vrot.lane.b32.xlu0 %v887, 126
        %v893 = vpop.permute.xlu0 %892
        %v896 = vadd.f32 %v784, %v891
        %v897 = vadd.f32 %v785, %v893
        %s898 = sld [smem:[#allocation4 + $0x2c]]
        %v899 = vstv %s898
        %v900 = vmul.f32 %v899, %v456
        %v901 = vmul.f32 %v899, %v457
        %904 = vrot.lane.b32.xlu0 %v900, 126
        %v905 = vpop.permute.xlu0 %904
        %906 = vrot.lane.b32.xlu0 %v901, 126
        %v907 = vpop.permute.xlu0 %906
        %v910 = vadd.f32 %v798, %v905
        %v911 = vadd.f32 %v799, %v907
        %s912 = sld [smem:[#allocation4 + $0x2d]]
        %v913 = vstv %s912
        %v914 = vmul.f32 %v913, %v456
        %v915 = vmul.f32 %v913, %v457
        %918 = vrot.lane.b32.xlu0 %v914, 126
        %v919 = vpop.permute.xlu0 %918
        %920 = vrot.lane.b32.xlu0 %v915, 126
        %v921 = vpop.permute.xlu0 %920
        %v924 = vadd.f32 %v812, %v919
        %v925 = vadd.f32 %v813, %v921
        %s926 = sld [smem:[#allocation4 + $0x2e]]
        %v927 = vstv %s926
        %v928 = vmul.f32 %v927, %v456
        %v929 = vmul.f32 %v927, %v457
        %932 = vrot.lane.b32.xlu0 %v928, 126
        %v933 = vpop.permute.xlu0 %932
        %934 = vrot.lane.b32.xlu0 %v929, 126
        %v935 = vpop.permute.xlu0 %934
        %v938 = vadd.f32 %v826, %v933
        %v939 = vadd.f32 %v827, %v935
        %s940 = sld [smem:[#allocation4 + $0x2f]]
        %v941 = vstv %s940
        %v942 = vmul.f32 %v941, %v456
        %v943 = vmul.f32 %v941, %v457
        %946 = vrot.lane.b32.xlu0 %v942, 126
        %v947 = vpop.permute.xlu0 %946
        %948 = vrot.lane.b32.xlu0 %v943, 126
        %v949 = vpop.permute.xlu0 %948
        %v952 = vadd.f32 %v840, %v947
        %v953 = vadd.f32 %v841, %v949
        %v954 = vld [vmem:[#allocation2 + $0x1] sm:$0xff]
        %v955 = vld [vmem:[#allocation2 + $0x9] sm:$0x3]
        %s956 = sld [smem:[#allocation4 + $0x30]]
        %v957 = vstv %s956
        %v958 = vmul.f32 %v957, %v954
        %v959 = vmul.f32 %v957, %v955
        %v960 = vadd.f32 %v854, %v958
        %v961 = vadd.f32 %v855, %v959
        %s962 = sld [smem:[#allocation4 + $0x31]]
        %v963 = vstv %s962
        %v964 = vmul.f32 %v963, %v954
        %v965 = vmul.f32 %v963, %v955
        %v966 = vadd.f32 %v868, %v964
        %v967 = vadd.f32 %v869, %v965
        %s968 = sld [smem:[#allocation4 + $0x32]]
        %v969 = vstv %s968
        %v970 = vmul.f32 %v969, %v954
        %v971 = vmul.f32 %v969, %v955
        %v972 = vadd.f32 %v882, %v970
        %v973 = vadd.f32 %v883, %v971
        %s974 = sld [smem:[#allocation4 + $0x33]]
        %v975 = vstv %s974
        %v976 = vmul.f32 %v975, %v954
        %v977 = vmul.f32 %v975, %v955
        %v978 = vadd.f32 %v896, %v976
        %v979 = vadd.f32 %v897, %v977
        %s980 = sld [smem:[#allocation4 + $0x34]]
        %v981 = vstv %s980
        %v982 = vmul.f32 %v981, %v954
        %v983 = vmul.f32 %v981, %v955
        %v984 = vadd.f32 %v910, %v982
        %v985 = vadd.f32 %v911, %v983
        %s986 = sld [smem:[#allocation4 + $0x35]]
        %v987 = vstv %s986
        %v988 = vmul.f32 %v987, %v954
        %v989 = vmul.f32 %v987, %v955
        %v990 = vadd.f32 %v924, %v988
        %v991 = vadd.f32 %v925, %v989
        %s992 = sld [smem:[#allocation4 + $0x36]]
        %v993 = vstv %s992
        %v994 = vmul.f32 %v993, %v954
        %v995 = vmul.f32 %v993, %v955
        %v996 = vadd.f32 %v938, %v994
        %v997 = vadd.f32 %v939, %v995
        %s998 = sld [smem:[#allocation4 + $0x37]]
        %v999 = vstv %s998
        %v1000 = vmul.f32 %v999, %v954
        %v1001 = vmul.f32 %v999, %v955
        %v1002 = vadd.f32 %v952, %v1000
        %v1003 = vadd.f32 %v953, %v1001
        %v1004 = vld [vmem:[%s455 + $0x1] sm:$0xff]
        %v1005 = vld [vmem:[%s455 + $0x9] sm:$0x3]
        %s1006 = sld [smem:[#allocation4 + $0x38]]
        %v1007 = vstv %s1006
        %v1008 = vmul.f32 %v1007, %v1004
        %v1009 = vmul.f32 %v1007, %v1005
        %v1010 = vadd.f32 %v960, %v1008
        %v1011 = vadd.f32 %v961, %v1009
        %s1012 = sld [smem:[#allocation4 + $0x39]]
        %v1013 = vstv %s1012
        %v1014 = vmul.f32 %v1013, %v1004
        %v1015 = vmul.f32 %v1013, %v1005
        %v1016 = vadd.f32 %v966, %v1014
        %v1017 = vadd.f32 %v967, %v1015
        %s1018 = sld [smem:[#allocation4 + $0x3a]]
        %v1019 = vstv %s1018
        %v1020 = vmul.f32 %v1019, %v1004
        %v1021 = vmul.f32 %v1019, %v1005
        %v1022 = vadd.f32 %v972, %v1020
        %v1023 = vadd.f32 %v973, %v1021
        %s1024 = sld [smem:[#allocation4 + $0x3b]]
        %v1025 = vstv %s1024
        %v1026 = vmul.f32 %v1025, %v1004
        %v1027 = vmul.f32 %v1025, %v1005
        %v1028 = vadd.f32 %v978, %v1026
        %v1029 = vadd.f32 %v979, %v1027
        %s1030 = sld [smem:[#allocation4 + $0x3c]]
        %v1031 = vstv %s1030
        %v1032 = vmul.f32 %v1031, %v1004
        %v1033 = vmul.f32 %v1031, %v1005
        %v1034 = vadd.f32 %v984, %v1032
        %v1035 = vadd.f32 %v985, %v1033
        %s1036 = sld [smem:[#allocation4 + $0x3d]]
        %v1037 = vstv %s1036
        %v1038 = vmul.f32 %v1037, %v1004
        %v1039 = vmul.f32 %v1037, %v1005
        %v1040 = vadd.f32 %v990, %v1038
        %v1041 = vadd.f32 %v991, %v1039
        %s1042 = sld [smem:[#allocation4 + $0x3e]]
        %v1043 = vstv %s1042
        %v1044 = vmul.f32 %v1043, %v1004
        %v1045 = vmul.f32 %v1043, %v1005
        %v1046 = vadd.f32 %v996, %v1044
        %v1047 = vadd.f32 %v997, %v1045
        %s1048 = sld [smem:[#allocation4 + $0x3f]]
        %v1049 = vstv %s1048
        %v1050 = vmul.f32 %v1049, %v1004
        %v1051 = vmul.f32 %v1049, %v1005
        %v1052 = vadd.f32 %v1002, %v1050
        %v1053 = vadd.f32 %v1003, %v1051
        %s1054 = sld [smem:[#allocation4 + $0x40]]
        %v1055 = vstv %s1054
        %v1056 = vmul.f32 %v1055, %v954
        %v1057 = vmul.f32 %v1055, %v955
        %1060 = vrot.lane.b32.xlu0 %v1056, 127
        %v1061 = vpop.permute.xlu0 %1060
        %1062 = vrot.lane.b32.xlu0 %v1057, 127
        %v1063 = vpop.permute.xlu0 %1062
        %v1066 = vadd.f32 %v1010, %v1061
        %v1067 = vadd.f32 %v1011, %v1063
        %s1068 = sld [smem:[#allocation4 + $0x41]]
        %v1069 = vstv %s1068
        %v1070 = vmul.f32 %v1069, %v954
        %v1071 = vmul.f32 %v1069, %v955
        %1074 = vrot.lane.b32.xlu0 %v1070, 127
        %v1075 = vpop.permute.xlu0 %1074
        %1076 = vrot.lane.b32.xlu0 %v1071, 127
        %v1077 = vpop.permute.xlu0 %1076
        %v1080 = vadd.f32 %v1016, %v1075
        %v1081 = vadd.f32 %v1017, %v1077
        %s1082 = sld [smem:[#allocation4 + $0x42]]
        %v1083 = vstv %s1082
        %v1084 = vmul.f32 %v1083, %v954
        %v1085 = vmul.f32 %v1083, %v955
        %1088 = vrot.lane.b32.xlu0 %v1084, 127
        %v1089 = vpop.permute.xlu0 %1088
        %1090 = vrot.lane.b32.xlu0 %v1085, 127
        %v1091 = vpop.permute.xlu0 %1090
        %v1094 = vadd.f32 %v1022, %v1089
        %v1095 = vadd.f32 %v1023, %v1091
        %s1096 = sld [smem:[#allocation4 + $0x43]]
        %v1097 = vstv %s1096
        %v1098 = vmul.f32 %v1097, %v954
        %v1099 = vmul.f32 %v1097, %v955
        %1102 = vrot.lane.b32.xlu0 %v1098, 127
        %v1103 = vpop.permute.xlu0 %1102
        %1104 = vrot.lane.b32.xlu0 %v1099, 127
        %v1105 = vpop.permute.xlu0 %1104
        %v1108 = vadd.f32 %v1028, %v1103
        %v1109 = vadd.f32 %v1029, %v1105
        %s1110 = sld [smem:[#allocation4 + $0x44]]
        %v1111 = vstv %s1110
        %v1112 = vmul.f32 %v1111, %v954
        %v1113 = vmul.f32 %v1111, %v955
        %1116 = vrot.lane.b32.xlu0 %v1112, 127
        %v1117 = vpop.permute.xlu0 %1116
        %1118 = vrot.lane.b32.xlu0 %v1113, 127
        %v1119 = vpop.permute.xlu0 %1118
        %v1122 = vadd.f32 %v1034, %v1117
        %v1123 = vadd.f32 %v1035, %v1119
        %s1124 = sld [smem:[#allocation4 + $0x45]]
        %v1125 = vstv %s1124
        %v1126 = vmul.f32 %v1125, %v954
        %v1127 = vmul.f32 %v1125, %v955
        %1130 = vrot.lane.b32.xlu0 %v1126, 127
        %v1131 = vpop.permute.xlu0 %1130
        %1132 = vrot.lane.b32.xlu0 %v1127, 127
        %v1133 = vpop.permute.xlu0 %1132
        %v1136 = vadd.f32 %v1040, %v1131
        %v1137 = vadd.f32 %v1041, %v1133
        %s1138 = sld [smem:[#allocation4 + $0x46]]
        %v1139 = vstv %s1138
        %v1140 = vmul.f32 %v1139, %v954
        %v1141 = vmul.f32 %v1139, %v955
        %1144 = vrot.lane.b32.xlu0 %v1140, 127
        %v1145 = vpop.permute.xlu0 %1144
        %1146 = vrot.lane.b32.xlu0 %v1141, 127
        %v1147 = vpop.permute.xlu0 %1146
        %v1150 = vadd.f32 %v1046, %v1145
        %v1151 = vadd.f32 %v1047, %v1147
        %s1152 = sld [smem:[#allocation4 + $0x47]]
        %v1153 = vstv %s1152
        %v1154 = vmul.f32 %v1153, %v954
        %v1155 = vmul.f32 %v1153, %v955
        %1158 = vrot.lane.b32.xlu0 %v1154, 127
        %v1159 = vpop.permute.xlu0 %1158
        %1160 = vrot.lane.b32.xlu0 %v1155, 127
        %v1161 = vpop.permute.xlu0 %1160
        %v1164 = vadd.f32 %v1052, %v1159
        %v1165 = vadd.f32 %v1053, %v1161
        %s1166 = sld [smem:[#allocation4 + $0x48]]
        %v1167 = vstv %s1166
        %v1168 = vmul.f32 %v1167, %v1004
        %v1169 = vmul.f32 %v1167, %v1005
        %1172 = vrot.lane.b32.xlu0 %v1168, 127
        %v1173 = vpop.permute.xlu0 %1172
        %1174 = vrot.lane.b32.xlu0 %v1169, 127
        %v1175 = vpop.permute.xlu0 %1174
        %v1178 = vadd.f32 %v1066, %v1173
        %v1179 = vadd.f32 %v1067, %v1175
        %s1180 = sld [smem:[#allocation4 + $0x49]]
        %v1181 = vstv %s1180
        %v1182 = vmul.f32 %v1181, %v1004
        %v1183 = vmul.f32 %v1181, %v1005
        %1186 = vrot.lane.b32.xlu0 %v1182, 127
        %v1187 = vpop.permute.xlu0 %1186
        %1188 = vrot.lane.b32.xlu0 %v1183, 127
        %v1189 = vpop.permute.xlu0 %1188
        %v1192 = vadd.f32 %v1080, %v1187
        %v1193 = vadd.f32 %v1081, %v1189
        %s1194 = sld [smem:[#allocation4 + $0x4a]]
        %v1195 = vstv %s1194
        %v1196 = vmul.f32 %v1195, %v1004
        %v1197 = vmul.f32 %v1195, %v1005
        %1200 = vrot.lane.b32.xlu0 %v1196, 127
        %v1201 = vpop.permute.xlu0 %1200
        %1202 = vrot.lane.b32.xlu0 %v1197, 127
        %v1203 = vpop.permute.xlu0 %1202
        %v1206 = vadd.f32 %v1094, %v1201
        %v1207 = vadd.f32 %v1095, %v1203
        %s1208 = sld [smem:[#allocation4 + $0x4b]]
        %v1209 = vstv %s1208
        %v1210 = vmul.f32 %v1209, %v1004
        %v1211 = vmul.f32 %v1209, %v1005
        %1214 = vrot.lane.b32.xlu0 %v1210, 127
        %v1215 = vpop.permute.xlu0 %1214
        %1216 = vrot.lane.b32.xlu0 %v1211, 127
        %v1217 = vpop.permute.xlu0 %1216
        %v1220 = vadd.f32 %v1108, %v1215
        %v1221 = vadd.f32 %v1109, %v1217
        %s1222 = sld [smem:[#allocation4 + $0x4c]]
        %v1223 = vstv %s1222
        %v1224 = vmul.f32 %v1223, %v1004
        %v1225 = vmul.f32 %v1223, %v1005
        %1228 = vrot.lane.b32.xlu0 %v1224, 127
        %v1229 = vpop.permute.xlu0 %1228
        %1230 = vrot.lane.b32.xlu0 %v1225, 127
        %v1231 = vpop.permute.xlu0 %1230
        %v1234 = vadd.f32 %v1122, %v1229
        %v1235 = vadd.f32 %v1123, %v1231
        %s1236 = sld [smem:[#allocation4 + $0x4d]]
        %v1237 = vstv %s1236
        %v1238 = vmul.f32 %v1237, %v1004
        %v1239 = vmul.f32 %v1237, %v1005
        %1242 = vrot.lane.b32.xlu0 %v1238, 127
        %v1243 = vpop.permute.xlu0 %1242
        %1244 = vrot.lane.b32.xlu0 %v1239, 127
        %v1245 = vpop.permute.xlu0 %1244
        %v1248 = vadd.f32 %v1136, %v1243
        %v1249 = vadd.f32 %v1137, %v1245
        %s1250 = sld [smem:[#allocation4 + $0x4e]]
        %v1251 = vstv %s1250
        %v1252 = vmul.f32 %v1251, %v1004
        %v1253 = vmul.f32 %v1251, %v1005
        %1256 = vrot.lane.b32.xlu0 %v1252, 127
        %v1257 = vpop.permute.xlu0 %1256
        %1258 = vrot.lane.b32.xlu0 %v1253, 127
        %v1259 = vpop.permute.xlu0 %1258
        %v1262 = vadd.f32 %v1150, %v1257
        %v1263 = vadd.f32 %v1151, %v1259
        %s1264 = sld [smem:[#allocation4 + $0x4f]]
        %v1265 = vstv %s1264
        %v1266 = vmul.f32 %v1265, %v1004
        %v1267 = vmul.f32 %v1265, %v1005
        %1270 = vrot.lane.b32.xlu0 %v1266, 127
        %v1271 = vpop.permute.xlu0 %1270
        %1272 = vrot.lane.b32.xlu0 %v1267, 127
        %v1273 = vpop.permute.xlu0 %1272
        %v1276 = vadd.f32 %v1164, %v1271
        %v1277 = vadd.f32 %v1165, %v1273
        %s1278 = sld [smem:[#allocation4 + $0x50]]
        %v1279 = vstv %s1278
        %v1280 = vmul.f32 %v1279, %v954
        %v1281 = vmul.f32 %v1279, %v955
        %1284 = vrot.lane.b32.xlu0 %v1280, 126
        %v1285 = vpop.permute.xlu0 %1284
        %1286 = vrot.lane.b32.xlu0 %v1281, 126
        %v1287 = vpop.permute.xlu0 %1286
        %v1290 = vadd.f32 %v1178, %v1285
        %v1291 = vadd.f32 %v1179, %v1287
        %s1292 = sld [smem:[#allocation4 + $0x51]]
        %v1293 = vstv %s1292
        %v1294 = vmul.f32 %v1293, %v954
        %v1295 = vmul.f32 %v1293, %v955
        %1298 = vrot.lane.b32.xlu0 %v1294, 126
        %v1299 = vpop.permute.xlu0 %1298
        %1300 = vrot.lane.b32.xlu0 %v1295, 126
        %v1301 = vpop.permute.xlu0 %1300
        %v1304 = vadd.f32 %v1192, %v1299
        %v1305 = vadd.f32 %v1193, %v1301
        %s1306 = sld [smem:[#allocation4 + $0x52]]
        %v1307 = vstv %s1306
        %v1308 = vmul.f32 %v1307, %v954
        %v1309 = vmul.f32 %v1307, %v955
        %1312 = vrot.lane.b32.xlu0 %v1308, 126
        %v1313 = vpop.permute.xlu0 %1312
        %1314 = vrot.lane.b32.xlu0 %v1309, 126
        %v1315 = vpop.permute.xlu0 %1314
        %v1318 = vadd.f32 %v1206, %v1313
        %v1319 = vadd.f32 %v1207, %v1315
        %s1320 = sld [smem:[#allocation4 + $0x53]]
        %v1321 = vstv %s1320
        %v1322 = vmul.f32 %v1321, %v954
        %v1323 = vmul.f32 %v1321, %v955
        %1326 = vrot.lane.b32.xlu0 %v1322, 126
        %v1327 = vpop.permute.xlu0 %1326
        %1328 = vrot.lane.b32.xlu0 %v1323, 126
        %v1329 = vpop.permute.xlu0 %1328
        %v1332 = vadd.f32 %v1220, %v1327
        %v1333 = vadd.f32 %v1221, %v1329
        %s1334 = sld [smem:[#allocation4 + $0x54]]
        %v1335 = vstv %s1334
        %v1336 = vmul.f32 %v1335, %v954
        %v1337 = vmul.f32 %v1335, %v955
        %1340 = vrot.lane.b32.xlu0 %v1336, 126
        %v1341 = vpop.permute.xlu0 %1340
        %1342 = vrot.lane.b32.xlu0 %v1337, 126
        %v1343 = vpop.permute.xlu0 %1342
        %v1346 = vadd.f32 %v1234, %v1341
        %v1347 = vadd.f32 %v1235, %v1343
        %s1348 = sld [smem:[#allocation4 + $0x55]]
        %v1349 = vstv %s1348
        %v1350 = vmul.f32 %v1349, %v954
        %v1351 = vmul.f32 %v1349, %v955
        %1354 = vrot.lane.b32.xlu0 %v1350, 126
        %v1355 = vpop.permute.xlu0 %1354
        %1356 = vrot.lane.b32.xlu0 %v1351, 126
        %v1357 = vpop.permute.xlu0 %1356
        %v1360 = vadd.f32 %v1248, %v1355
        %v1361 = vadd.f32 %v1249, %v1357
        %s1362 = sld [smem:[#allocation4 + $0x56]]
        %v1363 = vstv %s1362
        %v1364 = vmul.f32 %v1363, %v954
        %v1365 = vmul.f32 %v1363, %v955
        %1368 = vrot.lane.b32.xlu0 %v1364, 126
        %v1369 = vpop.permute.xlu0 %1368
        %1370 = vrot.lane.b32.xlu0 %v1365, 126
        %v1371 = vpop.permute.xlu0 %1370
        %v1374 = vadd.f32 %v1262, %v1369
        %v1375 = vadd.f32 %v1263, %v1371
        %s1376 = sld [smem:[#allocation4 + $0x57]]
        %v1377 = vstv %s1376
        %v1378 = vmul.f32 %v1377, %v954
        %v1379 = vmul.f32 %v1377, %v955
        %1382 = vrot.lane.b32.xlu0 %v1378, 126
        %v1383 = vpop.permute.xlu0 %1382
        %1384 = vrot.lane.b32.xlu0 %v1379, 126
        %v1385 = vpop.permute.xlu0 %1384
        %v1388 = vadd.f32 %v1276, %v1383
        %v1389 = vadd.f32 %v1277, %v1385
        %s1390 = sld [smem:[#allocation4 + $0x58]]
        %v1391 = vstv %s1390
        %v1392 = vmul.f32 %v1391, %v1004
        %v1393 = vmul.f32 %v1391, %v1005
        %1396 = vrot.lane.b32.xlu0 %v1392, 126
        %v1397 = vpop.permute.xlu0 %1396
        %1398 = vrot.lane.b32.xlu0 %v1393, 126
        %v1399 = vpop.permute.xlu0 %1398
        %v1402 = vadd.f32 %v1290, %v1397
        %v1403 = vadd.f32 %v1291, %v1399
        %s1404 = sld [smem:[#allocation4 + $0x59]]
        %v1405 = vstv %s1404
        %v1406 = vmul.f32 %v1405, %v1004
        %v1407 = vmul.f32 %v1405, %v1005
        %1410 = vrot.lane.b32.xlu0 %v1406, 126
        %v1411 = vpop.permute.xlu0 %1410
        %1412 = vrot.lane.b32.xlu0 %v1407, 126
        %v1413 = vpop.permute.xlu0 %1412
        %v1416 = vadd.f32 %v1304, %v1411
        %v1417 = vadd.f32 %v1305, %v1413
        %s1418 = sld [smem:[#allocation4 + $0x5a]]
        %v1419 = vstv %s1418
        %v1420 = vmul.f32 %v1419, %v1004
        %v1421 = vmul.f32 %v1419, %v1005
        %1424 = vrot.lane.b32.xlu0 %v1420, 126
        %v1425 = vpop.permute.xlu0 %1424
        %1426 = vrot.lane.b32.xlu0 %v1421, 126
        %v1427 = vpop.permute.xlu0 %1426
        %v1430 = vadd.f32 %v1318, %v1425
        %v1431 = vadd.f32 %v1319, %v1427
        %s1432 = sld [smem:[#allocation4 + $0x5b]]
        %v1433 = vstv %s1432
        %v1434 = vmul.f32 %v1433, %v1004
        %v1435 = vmul.f32 %v1433, %v1005
        %1438 = vrot.lane.b32.xlu0 %v1434, 126
        %v1439 = vpop.permute.xlu0 %1438
        %1440 = vrot.lane.b32.xlu0 %v1435, 126
        %v1441 = vpop.permute.xlu0 %1440
        %v1444 = vadd.f32 %v1332, %v1439
        %v1445 = vadd.f32 %v1333, %v1441
        %s1446 = sld [smem:[#allocation4 + $0x5c]]
        %v1447 = vstv %s1446
        %v1448 = vmul.f32 %v1447, %v1004
        %v1449 = vmul.f32 %v1447, %v1005
        %1452 = vrot.lane.b32.xlu0 %v1448, 126
        %v1453 = vpop.permute.xlu0 %1452
        %1454 = vrot.lane.b32.xlu0 %v1449, 126
        %v1455 = vpop.permute.xlu0 %1454
        %v1458 = vadd.f32 %v1346, %v1453
        %v1459 = vadd.f32 %v1347, %v1455
        %s1460 = sld [smem:[#allocation4 + $0x5d]]
        %v1461 = vstv %s1460
        %v1462 = vmul.f32 %v1461, %v1004
        %v1463 = vmul.f32 %v1461, %v1005
        %1466 = vrot.lane.b32.xlu0 %v1462, 126
        %v1467 = vpop.permute.xlu0 %1466
        %1468 = vrot.lane.b32.xlu0 %v1463, 126
        %v1469 = vpop.permute.xlu0 %1468
        %v1472 = vadd.f32 %v1360, %v1467
        %v1473 = vadd.f32 %v1361, %v1469
        %s1474 = sld [smem:[#allocation4 + $0x5e]]
        %v1475 = vstv %s1474
        %v1476 = vmul.f32 %v1475, %v1004
        %v1477 = vmul.f32 %v1475, %v1005
        %1480 = vrot.lane.b32.xlu0 %v1476, 126
        %v1481 = vpop.permute.xlu0 %1480
        %1482 = vrot.lane.b32.xlu0 %v1477, 126
        %v1483 = vpop.permute.xlu0 %1482
        %v1486 = vadd.f32 %v1374, %v1481
        %v1487 = vadd.f32 %v1375, %v1483
        %s1488 = sld [smem:[#allocation4 + $0x5f]]
        %v1489 = vstv %s1488
        %v1490 = vmul.f32 %v1489, %v1004
        %v1491 = vmul.f32 %v1489, %v1005
        %1494 = vrot.lane.b32.xlu0 %v1490, 126
        %v1495 = vpop.permute.xlu0 %1494
        %1496 = vrot.lane.b32.xlu0 %v1491, 126
        %v1497 = vpop.permute.xlu0 %1496
        %v1500 = vadd.f32 %v1388, %v1495
        %v1501 = vadd.f32 %v1389, %v1497
        %v1502 = vld [vmem:[#allocation2 + $0x2] sm:$0xff]
        %v1503 = vld [vmem:[#allocation2 + $0xa] sm:$0x3]
        %s1504 = sld [smem:[#allocation4 + $0x60]]
        %v1505 = vstv %s1504
        %v1506 = vmul.f32 %v1505, %v1502
        %v1507 = vmul.f32 %v1505, %v1503
        %v1508 = vadd.f32 %v1402, %v1506
        %v1509 = vadd.f32 %v1403, %v1507
        %s1510 = sld [smem:[#allocation4 + $0x61]]
        %v1511 = vstv %s1510
        %v1512 = vmul.f32 %v1511, %v1502
        %v1513 = vmul.f32 %v1511, %v1503
        %v1514 = vadd.f32 %v1416, %v1512
        %v1515 = vadd.f32 %v1417, %v1513
        %s1516 = sld [smem:[#allocation4 + $0x62]]
        %v1517 = vstv %s1516
        %v1518 = vmul.f32 %v1517, %v1502
        %v1519 = vmul.f32 %v1517, %v1503
        %v1520 = vadd.f32 %v1430, %v1518
        %v1521 = vadd.f32 %v1431, %v1519
        %s1522 = sld [smem:[#allocation4 + $0x63]]
        %v1523 = vstv %s1522
        %v1524 = vmul.f32 %v1523, %v1502
        %v1525 = vmul.f32 %v1523, %v1503
        %v1526 = vadd.f32 %v1444, %v1524
        %v1527 = vadd.f32 %v1445, %v1525
        %s1528 = sld [smem:[#allocation4 + $0x64]]
        %v1529 = vstv %s1528
        %v1530 = vmul.f32 %v1529, %v1502
        %v1531 = vmul.f32 %v1529, %v1503
        %v1532 = vadd.f32 %v1458, %v1530
        %v1533 = vadd.f32 %v1459, %v1531
        %s1534 = sld [smem:[#allocation4 + $0x65]]
        %v1535 = vstv %s1534
        %v1536 = vmul.f32 %v1535, %v1502
        %v1537 = vmul.f32 %v1535, %v1503
        %v1538 = vadd.f32 %v1472, %v1536
        %v1539 = vadd.f32 %v1473, %v1537
        %s1540 = sld [smem:[#allocation4 + $0x66]]
        %v1541 = vstv %s1540
        %v1542 = vmul.f32 %v1541, %v1502
        %v1543 = vmul.f32 %v1541, %v1503
        %v1544 = vadd.f32 %v1486, %v1542
        %v1545 = vadd.f32 %v1487, %v1543
        %s1546 = sld [smem:[#allocation4 + $0x67]]
        %v1547 = vstv %s1546
        %v1548 = vmul.f32 %v1547, %v1502
        %v1549 = vmul.f32 %v1547, %v1503
        %v1550 = vadd.f32 %v1500, %v1548
        %v1551 = vadd.f32 %v1501, %v1549
        %v1552 = vld [vmem:[%s455 + $0x2] sm:$0xff]
        %v1553 = vld [vmem:[%s455 + $0xa] sm:$0x3]
        %s1554 = sld [smem:[#allocation4 + $0x68]]
        %v1555 = vstv %s1554
        %v1556 = vmul.f32 %v1555, %v1552
        %v1557 = vmul.f32 %v1555, %v1553
        %v1558 = vadd.f32 %v1508, %v1556
        %v1559 = vadd.f32 %v1509, %v1557
        %s1560 = sld [smem:[#allocation4 + $0x69]]
        %v1561 = vstv %s1560
        %v1562 = vmul.f32 %v1561, %v1552
        %v1563 = vmul.f32 %v1561, %v1553
        %v1564 = vadd.f32 %v1514, %v1562
        %v1565 = vadd.f32 %v1515, %v1563
        %s1566 = sld [smem:[#allocation4 + $0x6a]]
        %v1567 = vstv %s1566
        %v1568 = vmul.f32 %v1567, %v1552
        %v1569 = vmul.f32 %v1567, %v1553
        %v1570 = vadd.f32 %v1520, %v1568
        %v1571 = vadd.f32 %v1521, %v1569
        %s1572 = sld [smem:[#allocation4 + $0x6b]]
        %v1573 = vstv %s1572
        %v1574 = vmul.f32 %v1573, %v1552
        %v1575 = vmul.f32 %v1573, %v1553
        %v1576 = vadd.f32 %v1526, %v1574
        %v1577 = vadd.f32 %v1527, %v1575
        %s1578 = sld [smem:[#allocation4 + $0x6c]]
        %v1579 = vstv %s1578
        %v1580 = vmul.f32 %v1579, %v1552
        %v1581 = vmul.f32 %v1579, %v1553
        %v1582 = vadd.f32 %v1532, %v1580
        %v1583 = vadd.f32 %v1533, %v1581
        %s1584 = sld [smem:[#allocation4 + $0x6d]]
        %v1585 = vstv %s1584
        %v1586 = vmul.f32 %v1585, %v1552
        %v1587 = vmul.f32 %v1585, %v1553
        %v1588 = vadd.f32 %v1538, %v1586
        %v1589 = vadd.f32 %v1539, %v1587
        %s1590 = sld [smem:[#allocation4 + $0x6e]]
        %v1591 = vstv %s1590
        %v1592 = vmul.f32 %v1591, %v1552
        %v1593 = vmul.f32 %v1591, %v1553
        %v1594 = vadd.f32 %v1544, %v1592
        %v1595 = vadd.f32 %v1545, %v1593
        %s1596 = sld [smem:[#allocation4 + $0x6f]]
        %v1597 = vstv %s1596
        %v1598 = vmul.f32 %v1597, %v1552
        %v1599 = vmul.f32 %v1597, %v1553
        %v1600 = vadd.f32 %v1550, %v1598
        %v1601 = vadd.f32 %v1551, %v1599
        %s1602 = sld [smem:[#allocation4 + $0x70]]
        %v1603 = vstv %s1602
        %v1604 = vmul.f32 %v1603, %v1502
        %v1605 = vmul.f32 %v1603, %v1503
        %1608 = vrot.lane.b32.xlu0 %v1604, 127
        %v1609 = vpop.permute.xlu0 %1608
        %1610 = vrot.lane.b32.xlu0 %v1605, 127
        %v1611 = vpop.permute.xlu0 %1610
        %v1614 = vadd.f32 %v1558, %v1609
        %v1615 = vadd.f32 %v1559, %v1611
        %s1616 = sld [smem:[#allocation4 + $0x71]]
        %v1617 = vstv %s1616
        %v1618 = vmul.f32 %v1617, %v1502
        %v1619 = vmul.f32 %v1617, %v1503
        %1622 = vrot.lane.b32.xlu0 %v1618, 127
        %v1623 = vpop.permute.xlu0 %1622
        %1624 = vrot.lane.b32.xlu0 %v1619, 127
        %v1625 = vpop.permute.xlu0 %1624
        %v1628 = vadd.f32 %v1564, %v1623
        %v1629 = vadd.f32 %v1565, %v1625
        %s1630 = sld [smem:[#allocation4 + $0x72]]
        %v1631 = vstv %s1630
        %v1632 = vmul.f32 %v1631, %v1502
        %v1633 = vmul.f32 %v1631, %v1503
        %1636 = vrot.lane.b32.xlu0 %v1632, 127
        %v1637 = vpop.permute.xlu0 %1636
        %1638 = vrot.lane.b32.xlu0 %v1633, 127
        %v1639 = vpop.permute.xlu0 %1638
        %v1642 = vadd.f32 %v1570, %v1637
        %v1643 = vadd.f32 %v1571, %v1639
        %s1644 = sld [smem:[#allocation4 + $0x73]]
        %v1645 = vstv %s1644
        %v1646 = vmul.f32 %v1645, %v1502
        %v1647 = vmul.f32 %v1645, %v1503
        %1650 = vrot.lane.b32.xlu0 %v1646, 127
        %v1651 = vpop.permute.xlu0 %1650
        %1652 = vrot.lane.b32.xlu0 %v1647, 127
        %v1653 = vpop.permute.xlu0 %1652
        %v1656 = vadd.f32 %v1576, %v1651
        %v1657 = vadd.f32 %v1577, %v1653
        %s1658 = sld [smem:[#allocation4 + $0x74]]
        %v1659 = vstv %s1658
        %v1660 = vmul.f32 %v1659, %v1502
        %v1661 = vmul.f32 %v1659, %v1503
        %1664 = vrot.lane.b32.xlu0 %v1660, 127
        %v1665 = vpop.permute.xlu0 %1664
        %1666 = vrot.lane.b32.xlu0 %v1661, 127
        %v1667 = vpop.permute.xlu0 %1666
        %v1670 = vadd.f32 %v1582, %v1665
        %v1671 = vadd.f32 %v1583, %v1667
        %s1672 = sld [smem:[#allocation4 + $0x75]]
        %v1673 = vstv %s1672
        %v1674 = vmul.f32 %v1673, %v1502
        %v1675 = vmul.f32 %v1673, %v1503
        %1678 = vrot.lane.b32.xlu0 %v1674, 127
        %v1679 = vpop.permute.xlu0 %1678
        %1680 = vrot.lane.b32.xlu0 %v1675, 127
        %v1681 = vpop.permute.xlu0 %1680
        %v1684 = vadd.f32 %v1588, %v1679
        %v1685 = vadd.f32 %v1589, %v1681
        %s1686 = sld [smem:[#allocation4 + $0x76]]
        %v1687 = vstv %s1686
        %v1688 = vmul.f32 %v1687, %v1502
        %v1689 = vmul.f32 %v1687, %v1503
        %1692 = vrot.lane.b32.xlu0 %v1688, 127
        %v1693 = vpop.permute.xlu0 %1692
        %1694 = vrot.lane.b32.xlu0 %v1689, 127
        %v1695 = vpop.permute.xlu0 %1694
        %v1698 = vadd.f32 %v1594, %v1693
        %v1699 = vadd.f32 %v1595, %v1695
        %s1700 = sld [smem:[#allocation4 + $0x77]]
        %v1701 = vstv %s1700
        %v1702 = vmul.f32 %v1701, %v1502
        %v1703 = vmul.f32 %v1701, %v1503
        %1706 = vrot.lane.b32.xlu0 %v1702, 127
        %v1707 = vpop.permute.xlu0 %1706
        %1708 = vrot.lane.b32.xlu0 %v1703, 127
        %v1709 = vpop.permute.xlu0 %1708
        %v1712 = vadd.f32 %v1600, %v1707
        %v1713 = vadd.f32 %v1601, %v1709
        %s1714 = sld [smem:[#allocation4 + $0x78]]
        %v1715 = vstv %s1714
        %v1716 = vmul.f32 %v1715, %v1552
        %v1717 = vmul.f32 %v1715, %v1553
        %1720 = vrot.lane.b32.xlu0 %v1716, 127
        %v1721 = vpop.permute.xlu0 %1720
        %1722 = vrot.lane.b32.xlu0 %v1717, 127
        %v1723 = vpop.permute.xlu0 %1722
        %v1726 = vadd.f32 %v1614, %v1721
        %v1727 = vadd.f32 %v1615, %v1723
        %s1728 = sld [smem:[#allocation4 + $0x79]]
        %v1729 = vstv %s1728
        %v1730 = vmul.f32 %v1729, %v1552
        %v1731 = vmul.f32 %v1729, %v1553
        %1734 = vrot.lane.b32.xlu0 %v1730, 127
        %v1735 = vpop.permute.xlu0 %1734
        %1736 = vrot.lane.b32.xlu0 %v1731, 127
        %v1737 = vpop.permute.xlu0 %1736
        %v1740 = vadd.f32 %v1628, %v1735
        %v1741 = vadd.f32 %v1629, %v1737
        %s1742 = sld [smem:[#allocation4 + $0x7a]]
        %v1743 = vstv %s1742
        %v1744 = vmul.f32 %v1743, %v1552
        %v1745 = vmul.f32 %v1743, %v1553
        %1748 = vrot.lane.b32.xlu0 %v1744, 127
        %v1749 = vpop.permute.xlu0 %1748
        %1750 = vrot.lane.b32.xlu0 %v1745, 127
        %v1751 = vpop.permute.xlu0 %1750
        %v1754 = vadd.f32 %v1642, %v1749
        %v1755 = vadd.f32 %v1643, %v1751
        %s1756 = sld [smem:[#allocation4 + $0x7b]]
        %v1757 = vstv %s1756
        %v1758 = vmul.f32 %v1757, %v1552
        %v1759 = vmul.f32 %v1757, %v1553
        %1762 = vrot.lane.b32.xlu0 %v1758, 127
        %v1763 = vpop.permute.xlu0 %1762
        %1764 = vrot.lane.b32.xlu0 %v1759, 127
        %v1765 = vpop.permute.xlu0 %1764
        %v1768 = vadd.f32 %v1656, %v1763
        %v1769 = vadd.f32 %v1657, %v1765
        %s1770 = sld [smem:[#allocation4 + $0x7c]]
        %v1771 = vstv %s1770
        %v1772 = vmul.f32 %v1771, %v1552
        %v1773 = vmul.f32 %v1771, %v1553
        %1776 = vrot.lane.b32.xlu0 %v1772, 127
        %v1777 = vpop.permute.xlu0 %1776
        %1778 = vrot.lane.b32.xlu0 %v1773, 127
        %v1779 = vpop.permute.xlu0 %1778
        %v1782 = vadd.f32 %v1670, %v1777
        %v1783 = vadd.f32 %v1671, %v1779
        %s1784 = sld [smem:[#allocation4 + $0x7d]]
        %v1785 = vstv %s1784
        %v1786 = vmul.f32 %v1785, %v1552
        %v1787 = vmul.f32 %v1785, %v1553
        %1790 = vrot.lane.b32.xlu0 %v1786, 127
        %v1791 = vpop.permute.xlu0 %1790
        %1792 = vrot.lane.b32.xlu0 %v1787, 127
        %v1793 = vpop.permute.xlu0 %1792
        %v1796 = vadd.f32 %v1684, %v1791
        %v1797 = vadd.f32 %v1685, %v1793
        %s1798 = sld [smem:[#allocation4 + $0x7e]]
        %v1799 = vstv %s1798
        %v1800 = vmul.f32 %v1799, %v1552
        %v1801 = vmul.f32 %v1799, %v1553
        %1804 = vrot.lane.b32.xlu0 %v1800, 127
        %v1805 = vpop.permute.xlu0 %1804
        %1806 = vrot.lane.b32.xlu0 %v1801, 127
        %v1807 = vpop.permute.xlu0 %1806
        %v1810 = vadd.f32 %v1698, %v1805
        %v1811 = vadd.f32 %v1699, %v1807
        %s1812 = sld [smem:[#allocation4 + $0x7f]]
        %v1813 = vstv %s1812
        %v1814 = vmul.f32 %v1813, %v1552
        %v1815 = vmul.f32 %v1813, %v1553
        %1818 = vrot.lane.b32.xlu0 %v1814, 127
        %v1819 = vpop.permute.xlu0 %1818
        %1820 = vrot.lane.b32.xlu0 %v1815, 127
        %v1821 = vpop.permute.xlu0 %1820
        %v1824 = vadd.f32 %v1712, %v1819
        %v1825 = vadd.f32 %v1713, %v1821
        %s1826 = sld [smem:[#allocation4 + $0x80]]
        %v1827 = vstv %s1826
        %v1828 = vmul.f32 %v1827, %v1502
        %v1829 = vmul.f32 %v1827, %v1503
        %1832 = vrot.lane.b32.xlu0 %v1828, 126
        %v1833 = vpop.permute.xlu0 %1832
        %1834 = vrot.lane.b32.xlu0 %v1829, 126
        %v1835 = vpop.permute.xlu0 %1834
        %v1838 = vadd.f32 %v1726, %v1833
        %v1839 = vadd.f32 %v1727, %v1835
        %s1840 = sld [smem:[#allocation4 + $0x81]]
        %v1841 = vstv %s1840
        %v1842 = vmul.f32 %v1841, %v1502
        %v1843 = vmul.f32 %v1841, %v1503
        %1846 = vrot.lane.b32.xlu0 %v1842, 126
        %v1847 = vpop.permute.xlu0 %1846
        %1848 = vrot.lane.b32.xlu0 %v1843, 126
        %v1849 = vpop.permute.xlu0 %1848
        %v1852 = vadd.f32 %v1740, %v1847
        %v1853 = vadd.f32 %v1741, %v1849
        %s1854 = sld [smem:[#allocation4 + $0x82]]
        %v1855 = vstv %s1854
        %v1856 = vmul.f32 %v1855, %v1502
        %v1857 = vmul.f32 %v1855, %v1503
        %1860 = vrot.lane.b32.xlu0 %v1856, 126
        %v1861 = vpop.permute.xlu0 %1860
        %1862 = vrot.lane.b32.xlu0 %v1857, 126
        %v1863 = vpop.permute.xlu0 %1862
        %v1866 = vadd.f32 %v1754, %v1861
        %v1867 = vadd.f32 %v1755, %v1863
        %s1868 = sld [smem:[#allocation4 + $0x83]]
        %v1869 = vstv %s1868
        %v1870 = vmul.f32 %v1869, %v1502
        %v1871 = vmul.f32 %v1869, %v1503
        %1874 = vrot.lane.b32.xlu0 %v1870, 126
        %v1875 = vpop.permute.xlu0 %1874
        %1876 = vrot.lane.b32.xlu0 %v1871, 126
        %v1877 = vpop.permute.xlu0 %1876
        %v1880 = vadd.f32 %v1768, %v1875
        %v1881 = vadd.f32 %v1769, %v1877
        %s1882 = sld [smem:[#allocation4 + $0x84]]
        %v1883 = vstv %s1882
        %v1884 = vmul.f32 %v1883, %v1502
        %v1885 = vmul.f32 %v1883, %v1503
        %1888 = vrot.lane.b32.xlu0 %v1884, 126
        %v1889 = vpop.permute.xlu0 %1888
        %1890 = vrot.lane.b32.xlu0 %v1885, 126
        %v1891 = vpop.permute.xlu0 %1890
        %v1894 = vadd.f32 %v1782, %v1889
        %v1895 = vadd.f32 %v1783, %v1891
        %s1896 = sld [smem:[#allocation4 + $0x85]]
        %v1897 = vstv %s1896
        %v1898 = vmul.f32 %v1897, %v1502
        %v1899 = vmul.f32 %v1897, %v1503
        %1902 = vrot.lane.b32.xlu0 %v1898, 126
        %v1903 = vpop.permute.xlu0 %1902
        %1904 = vrot.lane.b32.xlu0 %v1899, 126
        %v1905 = vpop.permute.xlu0 %1904
        %v1908 = vadd.f32 %v1796, %v1903
        %v1909 = vadd.f32 %v1797, %v1905
        %s1910 = sld [smem:[#allocation4 + $0x86]]
        %v1911 = vstv %s1910
        %v1912 = vmul.f32 %v1911, %v1502
        %v1913 = vmul.f32 %v1911, %v1503
        %1916 = vrot.lane.b32.xlu0 %v1912, 126
        %v1917 = vpop.permute.xlu0 %1916
        %1918 = vrot.lane.b32.xlu0 %v1913, 126
        %v1919 = vpop.permute.xlu0 %1918
        %v1922 = vadd.f32 %v1810, %v1917
        %v1923 = vadd.f32 %v1811, %v1919
        %s1924 = sld [smem:[#allocation4 + $0x87]]
        %v1925 = vstv %s1924
        %v1926 = vmul.f32 %v1925, %v1502
        %v1927 = vmul.f32 %v1925, %v1503
        %1930 = vrot.lane.b32.xlu0 %v1926, 126
        %v1931 = vpop.permute.xlu0 %1930
        %1932 = vrot.lane.b32.xlu0 %v1927, 126
        %v1933 = vpop.permute.xlu0 %1932
        %v1936 = vadd.f32 %v1824, %v1931
        %v1937 = vadd.f32 %v1825, %v1933
        %s1938 = sld [smem:[#allocation4 + $0x88]]
        %v1939 = vstv %s1938
        %v1940 = vmul.f32 %v1939, %v1552
        %v1941 = vmul.f32 %v1939, %v1553
        %1944 = vrot.lane.b32.xlu0 %v1940, 126
        %v1945 = vpop.permute.xlu0 %1944
        %1946 = vrot.lane.b32.xlu0 %v1941, 126
        %v1947 = vpop.permute.xlu0 %1946
        %v1950 = vadd.f32 %v1838, %v1945
        %v1951 = vadd.f32 %v1839, %v1947
        %s1952 = sld [smem:[#allocation4 + $0x89]]
        %v1953 = vstv %s1952
        %v1954 = vmul.f32 %v1953, %v1552
        %v1955 = vmul.f32 %v1953, %v1553
        %1958 = vrot.lane.b32.xlu0 %v1954, 126
        %v1959 = vpop.permute.xlu0 %1958
        %1960 = vrot.lane.b32.xlu0 %v1955, 126
        %v1961 = vpop.permute.xlu0 %1960
        %v1964 = vadd.f32 %v1852, %v1959
        %v1965 = vadd.f32 %v1853, %v1961
        %s1966 = sld [smem:[#allocation4 + $0x8a]]
        %v1967 = vstv %s1966
        %v1968 = vmul.f32 %v1967, %v1552
        %v1969 = vmul.f32 %v1967, %v1553
        %1972 = vrot.lane.b32.xlu0 %v1968, 126
        %v1973 = vpop.permute.xlu0 %1972
        %1974 = vrot.lane.b32.xlu0 %v1969, 126
        %v1975 = vpop.permute.xlu0 %1974
        %v1978 = vadd.f32 %v1866, %v1973
        %v1979 = vadd.f32 %v1867, %v1975
        %s1980 = sld [smem:[#allocation4 + $0x8b]]
        %v1981 = vstv %s1980
        %v1982 = vmul.f32 %v1981, %v1552
        %v1983 = vmul.f32 %v1981, %v1553
        %1986 = vrot.lane.b32.xlu0 %v1982, 126
        %v1987 = vpop.permute.xlu0 %1986
        %1988 = vrot.lane.b32.xlu0 %v1983, 126
        %v1989 = vpop.permute.xlu0 %1988
        %v1992 = vadd.f32 %v1880, %v1987
        %v1993 = vadd.f32 %v1881, %v1989
        %s1994 = sld [smem:[#allocation4 + $0x8c]]
        %v1995 = vstv %s1994
        %v1996 = vmul.f32 %v1995, %v1552
        %v1997 = vmul.f32 %v1995, %v1553
        %2000 = vrot.lane.b32.xlu0 %v1996, 126
        %v2001 = vpop.permute.xlu0 %2000
        %2002 = vrot.lane.b32.xlu0 %v1997, 126
        %v2003 = vpop.permute.xlu0 %2002
        %v2006 = vadd.f32 %v1894, %v2001
        %v2007 = vadd.f32 %v1895, %v2003
        %s2008 = sld [smem:[#allocation4 + $0x8d]]
        %v2009 = vstv %s2008
        %v2010 = vmul.f32 %v2009, %v1552
        %v2011 = vmul.f32 %v2009, %v1553
        %2014 = vrot.lane.b32.xlu0 %v2010, 126
        %v2015 = vpop.permute.xlu0 %2014
        %2016 = vrot.lane.b32.xlu0 %v2011, 126
        %v2017 = vpop.permute.xlu0 %2016
        %v2020 = vadd.f32 %v1908, %v2015
        %v2021 = vadd.f32 %v1909, %v2017
        %s2022 = sld [smem:[#allocation4 + $0x8e]]
        %v2023 = vstv %s2022
        %v2024 = vmul.f32 %v2023, %v1552
        %v2025 = vmul.f32 %v2023, %v1553
        %2028 = vrot.lane.b32.xlu0 %v2024, 126
        %v2029 = vpop.permute.xlu0 %2028
        %2030 = vrot.lane.b32.xlu0 %v2025, 126
        %v2031 = vpop.permute.xlu0 %2030
        %v2034 = vadd.f32 %v1922, %v2029
        %v2035 = vadd.f32 %v1923, %v2031
        %s2036 = sld [smem:[#allocation4 + $0x8f]]
        %v2037 = vstv %s2036
        %v2038 = vmul.f32 %v2037, %v1552
        %v2039 = vmul.f32 %v2037, %v1553
        %2042 = vrot.lane.b32.xlu0 %v2038, 126
        %v2043 = vpop.permute.xlu0 %2042
        %2044 = vrot.lane.b32.xlu0 %v2039, 126
        %v2045 = vpop.permute.xlu0 %2044
        %v2048 = vadd.f32 %v1936, %v2043
        %v2049 = vadd.f32 %v1937, %v2045
        %2050 = vst.msk [vmem:[#allocation3] sm:$0xff] %vm352, 0.0
        %vm2051 = vcmask 140288
        %2052 = vst.msk [vmem:[#allocation3 + $0x8] sm:$0x3] %vm2051, 0.0
        %2053 = vst.msk [vmem:[#allocation3 + $0x10] sm:$0xff] %vm352, 0.0
        %2054 = vst.msk [vmem:[#allocation3 + $0x18] sm:$0x3] %vm2051, 0.0
        %2055 = vst.msk [vmem:[#allocation3 + $0x20] sm:$0xff] %vm352, 0.0
        %2056 = vst.msk [vmem:[#allocation3 + $0x28] sm:$0x3] %vm2051, 0.0
        %2057 = vst.msk [vmem:[#allocation3 + $0x30] sm:$0xff] %vm352, 0.0
        %2058 = vst.msk [vmem:[#allocation3 + $0x38] sm:$0x3] %vm2051, 0.0
        %2059 = vst.msk [vmem:[#allocation3 + $0x40] sm:$0xff] %vm352, 0.0
        %2060 = vst.msk [vmem:[#allocation3 + $0x48] sm:$0x3] %vm2051, 0.0
        %2061 = vst.msk [vmem:[#allocation3 + $0x50] sm:$0xff] %vm352, 0.0
        %2062 = vst.msk [vmem:[#allocation3 + $0x58] sm:$0x3] %vm2051, 0.0
        %2063 = vst.msk [vmem:[#allocation3 + $0x60] sm:$0xff] %vm352, 0.0
        %2064 = vst.msk [vmem:[#allocation3 + $0x68] sm:$0x3] %vm2051, 0.0
        %2065 = vst.msk [vmem:[#allocation3 + $0x70] sm:$0xff] %vm352, 0.0
        %2066 = vst.msk [vmem:[#allocation3 + $0x78] sm:$0x3] %vm2051, 0.0
        %s2067 = sld [smem:[#allocation4 + $0x90]]
        %v2068 = vstv %s2067
        %v2069 = vadd.f32 %v1950, %v2068
        %v2070 = vadd.f32 %v1951, %v2068
        %vm2071 = vcmp.gt.f32.partialorder %v2069, 0.0
        %vm2072 = vcmp.gt.f32.partialorder %v2070, 0.0
        %v2073 = vmul.f32 %v2069, 0.1
        %v2074 = vmul.f32 %v2070, 0.1
        %v2075 = vsel %vm2071, %v2069, %v2073
        %v2076 = vsel %vm2072, %v2070, %v2074
        %2079 = vrot.lane.b32.xlu0 %v2075, 1
        %v2080 = vpop.permute.xlu0 %2079
        %2081 = vrot.lane.b32.xlu0 %v2076, 1
        %v2082 = vpop.permute.xlu0 %2081
        %2085 = vst.msk [vmem:[#allocation3] sm:$0xff] %vm368, %v2080
        %vm2086 = vcmask 132104
        %2087 = vst.msk [vmem:[#allocation3 + $0x8] sm:$0x3] %vm2086, %v2082
        %s2088 = sld [smem:[#allocation4 + $0x91]]
        %v2089 = vstv %s2088
        %v2090 = vadd.f32 %v1964, %v2089
        %v2091 = vadd.f32 %v1965, %v2089
        %vm2092 = vcmp.gt.f32.partialorder %v2090, 0.0
        %vm2093 = vcmp.gt.f32.partialorder %v2091, 0.0
        %v2094 = vmul.f32 %v2090, 0.1
        %v2095 = vmul.f32 %v2091, 0.1
        %v2096 = vsel %vm2092, %v2090, %v2094
        %v2097 = vsel %vm2093, %v2091, %v2095
        %2100 = vrot.lane.b32.xlu0 %v2096, 1
        %v2101 = vpop.permute.xlu0 %2100
        %2102 = vrot.lane.b32.xlu0 %v2097, 1
        %v2103 = vpop.permute.xlu0 %2102
        %s2106 = scalar_lea.vmem [#allocation3], 16
        %2107 = vst.msk [vmem:[%s2106] sm:$0xff] %vm368, %v2101
        %2108 = vst.msk [vmem:[%s2106 + $0x8] sm:$0x3] %vm2086, %v2103
        %s2109 = sld [smem:[#allocation4 + $0x92]]
        %v2110 = vstv %s2109
        %v2111 = vadd.f32 %v1978, %v2110
        %v2112 = vadd.f32 %v1979, %v2110
        %vm2113 = vcmp.gt.f32.partialorder %v2111, 0.0
        %vm2114 = vcmp.gt.f32.partialorder %v2112, 0.0
        %v2115 = vmul.f32 %v2111, 0.1
        %v2116 = vmul.f32 %v2112, 0.1
        %v2117 = vsel %vm2113, %v2111, %v2115
        %v2118 = vsel %vm2114, %v2112, %v2116
        %2121 = vrot.lane.b32.xlu0 %v2117, 1
        %v2122 = vpop.permute.xlu0 %2121
        %2123 = vrot.lane.b32.xlu0 %v2118, 1
        %v2124 = vpop.permute.xlu0 %2123
        %s2127 = scalar_lea.vmem [#allocation3], 32
        %2128 = vst.msk [vmem:[%s2127] sm:$0xff] %vm368, %v2122
        %2129 = vst.msk [vmem:[%s2127 + $0x8] sm:$0x3] %vm2086, %v2124
        %s2130 = sld [smem:[#allocation4 + $0x93]]
        %v2131 = vstv %s2130
        %v2132 = vadd.f32 %v1992, %v2131
        %v2133 = vadd.f32 %v1993, %v2131
        %vm2134 = vcmp.gt.f32.partialorder %v2132, 0.0
        %vm2135 = vcmp.gt.f32.partialorder %v2133, 0.0
        %v2136 = vmul.f32 %v2132, 0.1
        %v2137 = vmul.f32 %v2133, 0.1
        %v2138 = vsel %vm2134, %v2132, %v2136
        %v2139 = vsel %vm2135, %v2133, %v2137
        %2142 = vrot.lane.b32.xlu0 %v2138, 1
        %v2143 = vpop.permute.xlu0 %2142
        %2144 = vrot.lane.b32.xlu0 %v2139, 1
        %v2145 = vpop.permute.xlu0 %2144
        %s2148 = scalar_lea.vmem [#allocation3], 48
        %2149 = vst.msk [vmem:[%s2148] sm:$0xff] %vm368, %v2143
        %2150 = vst.msk [vmem:[%s2148 + $0x8] sm:$0x3] %vm2086, %v2145
        %s2151 = sld [smem:[#allocation4 + $0x94]]
        %v2152 = vstv %s2151
        %v2153 = vadd.f32 %v2006, %v2152
        %v2154 = vadd.f32 %v2007, %v2152
        %vm2155 = vcmp.gt.f32.partialorder %v2153, 0.0
        %vm2156 = vcmp.gt.f32.partialorder %v2154, 0.0
        %v2157 = vmul.f32 %v2153, 0.1
        %v2158 = vmul.f32 %v2154, 0.1
        %v2159 = vsel %vm2155, %v2153, %v2157
        %v2160 = vsel %vm2156, %v2154, %v2158
        %2163 = vrot.lane.b32.xlu0 %v2159, 1
        %v2164 = vpop.permute.xlu0 %2163
        %2165 = vrot.lane.b32.xlu0 %v2160, 1
        %v2166 = vpop.permute.xlu0 %2165
        %s2169 = scalar_lea.vmem [#allocation3], 64
        %2170 = vst.msk [vmem:[%s2169] sm:$0xff] %vm368, %v2164
        %2171 = vst.msk [vmem:[%s2169 + $0x8] sm:$0x3] %vm2086, %v2166
        %s2172 = sld [smem:[#allocation4 + $0x95]]
        %v2173 = vstv %s2172
        %v2174 = vadd.f32 %v2020, %v2173
        %v2175 = vadd.f32 %v2021, %v2173
        %vm2176 = vcmp.gt.f32.partialorder %v2174, 0.0
        %vm2177 = vcmp.gt.f32.partialorder %v2175, 0.0
        %v2178 = vmul.f32 %v2174, 0.1
        %v2179 = vmul.f32 %v2175, 0.1
        %v2180 = vsel %vm2176, %v2174, %v2178
        %v2181 = vsel %vm2177, %v2175, %v2179
        %2184 = vrot.lane.b32.xlu0 %v2180, 1
        %v2185 = vpop.permute.xlu0 %2184
        %2186 = vrot.lane.b32.xlu0 %v2181, 1
        %v2187 = vpop.permute.xlu0 %2186
        %s2190 = scalar_lea.vmem [#allocation3], 80
        %2191 = vst.msk [vmem:[%s2190] sm:$0xff] %vm368, %v2185
        %2192 = vst.msk [vmem:[%s2190 + $0x8] sm:$0x3] %vm2086, %v2187
        %s2193 = sld [smem:[#allocation4 + $0x96]]
        %v2194 = vstv %s2193
        %v2195 = vadd.f32 %v2034, %v2194
        %v2196 = vadd.f32 %v2035, %v2194
        %vm2197 = vcmp.gt.f32.partialorder %v2195, 0.0
        %vm2198 = vcmp.gt.f32.partialorder %v2196, 0.0
        %v2199 = vmul.f32 %v2195, 0.1
        %v2200 = vmul.f32 %v2196, 0.1
        %v2201 = vsel %vm2197, %v2195, %v2199
        %v2202 = vsel %vm2198, %v2196, %v2200
        %2205 = vrot.lane.b32.xlu0 %v2201, 1
        %v2206 = vpop.permute.xlu0 %2205
        %2207 = vrot.lane.b32.xlu0 %v2202, 1
        %v2208 = vpop.permute.xlu0 %2207
        %s2211 = scalar_lea.vmem [#allocation3], 96
        %2212 = vst.msk [vmem:[%s2211] sm:$0xff] %vm368, %v2206
        %2213 = vst.msk [vmem:[%s2211 + $0x8] sm:$0x3] %vm2086, %v2208
        %s2214 = sld [smem:[#allocation4 + $0x97]]
        %v2215 = vstv %s2214
        %v2216 = vadd.f32 %v2048, %v2215
        %v2217 = vadd.f32 %v2049, %v2215
        %vm2218 = vcmp.gt.f32.partialorder %v2216, 0.0
        %vm2219 = vcmp.gt.f32.partialorder %v2217, 0.0
        %v2220 = vmul.f32 %v2216, 0.1
        %v2221 = vmul.f32 %v2217, 0.1
        %v2222 = vsel %vm2218, %v2216, %v2220
        %v2223 = vsel %vm2219, %v2217, %v2221
        %2226 = vrot.lane.b32.xlu0 %v2222, 1
        %v2227 = vpop.permute.xlu0 %2226
        %2228 = vrot.lane.b32.xlu0 %v2223, 1
        %v2229 = vpop.permute.xlu0 %2228
        %s2232 = scalar_lea.vmem [#allocation3], 112
        %2233 = vst.msk [vmem:[%s2232] sm:$0xff] %vm368, %v2227
        %2234 = vst.msk [vmem:[%s2232 + $0x8] sm:$0x3] %vm2086, %v2229
        %p2235 = scmp.eq.s32.totalorder %s30, 0
        // Predicated region
        $region61: #{tpu_custom_call.1} parent=35 // pred_check
          %p2236 = pneg %p2235
        $region62: #{tpu_custom_call.1} parent=35 // pred_check_branch
          %2238 = sbr.rel (%p2236) target = $region64
        $region63: #{tpu_custom_call.1} parent=35 // pred_region
          %vm2239 = vcmask 139264
          %2240 = vst.msk [vmem:[#allocation3] sm:$0x1] %vm2239, 0.0
          %2241 = vst.msk [vmem:[#allocation3 + $0x10] sm:$0x1] %vm2239, 0.0
          %2242 = vst.msk [vmem:[#allocation3 + $0x20] sm:$0x1] %vm2239, 0.0
          %2243 = vst.msk [vmem:[#allocation3 + $0x30] sm:$0x1] %vm2239, 0.0
          %2244 = vst.msk [vmem:[#allocation3 + $0x40] sm:$0x1] %vm2239, 0.0
          %2245 = vst.msk [vmem:[#allocation3 + $0x50] sm:$0x1] %vm2239, 0.0
          %2246 = vst.msk [vmem:[#allocation3 + $0x60] sm:$0x1] %vm2239, 0.0
          %2247 = vst.msk [vmem:[#allocation3 + $0x70] sm:$0x1] %vm2239, 0.0
        $region64: #{tpu_custom_call.1} parent=35 // pred_fallthru
          _
        %p2248 = scmp.eq.s32.totalorder %s30, 1
        // Predicated region
        $region65: #{tpu_custom_call.1} parent=35 // pred_check
          %p2249 = pneg %p2248
        $region66: #{tpu_custom_call.1} parent=35 // pred_check_branch
          %2251 = sbr.rel (%p2249) target = $region68
        $region67: #{tpu_custom_call.1} parent=35 // pred_region
          %vm2252 = vcmask 139264
          %2253 = vst.msk [vmem:[#allocation3 + $0x9] sm:$0x1] %vm2252, 0.0
          %2254 = vst.msk [vmem:[#allocation3 + $0x19] sm:$0x1] %vm2252, 0.0
          %2255 = vst.msk [vmem:[#allocation3 + $0x29] sm:$0x1] %vm2252, 0.0
          %2256 = vst.msk [vmem:[#allocation3 + $0x39] sm:$0x1] %vm2252, 0.0
          %2257 = vst.msk [vmem:[#allocation3 + $0x49] sm:$0x1] %vm2252, 0.0
          %2258 = vst.msk [vmem:[#allocation3 + $0x59] sm:$0x1] %vm2252, 0.0
          %2259 = vst.msk [vmem:[#allocation3 + $0x69] sm:$0x1] %vm2252, 0.0
          %2260 = vst.msk [vmem:[#allocation3 + $0x79] sm:$0x1] %vm2252, 0.0
        $region68: #{tpu_custom_call.1} parent=35 // pred_fallthru
          _
        %v2261 = vld [vmem:[#allocation3] sm:$0xff]
        %s2262 = sld [smem:[#allocation4 + $0x98]]
        %v2263 = vstv %s2262
        %v2264 = vmul.f32 %v2263, %v2261
        %v2265 = vadd.f32 %v2264, 0.0
        %s2266 = sld [smem:[#allocation4 + $0x99]]
        %v2267 = vstv %s2266
        %v2268 = vmul.f32 %v2267, %v2261
        %v2269 = vadd.f32 %v2268, 0.0
        %v2270 = vld [vmem:[%s2106] sm:$0xff]
        %s2271 = sld [smem:[#allocation4 + $0x9a]]
        %v2272 = vstv %s2271
        %v2273 = vmul.f32 %v2272, %v2270
        %v2274 = vadd.f32 %v2265, %v2273
        %s2275 = sld [smem:[#allocation4 + $0x9b]]
        %v2276 = vstv %s2275
        %v2277 = vmul.f32 %v2276, %v2270
        %v2278 = vadd.f32 %v2269, %v2277
        %v2279 = vld [vmem:[%s2127] sm:$0xff]
        %s2280 = sld [smem:[#allocation4 + $0x9c]]
        %v2281 = vstv %s2280
        %v2282 = vmul.f32 %v2281, %v2279
        %v2283 = vadd.f32 %v2274, %v2282
        %s2284 = sld [smem:[#allocation4 + $0x9d]]
        %v2285 = vstv %s2284
        %v2286 = vmul.f32 %v2285, %v2279
        %v2287 = vadd.f32 %v2278, %v2286
        %v2288 = vld [vmem:[%s2148] sm:$0xff]
        %s2289 = sld [smem:[#allocation4 + $0x9e]]
        %v2290 = vstv %s2289
        %v2291 = vmul.f32 %v2290, %v2288
        %v2292 = vadd.f32 %v2283, %v2291
        %s2293 = sld [smem:[#allocation4 + $0x9f]]
        %v2294 = vstv %s2293
        %v2295 = vmul.f32 %v2294, %v2288
        %v2296 = vadd.f32 %v2287, %v2295
        %v2297 = vld [vmem:[%s2169] sm:$0xff]
        %s2298 = sld [smem:[#allocation4 + $0xa0]]
        %v2299 = vstv %s2298
        %v2300 = vmul.f32 %v2299, %v2297
        %v2301 = vadd.f32 %v2292, %v2300
        %s2302 = sld [smem:[#allocation4 + $0xa1]]
        %v2303 = vstv %s2302
        %v2304 = vmul.f32 %v2303, %v2297
        %v2305 = vadd.f32 %v2296, %v2304
        %v2306 = vld [vmem:[%s2190] sm:$0xff]
        %s2307 = sld [smem:[#allocation4 + $0xa2]]
        %v2308 = vstv %s2307
        %v2309 = vmul.f32 %v2308, %v2306
        %v2310 = vadd.f32 %v2301, %v2309
        %s2311 = sld [smem:[#allocation4 + $0xa3]]
        %v2312 = vstv %s2311
        %v2313 = vmul.f32 %v2312, %v2306
        %v2314 = vadd.f32 %v2305, %v2313
        %v2315 = vld [vmem:[%s2211] sm:$0xff]
        %s2316 = sld [smem:[#allocation4 + $0xa4]]
        %v2317 = vstv %s2316
        %v2318 = vmul.f32 %v2317, %v2315
        %v2319 = vadd.f32 %v2310, %v2318
        %s2320 = sld [smem:[#allocation4 + $0xa5]]
        %v2321 = vstv %s2320
        %v2322 = vmul.f32 %v2321, %v2315
        %v2323 = vadd.f32 %v2314, %v2322
        %v2324 = vld [vmem:[%s2232] sm:$0xff]
        %s2325 = sld [smem:[#allocation4 + $0xa6]]
        %v2326 = vstv %s2325
        %v2327 = vmul.f32 %v2326, %v2324
        %v2328 = vadd.f32 %v2319, %v2327
        %s2329 = sld [smem:[#allocation4 + $0xa7]]
        %v2330 = vstv %s2329
        %v2331 = vmul.f32 %v2330, %v2324
        %v2332 = vadd.f32 %v2323, %v2331
        %s2333 = sld [smem:[#allocation4 + $0xa8]]
        %v2334 = vstv %s2333
        %v2335 = vmul.f32 %v2334, %v2261
        %2337 = vrot.lane.b32.xlu0 %v2335, 127
        %v2338 = vpop.permute.xlu0 %2337
        %v2340 = vadd.f32 %v2328, %v2338
        %s2341 = sld [smem:[#allocation4 + $0xa9]]
        %v2342 = vstv %s2341
        %v2343 = vmul.f32 %v2342, %v2261
        %2345 = vrot.lane.b32.xlu0 %v2343, 127
        %v2346 = vpop.permute.xlu0 %2345
        %v2348 = vadd.f32 %v2332, %v2346
        %s2349 = sld [smem:[#allocation4 + $0xaa]]
        %v2350 = vstv %s2349
        %v2351 = vmul.f32 %v2350, %v2270
        %2353 = vrot.lane.b32.xlu0 %v2351, 127
        %v2354 = vpop.permute.xlu0 %2353
        %v2356 = vadd.f32 %v2340, %v2354
        %s2357 = sld [smem:[#allocation4 + $0xab]]
        %v2358 = vstv %s2357
        %v2359 = vmul.f32 %v2358, %v2270
        %2361 = vrot.lane.b32.xlu0 %v2359, 127
        %v2362 = vpop.permute.xlu0 %2361
        %v2364 = vadd.f32 %v2348, %v2362
        %s2365 = sld [smem:[#allocation4 + $0xac]]
        %v2366 = vstv %s2365
        %v2367 = vmul.f32 %v2366, %v2279
        %2369 = vrot.lane.b32.xlu0 %v2367, 127
        %v2370 = vpop.permute.xlu0 %2369
        %v2372 = vadd.f32 %v2356, %v2370
        %s2373 = sld [smem:[#allocation4 + $0xad]]
        %v2374 = vstv %s2373
        %v2375 = vmul.f32 %v2374, %v2279
        %2377 = vrot.lane.b32.xlu0 %v2375, 127
        %v2378 = vpop.permute.xlu0 %2377
        %v2380 = vadd.f32 %v2364, %v2378
        %s2381 = sld [smem:[#allocation4 + $0xae]]
        %v2382 = vstv %s2381
        %v2383 = vmul.f32 %v2382, %v2288
        %2385 = vrot.lane.b32.xlu0 %v2383, 127
        %v2386 = vpop.permute.xlu0 %2385
        %v2388 = vadd.f32 %v2372, %v2386
        %s2389 = sld [smem:[#allocation4 + $0xaf]]
        %v2390 = vstv %s2389
        %v2391 = vmul.f32 %v2390, %v2288
        %2393 = vrot.lane.b32.xlu0 %v2391, 127
        %v2394 = vpop.permute.xlu0 %2393
        %v2396 = vadd.f32 %v2380, %v2394
        %s2397 = sld [smem:[#allocation4 + $0xb0]]
        %v2398 = vstv %s2397
        %v2399 = vmul.f32 %v2398, %v2297
        %2401 = vrot.lane.b32.xlu0 %v2399, 127
        %v2402 = vpop.permute.xlu0 %2401
        %v2404 = vadd.f32 %v2388, %v2402
        %s2405 = sld [smem:[#allocation4 + $0xb1]]
        %v2406 = vstv %s2405
        %v2407 = vmul.f32 %v2406, %v2297
        %2409 = vrot.lane.b32.xlu0 %v2407, 127
        %v2410 = vpop.permute.xlu0 %2409
        %v2412 = vadd.f32 %v2396, %v2410
        %s2413 = sld [smem:[#allocation4 + $0xb2]]
        %v2414 = vstv %s2413
        %v2415 = vmul.f32 %v2414, %v2306
        %2417 = vrot.lane.b32.xlu0 %v2415, 127
        %v2418 = vpop.permute.xlu0 %2417
        %v2420 = vadd.f32 %v2404, %v2418
        %s2421 = sld [smem:[#allocation4 + $0xb3]]
        %v2422 = vstv %s2421
        %v2423 = vmul.f32 %v2422, %v2306
        %2425 = vrot.lane.b32.xlu0 %v2423, 127
        %v2426 = vpop.permute.xlu0 %2425
        %v2428 = vadd.f32 %v2412, %v2426
        %s2429 = sld [smem:[#allocation4 + $0xb4]]
        %v2430 = vstv %s2429
        %v2431 = vmul.f32 %v2430, %v2315
        %2433 = vrot.lane.b32.xlu0 %v2431, 127
        %v2434 = vpop.permute.xlu0 %2433
        %v2436 = vadd.f32 %v2420, %v2434
        %s2437 = sld [smem:[#allocation4 + $0xb5]]
        %v2438 = vstv %s2437
        %v2439 = vmul.f32 %v2438, %v2315
        %2441 = vrot.lane.b32.xlu0 %v2439, 127
        %v2442 = vpop.permute.xlu0 %2441
        %v2444 = vadd.f32 %v2428, %v2442
        %s2445 = sld [smem:[#allocation4 + $0xb6]]
        %v2446 = vstv %s2445
        %v2447 = vmul.f32 %v2446, %v2324
        %2449 = vrot.lane.b32.xlu0 %v2447, 127
        %v2450 = vpop.permute.xlu0 %2449
        %v2452 = vadd.f32 %v2436, %v2450
        %s2453 = sld [smem:[#allocation4 + $0xb7]]
        %v2454 = vstv %s2453
        %v2455 = vmul.f32 %v2454, %v2324
        %2457 = vrot.lane.b32.xlu0 %v2455, 127
        %v2458 = vpop.permute.xlu0 %2457
        %v2460 = vadd.f32 %v2444, %v2458
        %s2461 = sld [smem:[#allocation4 + $0xb8]]
        %v2462 = vstv %s2461
        %v2463 = vmul.f32 %v2462, %v2261
        %2465 = vrot.lane.b32.xlu0 %v2463, 126
        %v2466 = vpop.permute.xlu0 %2465
        %v2468 = vadd.f32 %v2452, %v2466
        %s2469 = sld [smem:[#allocation4 + $0xb9]]
        %v2470 = vstv %s2469
        %v2471 = vmul.f32 %v2470, %v2261
        %2473 = vrot.lane.b32.xlu0 %v2471, 126
        %v2474 = vpop.permute.xlu0 %2473
        %v2476 = vadd.f32 %v2460, %v2474
        %s2477 = sld [smem:[#allocation4 + $0xba]]
        %v2478 = vstv %s2477
        %v2479 = vmul.f32 %v2478, %v2270
        %2481 = vrot.lane.b32.xlu0 %v2479, 126
        %v2482 = vpop.permute.xlu0 %2481
        %v2484 = vadd.f32 %v2468, %v2482
        %s2485 = sld [smem:[#allocation4 + $0xbb]]
        %v2486 = vstv %s2485
        %v2487 = vmul.f32 %v2486, %v2270
        %2489 = vrot.lane.b32.xlu0 %v2487, 126
        %v2490 = vpop.permute.xlu0 %2489
        %v2492 = vadd.f32 %v2476, %v2490
        %s2493 = sld [smem:[#allocation4 + $0xbc]]
        %v2494 = vstv %s2493
        %v2495 = vmul.f32 %v2494, %v2279
        %2497 = vrot.lane.b32.xlu0 %v2495, 126
        %v2498 = vpop.permute.xlu0 %2497
        %v2500 = vadd.f32 %v2484, %v2498
        %s2501 = sld [smem:[#allocation4 + $0xbd]]
        %v2502 = vstv %s2501
        %v2503 = vmul.f32 %v2502, %v2279
        %2505 = vrot.lane.b32.xlu0 %v2503, 126
        %v2506 = vpop.permute.xlu0 %2505
        %v2508 = vadd.f32 %v2492, %v2506
        %s2509 = sld [smem:[#allocation4 + $0xbe]]
        %v2510 = vstv %s2509
        %v2511 = vmul.f32 %v2510, %v2288
        %2513 = vrot.lane.b32.xlu0 %v2511, 126
        %v2514 = vpop.permute.xlu0 %2513
        %v2516 = vadd.f32 %v2500, %v2514
        %s2517 = sld [smem:[#allocation4 + $0xbf]]
        %v2518 = vstv %s2517
        %v2519 = vmul.f32 %v2518, %v2288
        %2521 = vrot.lane.b32.xlu0 %v2519, 126
        %v2522 = vpop.permute.xlu0 %2521
        %v2524 = vadd.f32 %v2508, %v2522
        %s2525 = sld [smem:[#allocation4 + $0xc0]]
        %v2526 = vstv %s2525
        %v2527 = vmul.f32 %v2526, %v2297
        %2529 = vrot.lane.b32.xlu0 %v2527, 126
        %v2530 = vpop.permute.xlu0 %2529
        %v2532 = vadd.f32 %v2516, %v2530
        %s2533 = sld [smem:[#allocation4 + $0xc1]]
        %v2534 = vstv %s2533
        %v2535 = vmul.f32 %v2534, %v2297
        %2537 = vrot.lane.b32.xlu0 %v2535, 126
        %v2538 = vpop.permute.xlu0 %2537
        %v2540 = vadd.f32 %v2524, %v2538
        %s2541 = sld [smem:[#allocation4 + $0xc2]]
        %v2542 = vstv %s2541
        %v2543 = vmul.f32 %v2542, %v2306
        %2545 = vrot.lane.b32.xlu0 %v2543, 126
        %v2546 = vpop.permute.xlu0 %2545
        %v2548 = vadd.f32 %v2532, %v2546
        %s2549 = sld [smem:[#allocation4 + $0xc3]]
        %v2550 = vstv %s2549
        %v2551 = vmul.f32 %v2550, %v2306
        %2553 = vrot.lane.b32.xlu0 %v2551, 126
        %v2554 = vpop.permute.xlu0 %2553
        %v2556 = vadd.f32 %v2540, %v2554
        %s2557 = sld [smem:[#allocation4 + $0xc4]]
        %v2558 = vstv %s2557
        %v2559 = vmul.f32 %v2558, %v2315
        %2561 = vrot.lane.b32.xlu0 %v2559, 126
        %v2562 = vpop.permute.xlu0 %2561
        %v2564 = vadd.f32 %v2548, %v2562
        %s2565 = sld [smem:[#allocation4 + $0xc5]]
        %v2566 = vstv %s2565
        %v2567 = vmul.f32 %v2566, %v2315
        %2569 = vrot.lane.b32.xlu0 %v2567, 126
        %v2570 = vpop.permute.xlu0 %2569
        %v2572 = vadd.f32 %v2556, %v2570
        %s2573 = sld [smem:[#allocation4 + $0xc6]]
        %v2574 = vstv %s2573
        %v2575 = vmul.f32 %v2574, %v2324
        %2577 = vrot.lane.b32.xlu0 %v2575, 126
        %v2578 = vpop.permute.xlu0 %2577
        %v2580 = vadd.f32 %v2564, %v2578
        %s2581 = sld [smem:[#allocation4 + $0xc7]]
        %v2582 = vstv %s2581
        %v2583 = vmul.f32 %v2582, %v2324
        %2585 = vrot.lane.b32.xlu0 %v2583, 126
        %v2586 = vpop.permute.xlu0 %2585
        %v2588 = vadd.f32 %v2572, %v2586
        %v2589 = vld [vmem:[#allocation3 + $0x1] sm:$0xff]
        %s2590 = sld [smem:[#allocation4 + $0xc8]]
        %v2591 = vstv %s2590
        %v2592 = vmul.f32 %v2591, %v2589
        %v2593 = vadd.f32 %v2580, %v2592
        %s2594 = sld [smem:[#allocation4 + $0xc9]]
        %v2595 = vstv %s2594
        %v2596 = vmul.f32 %v2595, %v2589
        %v2597 = vadd.f32 %v2588, %v2596
        %v2598 = vld [vmem:[%s2106 + $0x1] sm:$0xff]
        %s2599 = sld [smem:[#allocation4 + $0xca]]
        %v2600 = vstv %s2599
        %v2601 = vmul.f32 %v2600, %v2598
        %v2602 = vadd.f32 %v2593, %v2601
        %s2603 = sld [smem:[#allocation4 + $0xcb]]
        %v2604 = vstv %s2603
        %v2605 = vmul.f32 %v2604, %v2598
        %v2606 = vadd.f32 %v2597, %v2605
        %v2607 = vld [vmem:[%s2127 + $0x1] sm:$0xff]
        %s2608 = sld [smem:[#allocation4 + $0xcc]]
        %v2609 = vstv %s2608
        %v2610 = vmul.f32 %v2609, %v2607
        %v2611 = vadd.f32 %v2602, %v2610
        %s2612 = sld [smem:[#allocation4 + $0xcd]]
        %v2613 = vstv %s2612
        %v2614 = vmul.f32 %v2613, %v2607
        %v2615 = vadd.f32 %v2606, %v2614
        %v2616 = vld [vmem:[%s2148 + $0x1] sm:$0xff]
        %s2617 = sld [smem:[#allocation4 + $0xce]]
        %v2618 = vstv %s2617
        %v2619 = vmul.f32 %v2618, %v2616
        %v2620 = vadd.f32 %v2611, %v2619
        %s2621 = sld [smem:[#allocation4 + $0xcf]]
        %v2622 = vstv %s2621
        %v2623 = vmul.f32 %v2622, %v2616
        %v2624 = vadd.f32 %v2615, %v2623
        %v2625 = vld [vmem:[%s2169 + $0x1] sm:$0xff]
        %s2626 = sld [smem:[#allocation4 + $0xd0]]
        %v2627 = vstv %s2626
        %v2628 = vmul.f32 %v2627, %v2625
        %v2629 = vadd.f32 %v2620, %v2628
        %s2630 = sld [smem:[#allocation4 + $0xd1]]
        %v2631 = vstv %s2630
        %v2632 = vmul.f32 %v2631, %v2625
        %v2633 = vadd.f32 %v2624, %v2632
        %v2634 = vld [vmem:[%s2190 + $0x1] sm:$0xff]
        %s2635 = sld [smem:[#allocation4 + $0xd2]]
        %v2636 = vstv %s2635
        %v2637 = vmul.f32 %v2636, %v2634
        %v2638 = vadd.f32 %v2629, %v2637
        %s2639 = sld [smem:[#allocation4 + $0xd3]]
        %v2640 = vstv %s2639
        %v2641 = vmul.f32 %v2640, %v2634
        %v2642 = vadd.f32 %v2633, %v2641
        %v2643 = vld [vmem:[%s2211 + $0x1] sm:$0xff]
        %s2644 = sld [smem:[#allocation4 + $0xd4]]
        %v2645 = vstv %s2644
        %v2646 = vmul.f32 %v2645, %v2643
        %v2647 = vadd.f32 %v2638, %v2646
        %s2648 = sld [smem:[#allocation4 + $0xd5]]
        %v2649 = vstv %s2648
        %v2650 = vmul.f32 %v2649, %v2643
        %v2651 = vadd.f32 %v2642, %v2650
        %v2652 = vld [vmem:[%s2232 + $0x1] sm:$0xff]
        %s2653 = sld [smem:[#allocation4 + $0xd6]]
        %v2654 = vstv %s2653
        %v2655 = vmul.f32 %v2654, %v2652
        %v2656 = vadd.f32 %v2647, %v2655
        %s2657 = sld [smem:[#allocation4 + $0xd7]]
        %v2658 = vstv %s2657
        %v2659 = vmul.f32 %v2658, %v2652
        %v2660 = vadd.f32 %v2651, %v2659
        %s2661 = sld [smem:[#allocation4 + $0xd8]]
        %v2662 = vstv %s2661
        %v2663 = vmul.f32 %v2662, %v2589
        %2665 = vrot.lane.b32.xlu0 %v2663, 127
        %v2666 = vpop.permute.xlu0 %2665
        %v2668 = vadd.f32 %v2656, %v2666
        %s2669 = sld [smem:[#allocation4 + $0xd9]]
        %v2670 = vstv %s2669
        %v2671 = vmul.f32 %v2670, %v2589
        %2673 = vrot.lane.b32.xlu0 %v2671, 127
        %v2674 = vpop.permute.xlu0 %2673
        %v2676 = vadd.f32 %v2660, %v2674
        %s2677 = sld [smem:[#allocation4 + $0xda]]
        %v2678 = vstv %s2677
        %v2679 = vmul.f32 %v2678, %v2598
        %2681 = vrot.lane.b32.xlu0 %v2679, 127
        %v2682 = vpop.permute.xlu0 %2681
        %v2684 = vadd.f32 %v2668, %v2682
        %s2685 = sld [smem:[#allocation4 + $0xdb]]
        %v2686 = vstv %s2685
        %v2687 = vmul.f32 %v2686, %v2598
        %2689 = vrot.lane.b32.xlu0 %v2687, 127
        %v2690 = vpop.permute.xlu0 %2689
        %v2692 = vadd.f32 %v2676, %v2690
        %s2693 = sld [smem:[#allocation4 + $0xdc]]
        %v2694 = vstv %s2693
        %v2695 = vmul.f32 %v2694, %v2607
        %2697 = vrot.lane.b32.xlu0 %v2695, 127
        %v2698 = vpop.permute.xlu0 %2697
        %v2700 = vadd.f32 %v2684, %v2698
        %s2701 = sld [smem:[#allocation4 + $0xdd]]
        %v2702 = vstv %s2701
        %v2703 = vmul.f32 %v2702, %v2607
        %2705 = vrot.lane.b32.xlu0 %v2703, 127
        %v2706 = vpop.permute.xlu0 %2705
        %v2708 = vadd.f32 %v2692, %v2706
        %s2709 = sld [smem:[#allocation4 + $0xde]]
        %v2710 = vstv %s2709
        %v2711 = vmul.f32 %v2710, %v2616
        %2713 = vrot.lane.b32.xlu0 %v2711, 127
        %v2714 = vpop.permute.xlu0 %2713
        %v2716 = vadd.f32 %v2700, %v2714
        %s2717 = sld [smem:[#allocation4 + $0xdf]]
        %v2718 = vstv %s2717
        %v2719 = vmul.f32 %v2718, %v2616
        %2721 = vrot.lane.b32.xlu0 %v2719, 127
        %v2722 = vpop.permute.xlu0 %2721
        %v2724 = vadd.f32 %v2708, %v2722
        %s2725 = sld [smem:[#allocation4 + $0xe0]]
        %v2726 = vstv %s2725
        %v2727 = vmul.f32 %v2726, %v2625
        %2729 = vrot.lane.b32.xlu0 %v2727, 127
        %v2730 = vpop.permute.xlu0 %2729
        %v2732 = vadd.f32 %v2716, %v2730
        %s2733 = sld [smem:[#allocation4 + $0xe1]]
        %v2734 = vstv %s2733
        %v2735 = vmul.f32 %v2734, %v2625
        %2737 = vrot.lane.b32.xlu0 %v2735, 127
        %v2738 = vpop.permute.xlu0 %2737
        %v2740 = vadd.f32 %v2724, %v2738
        %s2741 = sld [smem:[#allocation4 + $0xe2]]
        %v2742 = vstv %s2741
        %v2743 = vmul.f32 %v2742, %v2634
        %2745 = vrot.lane.b32.xlu0 %v2743, 127
        %v2746 = vpop.permute.xlu0 %2745
        %v2748 = vadd.f32 %v2732, %v2746
        %s2749 = sld [smem:[#allocation4 + $0xe3]]
        %v2750 = vstv %s2749
        %v2751 = vmul.f32 %v2750, %v2634
        %2753 = vrot.lane.b32.xlu0 %v2751, 127
        %v2754 = vpop.permute.xlu0 %2753
        %v2756 = vadd.f32 %v2740, %v2754
        %s2757 = sld [smem:[#allocation4 + $0xe4]]
        %v2758 = vstv %s2757
        %v2759 = vmul.f32 %v2758, %v2643
        %2761 = vrot.lane.b32.xlu0 %v2759, 127
        %v2762 = vpop.permute.xlu0 %2761
        %v2764 = vadd.f32 %v2748, %v2762
        %s2765 = sld [smem:[#allocation4 + $0xe5]]
        %v2766 = vstv %s2765
        %v2767 = vmul.f32 %v2766, %v2643
        %2769 = vrot.lane.b32.xlu0 %v2767, 127
        %v2770 = vpop.permute.xlu0 %2769
        %v2772 = vadd.f32 %v2756, %v2770
        %s2773 = sld [smem:[#allocation4 + $0xe6]]
        %v2774 = vstv %s2773
        %v2775 = vmul.f32 %v2774, %v2652
        %2777 = vrot.lane.b32.xlu0 %v2775, 127
        %v2778 = vpop.permute.xlu0 %2777
        %v2780 = vadd.f32 %v2764, %v2778
        %s2781 = sld [smem:[#allocation4 + $0xe7]]
        %v2782 = vstv %s2781
        %v2783 = vmul.f32 %v2782, %v2652
        %2785 = vrot.lane.b32.xlu0 %v2783, 127
        %v2786 = vpop.permute.xlu0 %2785
        %v2788 = vadd.f32 %v2772, %v2786
        %s2789 = sld [smem:[#allocation4 + $0xe8]]
        %v2790 = vstv %s2789
        %v2791 = vmul.f32 %v2790, %v2589
        %2793 = vrot.lane.b32.xlu0 %v2791, 126
        %v2794 = vpop.permute.xlu0 %2793
        %v2796 = vadd.f32 %v2780, %v2794
        %s2797 = sld [smem:[#allocation4 + $0xe9]]
        %v2798 = vstv %s2797
        %v2799 = vmul.f32 %v2798, %v2589
        %2801 = vrot.lane.b32.xlu0 %v2799, 126
        %v2802 = vpop.permute.xlu0 %2801
        %v2804 = vadd.f32 %v2788, %v2802
        %s2805 = sld [smem:[#allocation4 + $0xea]]
        %v2806 = vstv %s2805
        %v2807 = vmul.f32 %v2806, %v2598
        %2809 = vrot.lane.b32.xlu0 %v2807, 126
        %v2810 = vpop.permute.xlu0 %2809
        %v2812 = vadd.f32 %v2796, %v2810
        %s2813 = sld [smem:[#allocation4 + $0xeb]]
        %v2814 = vstv %s2813
        %v2815 = vmul.f32 %v2814, %v2598
        %2817 = vrot.lane.b32.xlu0 %v2815, 126
        %v2818 = vpop.permute.xlu0 %2817
        %v2820 = vadd.f32 %v2804, %v2818
        %s2821 = sld [smem:[#allocation4 + $0xec]]
        %v2822 = vstv %s2821
        %v2823 = vmul.f32 %v2822, %v2607
        %2825 = vrot.lane.b32.xlu0 %v2823, 126
        %v2826 = vpop.permute.xlu0 %2825
        %v2828 = vadd.f32 %v2812, %v2826
        %s2829 = sld [smem:[#allocation4 + $0xed]]
        %v2830 = vstv %s2829
        %v2831 = vmul.f32 %v2830, %v2607
        %2833 = vrot.lane.b32.xlu0 %v2831, 126
        %v2834 = vpop.permute.xlu0 %2833
        %v2836 = vadd.f32 %v2820, %v2834
        %s2837 = sld [smem:[#allocation4 + $0xee]]
        %v2838 = vstv %s2837
        %v2839 = vmul.f32 %v2838, %v2616
        %2841 = vrot.lane.b32.xlu0 %v2839, 126
        %v2842 = vpop.permute.xlu0 %2841
        %v2844 = vadd.f32 %v2828, %v2842
        %s2845 = sld [smem:[#allocation4 + $0xef]]
        %v2846 = vstv %s2845
        %v2847 = vmul.f32 %v2846, %v2616
        %2849 = vrot.lane.b32.xlu0 %v2847, 126
        %v2850 = vpop.permute.xlu0 %2849
        %v2852 = vadd.f32 %v2836, %v2850
        %s2853 = sld [smem:[#allocation4 + $0xf0]]
        %v2854 = vstv %s2853
        %v2855 = vmul.f32 %v2854, %v2625
        %2857 = vrot.lane.b32.xlu0 %v2855, 126
        %v2858 = vpop.permute.xlu0 %2857
        %v2860 = vadd.f32 %v2844, %v2858
        %s2861 = sld [smem:[#allocation4 + $0xf1]]
        %v2862 = vstv %s2861
        %v2863 = vmul.f32 %v2862, %v2625
        %2865 = vrot.lane.b32.xlu0 %v2863, 126
        %v2866 = vpop.permute.xlu0 %2865
        %v2868 = vadd.f32 %v2852, %v2866
        %s2869 = sld [smem:[#allocation4 + $0xf2]]
        %v2870 = vstv %s2869
        %v2871 = vmul.f32 %v2870, %v2634
        %2873 = vrot.lane.b32.xlu0 %v2871, 126
        %v2874 = vpop.permute.xlu0 %2873
        %v2876 = vadd.f32 %v2860, %v2874
        %s2877 = sld [smem:[#allocation4 + $0xf3]]
        %v2878 = vstv %s2877
        %v2879 = vmul.f32 %v2878, %v2634
        %2881 = vrot.lane.b32.xlu0 %v2879, 126
        %v2882 = vpop.permute.xlu0 %2881
        %v2884 = vadd.f32 %v2868, %v2882
        %s2885 = sld [smem:[#allocation4 + $0xf4]]
        %v2886 = vstv %s2885
        %v2887 = vmul.f32 %v2886, %v2643
        %2889 = vrot.lane.b32.xlu0 %v2887, 126
        %v2890 = vpop.permute.xlu0 %2889
        %v2892 = vadd.f32 %v2876, %v2890
        %s2893 = sld [smem:[#allocation4 + $0xf5]]
        %v2894 = vstv %s2893
        %v2895 = vmul.f32 %v2894, %v2643
        %2897 = vrot.lane.b32.xlu0 %v2895, 126
        %v2898 = vpop.permute.xlu0 %2897
        %v2900 = vadd.f32 %v2884, %v2898
        %s2901 = sld [smem:[#allocation4 + $0xf6]]
        %v2902 = vstv %s2901
        %v2903 = vmul.f32 %v2902, %v2652
        %2905 = vrot.lane.b32.xlu0 %v2903, 126
        %v2906 = vpop.permute.xlu0 %2905
        %v2908 = vadd.f32 %v2892, %v2906
        %s2909 = sld [smem:[#allocation4 + $0xf7]]
        %v2910 = vstv %s2909
        %v2911 = vmul.f32 %v2910, %v2652
        %2913 = vrot.lane.b32.xlu0 %v2911, 126
        %v2914 = vpop.permute.xlu0 %2913
        %v2916 = vadd.f32 %v2900, %v2914
        %v2917 = vld [vmem:[#allocation3 + $0x2] sm:$0xff]
        %s2918 = sld [smem:[#allocation4 + $0xf8]]
        %v2919 = vstv %s2918
        %v2920 = vmul.f32 %v2919, %v2917
        %v2921 = vadd.f32 %v2908, %v2920
        %s2922 = sld [smem:[#allocation4 + $0xf9]]
        %v2923 = vstv %s2922
        %v2924 = vmul.f32 %v2923, %v2917
        %v2925 = vadd.f32 %v2916, %v2924
        %v2926 = vld [vmem:[%s2106 + $0x2] sm:$0xff]
        %s2927 = sld [smem:[#allocation4 + $0xfa]]
        %v2928 = vstv %s2927
        %v2929 = vmul.f32 %v2928, %v2926
        %v2930 = vadd.f32 %v2921, %v2929
        %s2931 = sld [smem:[#allocation4 + $0xfb]]
        %v2932 = vstv %s2931
        %v2933 = vmul.f32 %v2932, %v2926
        %v2934 = vadd.f32 %v2925, %v2933
        %v2935 = vld [vmem:[%s2127 + $0x2] sm:$0xff]
        %s2936 = sld [smem:[#allocation4 + $0xfc]]
        %v2937 = vstv %s2936
        %v2938 = vmul.f32 %v2937, %v2935
        %v2939 = vadd.f32 %v2930, %v2938
        %s2940 = sld [smem:[#allocation4 + $0xfd]]
        %v2941 = vstv %s2940
        %v2942 = vmul.f32 %v2941, %v2935
        %v2943 = vadd.f32 %v2934, %v2942
        %v2944 = vld [vmem:[%s2148 + $0x2] sm:$0xff]
        %s2945 = sld [smem:[#allocation4 + $0xfe]]
        %v2946 = vstv %s2945
        %v2947 = vmul.f32 %v2946, %v2944
        %v2948 = vadd.f32 %v2939, %v2947
        %s2949 = sld [smem:[#allocation4 + $0xff]]
        %v2950 = vstv %s2949
        %v2951 = vmul.f32 %v2950, %v2944
        %v2952 = vadd.f32 %v2943, %v2951
        %v2953 = vld [vmem:[%s2169 + $0x2] sm:$0xff]
        %s2954 = sld [smem:[#allocation4 + $0x100]]
        %v2955 = vstv %s2954
        %v2956 = vmul.f32 %v2955, %v2953
        %v2957 = vadd.f32 %v2948, %v2956
        %s2958 = sld [smem:[#allocation4 + $0x101]]
        %v2959 = vstv %s2958
        %v2960 = vmul.f32 %v2959, %v2953
        %v2961 = vadd.f32 %v2952, %v2960
        %v2962 = vld [vmem:[%s2190 + $0x2] sm:$0xff]
        %s2963 = sld [smem:[#allocation4 + $0x102]]
        %v2964 = vstv %s2963
        %v2965 = vmul.f32 %v2964, %v2962
        %v2966 = vadd.f32 %v2957, %v2965
        %s2967 = sld [smem:[#allocation4 + $0x103]]
        %v2968 = vstv %s2967
        %v2969 = vmul.f32 %v2968, %v2962
        %v2970 = vadd.f32 %v2961, %v2969
        %v2971 = vld [vmem:[%s2211 + $0x2] sm:$0xff]
        %s2972 = sld [smem:[#allocation4 + $0x104]]
        %v2973 = vstv %s2972
        %v2974 = vmul.f32 %v2973, %v2971
        %v2975 = vadd.f32 %v2966, %v2974
        %s2976 = sld [smem:[#allocation4 + $0x105]]
        %v2977 = vstv %s2976
        %v2978 = vmul.f32 %v2977, %v2971
        %v2979 = vadd.f32 %v2970, %v2978
        %v2980 = vld [vmem:[%s2232 + $0x2] sm:$0xff]
        %s2981 = sld [smem:[#allocation4 + $0x106]]
        %v2982 = vstv %s2981
        %v2983 = vmul.f32 %v2982, %v2980
        %v2984 = vadd.f32 %v2975, %v2983
        %s2985 = sld [smem:[#allocation4 + $0x107]]
        %v2986 = vstv %s2985
        %v2987 = vmul.f32 %v2986, %v2980
        %v2988 = vadd.f32 %v2979, %v2987
        %s2989 = sld [smem:[#allocation4 + $0x108]]
        %v2990 = vstv %s2989
        %v2991 = vmul.f32 %v2990, %v2917
        %2993 = vrot.lane.b32.xlu0 %v2991, 127
        %v2994 = vpop.permute.xlu0 %2993
        %v2996 = vadd.f32 %v2984, %v2994
        %s2997 = sld [smem:[#allocation4 + $0x109]]
        %v2998 = vstv %s2997
        %v2999 = vmul.f32 %v2998, %v2917
        %3001 = vrot.lane.b32.xlu0 %v2999, 127
        %v3002 = vpop.permute.xlu0 %3001
        %v3004 = vadd.f32 %v2988, %v3002
        %s3005 = sld [smem:[#allocation4 + $0x10a]]
        %v3006 = vstv %s3005
        %v3007 = vmul.f32 %v3006, %v2926
        %3009 = vrot.lane.b32.xlu0 %v3007, 127
        %v3010 = vpop.permute.xlu0 %3009
        %v3012 = vadd.f32 %v2996, %v3010
        %s3013 = sld [smem:[#allocation4 + $0x10b]]
        %v3014 = vstv %s3013
        %v3015 = vmul.f32 %v3014, %v2926
        %3017 = vrot.lane.b32.xlu0 %v3015, 127
        %v3018 = vpop.permute.xlu0 %3017
        %v3020 = vadd.f32 %v3004, %v3018
        %s3021 = sld [smem:[#allocation4 + $0x10c]]
        %v3022 = vstv %s3021
        %v3023 = vmul.f32 %v3022, %v2935
        %3025 = vrot.lane.b32.xlu0 %v3023, 127
        %v3026 = vpop.permute.xlu0 %3025
        %v3028 = vadd.f32 %v3012, %v3026
        %s3029 = sld [smem:[#allocation4 + $0x10d]]
        %v3030 = vstv %s3029
        %v3031 = vmul.f32 %v3030, %v2935
        %3033 = vrot.lane.b32.xlu0 %v3031, 127
        %v3034 = vpop.permute.xlu0 %3033
        %v3036 = vadd.f32 %v3020, %v3034
        %s3037 = sld [smem:[#allocation4 + $0x10e]]
        %v3038 = vstv %s3037
        %v3039 = vmul.f32 %v3038, %v2944
        %3041 = vrot.lane.b32.xlu0 %v3039, 127
        %v3042 = vpop.permute.xlu0 %3041
        %v3044 = vadd.f32 %v3028, %v3042
        %s3045 = sld [smem:[#allocation4 + $0x10f]]
        %v3046 = vstv %s3045
        %v3047 = vmul.f32 %v3046, %v2944
        %3049 = vrot.lane.b32.xlu0 %v3047, 127
        %v3050 = vpop.permute.xlu0 %3049
        %v3052 = vadd.f32 %v3036, %v3050
        %s3053 = sld [smem:[#allocation4 + $0x110]]
        %v3054 = vstv %s3053
        %v3055 = vmul.f32 %v3054, %v2953
        %3057 = vrot.lane.b32.xlu0 %v3055, 127
        %v3058 = vpop.permute.xlu0 %3057
        %v3060 = vadd.f32 %v3044, %v3058
        %s3061 = sld [smem:[#allocation4 + $0x111]]
        %v3062 = vstv %s3061
        %v3063 = vmul.f32 %v3062, %v2953
        %3065 = vrot.lane.b32.xlu0 %v3063, 127
        %v3066 = vpop.permute.xlu0 %3065
        %v3068 = vadd.f32 %v3052, %v3066
        %s3069 = sld [smem:[#allocation4 + $0x112]]
        %v3070 = vstv %s3069
        %v3071 = vmul.f32 %v3070, %v2962
        %3073 = vrot.lane.b32.xlu0 %v3071, 127
        %v3074 = vpop.permute.xlu0 %3073
        %v3076 = vadd.f32 %v3060, %v3074
        %s3077 = sld [smem:[#allocation4 + $0x113]]
        %v3078 = vstv %s3077
        %v3079 = vmul.f32 %v3078, %v2962
        %3081 = vrot.lane.b32.xlu0 %v3079, 127
        %v3082 = vpop.permute.xlu0 %3081
        %v3084 = vadd.f32 %v3068, %v3082
        %s3085 = sld [smem:[#allocation4 + $0x114]]
        %v3086 = vstv %s3085
        %v3087 = vmul.f32 %v3086, %v2971
        %3089 = vrot.lane.b32.xlu0 %v3087, 127
        %v3090 = vpop.permute.xlu0 %3089
        %v3092 = vadd.f32 %v3076, %v3090
        %s3093 = sld [smem:[#allocation4 + $0x115]]
        %v3094 = vstv %s3093
        %v3095 = vmul.f32 %v3094, %v2971
        %3097 = vrot.lane.b32.xlu0 %v3095, 127
        %v3098 = vpop.permute.xlu0 %3097
        %v3100 = vadd.f32 %v3084, %v3098
        %s3101 = sld [smem:[#allocation4 + $0x116]]
        %v3102 = vstv %s3101
        %v3103 = vmul.f32 %v3102, %v2980
        %3105 = vrot.lane.b32.xlu0 %v3103, 127
        %v3106 = vpop.permute.xlu0 %3105
        %v3108 = vadd.f32 %v3092, %v3106
        %s3109 = sld [smem:[#allocation4 + $0x117]]
        %v3110 = vstv %s3109
        %v3111 = vmul.f32 %v3110, %v2980
        %3113 = vrot.lane.b32.xlu0 %v3111, 127
        %v3114 = vpop.permute.xlu0 %3113
        %v3116 = vadd.f32 %v3100, %v3114
        %s3117 = sld [smem:[#allocation4 + $0x118]]
        %v3118 = vstv %s3117
        %v3119 = vmul.f32 %v3118, %v2917
        %3121 = vrot.lane.b32.xlu0 %v3119, 126
        %v3122 = vpop.permute.xlu0 %3121
        %v3124 = vadd.f32 %v3108, %v3122
        %s3125 = sld [smem:[#allocation4 + $0x119]]
        %v3126 = vstv %s3125
        %v3127 = vmul.f32 %v3126, %v2917
        %3129 = vrot.lane.b32.xlu0 %v3127, 126
        %v3130 = vpop.permute.xlu0 %3129
        %v3132 = vadd.f32 %v3116, %v3130
        %s3133 = sld [smem:[#allocation4 + $0x11a]]
        %v3134 = vstv %s3133
        %v3135 = vmul.f32 %v3134, %v2926
        %3137 = vrot.lane.b32.xlu0 %v3135, 126
        %v3138 = vpop.permute.xlu0 %3137
        %v3140 = vadd.f32 %v3124, %v3138
        %s3141 = sld [smem:[#allocation4 + $0x11b]]
        %v3142 = vstv %s3141
        %v3143 = vmul.f32 %v3142, %v2926
        %3145 = vrot.lane.b32.xlu0 %v3143, 126
        %v3146 = vpop.permute.xlu0 %3145
        %v3148 = vadd.f32 %v3132, %v3146
        %s3149 = sld [smem:[#allocation4 + $0x11c]]
        %v3150 = vstv %s3149
        %v3151 = vmul.f32 %v3150, %v2935
        %3153 = vrot.lane.b32.xlu0 %v3151, 126
        %v3154 = vpop.permute.xlu0 %3153
        %v3156 = vadd.f32 %v3140, %v3154
        %s3157 = sld [smem:[#allocation4 + $0x11d]]
        %v3158 = vstv %s3157
        %v3159 = vmul.f32 %v3158, %v2935
        %3161 = vrot.lane.b32.xlu0 %v3159, 126
        %v3162 = vpop.permute.xlu0 %3161
        %v3164 = vadd.f32 %v3148, %v3162
        %s3165 = sld [smem:[#allocation4 + $0x11e]]
        %v3166 = vstv %s3165
        %v3167 = vmul.f32 %v3166, %v2944
        %3169 = vrot.lane.b32.xlu0 %v3167, 126
        %v3170 = vpop.permute.xlu0 %3169
        %v3172 = vadd.f32 %v3156, %v3170
        %s3173 = sld [smem:[#allocation4 + $0x11f]]
        %v3174 = vstv %s3173
        %v3175 = vmul.f32 %v3174, %v2944
        %3177 = vrot.lane.b32.xlu0 %v3175, 126
        %v3178 = vpop.permute.xlu0 %3177
        %v3180 = vadd.f32 %v3164, %v3178
        %s3181 = sld [smem:[#allocation4 + $0x120]]
        %v3182 = vstv %s3181
        %v3183 = vmul.f32 %v3182, %v2953
        %3185 = vrot.lane.b32.xlu0 %v3183, 126
        %v3186 = vpop.permute.xlu0 %3185
        %v3188 = vadd.f32 %v3172, %v3186
        %s3189 = sld [smem:[#allocation4 + $0x121]]
        %v3190 = vstv %s3189
        %v3191 = vmul.f32 %v3190, %v2953
        %3193 = vrot.lane.b32.xlu0 %v3191, 126
        %v3194 = vpop.permute.xlu0 %3193
        %v3196 = vadd.f32 %v3180, %v3194
        %s3197 = sld [smem:[#allocation4 + $0x122]]
        %v3198 = vstv %s3197
        %v3199 = vmul.f32 %v3198, %v2962
        %3201 = vrot.lane.b32.xlu0 %v3199, 126
        %v3202 = vpop.permute.xlu0 %3201
        %v3204 = vadd.f32 %v3188, %v3202
        %s3205 = sld [smem:[#allocation4 + $0x123]]
        %v3206 = vstv %s3205
        %v3207 = vmul.f32 %v3206, %v2962
        %3209 = vrot.lane.b32.xlu0 %v3207, 126
        %v3210 = vpop.permute.xlu0 %3209
        %v3212 = vadd.f32 %v3196, %v3210
        %s3213 = sld [smem:[#allocation4 + $0x124]]
        %v3214 = vstv %s3213
        %v3215 = vmul.f32 %v3214, %v2971
        %3217 = vrot.lane.b32.xlu0 %v3215, 126
        %v3218 = vpop.permute.xlu0 %3217
        %v3220 = vadd.f32 %v3204, %v3218
        %s3221 = sld [smem:[#allocation4 + $0x125]]
        %v3222 = vstv %s3221
        %v3223 = vmul.f32 %v3222, %v2971
        %3225 = vrot.lane.b32.xlu0 %v3223, 126
        %v3226 = vpop.permute.xlu0 %3225
        %v3228 = vadd.f32 %v3212, %v3226
        %s3229 = sld [smem:[#allocation4 + $0x126]]
        %v3230 = vstv %s3229
        %v3231 = vmul.f32 %v3230, %v2980
        %3233 = vrot.lane.b32.xlu0 %v3231, 126
        %v3234 = vpop.permute.xlu0 %3233
        %v3236 = vadd.f32 %v3220, %v3234
        %s3237 = sld [smem:[#allocation4 + $0x127]]
        %v3238 = vstv %s3237
        %v3239 = vmul.f32 %v3238, %v2980
        %3241 = vrot.lane.b32.xlu0 %v3239, 126
        %v3242 = vpop.permute.xlu0 %3241
        %v3244 = vadd.f32 %v3228, %v3242
        %s3245 = sld [smem:[#allocation4 + $0x128]]
        %v3246 = vstv %s3245
        %v3247 = vadd.f32 %v3236, %v3246
        %vm3248 = vcmask 130048
        %3249 = vst.msk [vmem:[%s345] sm:$0xff] %vm3248, %v3247
        %s3250 = sld [smem:[#allocation4 + $0x129]]
        %v3251 = vstv %s3250
        %v3252 = vadd.f32 %v3244, %v3251
        %s3253 = scalar_lea.vmem %s345, 8 [#allocation12]
        %3254 = vst.msk [vmem:[%s3253] sm:$0xff] %vm3248, %v3252
        %s3255 = sand.u32 %s164, 1
        %s3256 = scalar_lea.sflag [#allocation6], %s3255
        %s3257 = sand.u32 %s164, 1
        %s3258 = smul.addr %s3257, 16
        %s3259 = scalar_lea.vmem [#allocation12], %s3258
        // Predicated region
        $region69: #{tpu_custom_call.1} parent=35 // pred_check
          %p3260 = pneg %p174
        $region70: #{tpu_custom_call.1} parent=35 // pred_check_branch
          %3262 = sbr.rel (%p3260) target = $region72
        $region71: #{tpu_custom_call.1} parent=35 // pred_region
          %s3264 = ssub.s32 256, 256
          %3265 = vsyncadd %s3256, %s3264
          %s3266 = smul.addr %s29, 4
          %s3267 = sadd.s32 %s30, %s3266
          %s3268 = smul.addr %s3267, 128
          %s3269 = scalar_lea.hbm %s4, %s3268
          %s3270 = sshll.u32 %s3259, 4
          %s3271 = int_to_ptr.vmem [resolvable:$true] %s3270
          %3276 = dma.vmem_to_hbm [thread:$0]  %s3271, 256, %s3269, %s3256, 128, 256, 8
        $region72: #{tpu_custom_call.1} parent=35 // pred_fallthru
          _
      $region36: #{tpu_custom_call.1} parent=5 // pred_fallthru
        _
      %p3277 = scmp.le.s32.totalorder 2, %s20
      // Predicated region
      $region73: #{tpu_custom_call.1} parent=5 // pred_check
        %p3278 = pneg %p3277
      $region74: #{tpu_custom_call.1} parent=5 // pred_check_branch
        %3280 = sbr.rel (%p3278) target = $region76
      $region75: #{tpu_custom_call.1} parent=5 // pred_region
        %s3281 = ssub.s32 %s20, 2
        // Predicated region
        $region77: #{tpu_custom_call.1} parent=75 // pred_check
          %p3282 = pneg %p180
        $region78: #{tpu_custom_call.1} parent=75 // pred_check_branch
          %3284 = sbr.rel (%p3282) target = $region80
        $region79: #{tpu_custom_call.1} parent=75 // pred_region
          %s3285 = sand.u32 %s165, 1
          %s3286 = scalar_lea.sflag [#allocation6], %s3285
          %s3287 = sand.u32 %s165, 1
          %s3288 = smul.addr %s3287, 16
          %s3289 = scalar_lea.vmem [#allocation12], %s3288
          %3290 = dma.done %s3286, 256
        $region80: #{tpu_custom_call.1} parent=75 // pred_fallthru
          _
      $region76: #{tpu_custom_call.1} parent=5 // pred_fallthru
        _
    $region6: #{tpu_custom_call.1} parent=1 // loop_footer
      %s24 = sadd.s32 1, %s20
    $region7: #{tpu_custom_call.1} parent=1 // loop_footer_branch
      %19 = sbr.rel target = $region3
    $region8: #{tpu_custom_call.1} parent=1 // loop_exit
      _
    %3291 = vsyncpa [#allocation5], 1
    %s3292 = scalar_lea.sflag [#allocation5], 1
    %3293 = vsyncpa %s3292, 1
    %3294 = vsyncpa [#allocation10], 1
    %s3295 = scalar_lea.sflag [#allocation10], 1
    %3296 = vsyncpa %s3295, 1
    %3297 = vsyncpa [#allocation6], 1
    %s3298 = scalar_lea.sflag [#allocation6], 1
    %3299 = vsyncpa %s3298, 1
    %3300 = vsyncpa [#allocation7], 1
    %s3301 = scalar_lea.sflag [#allocation7], 1
    %3302 = vsyncpa %s3301, 1

</llo_original>
